<compile_context>
chip_gen: v7x
topology: tpu7x:2x2x1
jax: 0.10.0
libtpu: 0.0.40
codegen_flags: <defaults>
</compile_context>

<pallas_src>
from functools import partial
import math

import numpy as np
import jax
import jax.numpy as jnp
from jax.experimental import pallas as pl
from jax.experimental.pallas import tpu as pltpu


# ----------------------------------------------------------------------------
# shared math helpers (used both inside Pallas kernels and in the reference)
# ----------------------------------------------------------------------------
_SQRT_2_OVER_PI = math.sqrt(2.0 / math.pi)


def _gelu(x):
    # TODO(synk): torch nn.GELU() default is the exact erf form; the tanh form is
    # used here so the transcendental lands on the EUP slot (max abs dev ~1e-3).
    return 0.5 * x * (1.0 + jnp.tanh(_SQRT_2_OVER_PI * (x + 0.044715 * x * x * x)))


def _layernorm(x, g, b, eps):
    mu = jnp.mean(x, axis=-1, keepdims=True)
    xc = x - mu
    var = jnp.mean(xc * xc, axis=-1, keepdims=True)
    return xc * jax.lax.rsqrt(var + eps) * g + b


def _mm(a, b, mxu_dtype=None):
    if mxu_dtype is not None:
        a = a.astype(mxu_dtype)
        b = b.astype(mxu_dtype)
    return jnp.dot(a, b, preferred_element_type=jnp.float32)


def _mm_nt(a, b, mxu_dtype=None):
    # a @ b^T without materializing the transpose (contract the last dim of both).
    if mxu_dtype is not None:
        a = a.astype(mxu_dtype)
        b = b.astype(mxu_dtype)
    return jax.lax.dot_general(a, b, (((1,), (1,)), ((), ())),
                               preferred_element_type=jnp.float32)


def _attn_core(q, k, v, dim_out, mxu_dtype):
    # SimplifiedAttn body (dropout = identity): softmax(q k^T / sqrt(d)) v + q
    scale = 1.0 / math.sqrt(dim_out)
    s = _mm_nt(q, k, mxu_dtype) * scale
    s = s - jnp.max(s, axis=-1, keepdims=True)
    p = jnp.exp(s)
    p = p * (1.0 / jnp.sum(p, axis=-1, keepdims=True))
    return _mm(p, v, mxu_dtype) + q


# ----------------------------------------------------------------------------
# plain-JAX glue (reshapes / trace-time constants)
# ----------------------------------------------------------------------------
def split_im_jax(im, splits):
    """Exact port of split_im: (B, C, Y, X) -> (B, splits**2, y_k*x_k, C)."""
    b, c, y, x = im.shape
    y_k = (y + splits - 1) // splits
    x_k = (x + splits - 1) // splits
    im = jnp.pad(im, ((0, 0), (0, 0), (0, y_k * splits - y), (0, x_k * splits - x)))
    im = im.reshape(b, c, splits, y_k, splits, x_k)
    im = jnp.transpose(im, (0, 2, 4, 3, 5, 1))          # (b, sy, sx, y_k, x_k, c)
    return im.reshape(b, splits * splits, y_k * x_k, c)


def sine_pos_embed(h, w, num_pos_feats, temperature=10000.0, normalize=False,
                   scale=2.0 * math.pi):
    # TODO(synk): PositionEmbeddingSineMaskless is not in the provided source; this is
    # the standard DETR sine embedding (maskless), returning (h, w, 2*num_pos_feats).
    y_embed = jnp.arange(1, h + 1, dtype=jnp.float32)[:, None] * jnp.ones((1, w), jnp.float32)
    x_embed = jnp.arange(1, w + 1, dtype=jnp.float32)[None, :] * jnp.ones((h, 1), jnp.float32)
    if normalize:
        eps = 1e-6
        y_embed = y_embed / (y_embed[-1:, :] + eps) * scale
        x_embed = x_embed / (x_embed[:, -1:] + eps) * scale
    dim_t = jnp.arange(num_pos_feats, dtype=jnp.float32)
    dim_t = temperature ** (2.0 * jnp.floor(dim_t / 2.0) / num_pos_feats)
    pos_x = x_embed[:, :, None] / dim_t
    pos_y = y_embed[:, :, None] / dim_t
    pos_x = jnp.stack([jnp.sin(pos_x[..., 0::2]), jnp.cos(pos_x[..., 1::2])],
                      axis=-1).reshape(h, w, -1)
    pos_y = jnp.stack([jnp.sin(pos_y[..., 0::2]), jnp.cos(pos_y[..., 1::2])],
                      axis=-1).reshape(h, w, -1)
    return jnp.concatenate([pos_y, pos_x], axis=-1)


def _adaptive_pool_matrix_1d(in_size, out_size):
    m = np.zeros((out_size, in_size), np.float32)
    for i in range(out_size):
        s = (i * in_size) // out_size
        e = -((-(i + 1) * in_size) // out_size)          # ceil((i+1)*in/out)
        m[i, s:e] = 1.0 / (e - s)
    return m


def adaptive_pool_matrix_2d(y_k, x_k, x_dim):
    """Exact AdaptiveAvgPool2d((x_dim, x_dim)) as a (x_dim^2, y_k*x_k) matrix."""
    py = _adaptive_pool_matrix_1d(y_k, x_dim)
    px = _adaptive_pool_matrix_1d(x_k, x_dim)
    return jnp.asarray(np.kron(py, px))


# ----------------------------------------------------------------------------
# Pallas kernel 1: emb branch  (embW -> chunk -> attn1 -> +emb -> qw)
# ----------------------------------------------------------------------------
def _emb_query_kernel(emb_ref, w_emb_ref, b_emb_ref, n1g_ref, n1b_ref,
                      w_q_ref, b_q_ref, out_ref, *, dim_out, eps, mxu_dtype):
    e = emb_ref[...].astype(jnp.float32)                          # (Q, Co)
    e3 = _mm(e, w_emb_ref[...], mxu_dtype) + b_emb_ref[...]       # (Q, 3*Co)
    q1 = e3[:, :dim_out]
    k1 = e3[:, dim_out:2 * dim_out]
    v1 = e3[:, 2 * dim_out:]
    o = _attn_core(q1, k1, v1, dim_out, mxu_dtype)
    o = _layernorm(o, n1g_ref[...], n1b_ref[...], eps)
    e_new = o + e                                                 # emb = attn1(*embW) + emb
    q_out = _mm(e_new, w_q_ref[...], mxu_dtype) + b_q_ref[...]    # q = qw(emb)
    out_ref[...] = q_out.astype(out_ref.dtype)


def emb_query_projection(emb, p, *, eps=1e-5, mxu_dtype=None):
    B, Q, Co = emb.shape
    f = pl.pallas_call(
        partial(_emb_query_kernel, dim_out=Co, eps=eps, mxu_dtype=mxu_dtype),
        out_shape=jax.ShapeDtypeStruct((B, Q, Co), emb.dtype),
        grid=(B,),
        in_specs=[
            pl.BlockSpec((None, Q, Co), lambda b: (b, 0, 0)),     # emb
            pl.BlockSpec((Co, 3 * Co), lambda b: (0, 0)),         # embW weight
            pl.BlockSpec((1, 3 * Co), lambda b: (0, 0)),          # embW bias
            pl.BlockSpec((1, Co), lambda b: (0, 0)),              # norm1 gamma
            pl.BlockSpec((1, Co), lambda b: (0, 0)),              # norm1 beta
            pl.BlockSpec((Co, Co), lambda b: (0, 0)),             # qw weight
            pl.BlockSpec((1, Co), lambda b: (0, 0)),              # qw bias
        ],
        out_specs=pl.BlockSpec((None, Q, Co), lambda b: (b, 0, 0)),
        compiler_params=pltpu.CompilerParams(dimension_semantics=("parallel",)),
    )
    return f(emb, p["w_emb"], p["b_emb"].reshape(1, -1),
             p["n1_g"].reshape(1, -1), p["n1_b"].reshape(1, -1),
             p["w_q"], p["b_q"].reshape(1, -1))


# ----------------------------------------------------------------------------
# Pallas kernel 2: image branch
#   kw/vw (+pos), cross attn1, pooled residual (res_upsample), AttnPost.
# ----------------------------------------------------------------------------
def _cross_attn_block_kernel(x_ref, pos_ref, q_ref, pool_ref,
                             w_k_ref, b_k_ref, w_v_ref, b_v_ref,
                             w_r_ref, b_r_ref,
                             n1g_ref, n1b_ref,
                             w1_ref, b1_ref, w2_ref, b2_ref,
                             n2g_ref, n2b_ref,
                             out_ref, *, dim_out, eps, mxu_dtype):
    x = x_ref[...].astype(jnp.float32)                            # (T, Ci)
    q = q_ref[...].astype(jnp.float32)                            # (Q, Co)

    # kw / vw projections -- the image tile is read from HBM exactly once.
    k = _mm(x + pos_ref[...].astype(jnp.float32), w_k_ref[...], mxu_dtype) + b_k_ref[...]
    v = _mm(x, w_v_ref[...], mxu_dtype) + b_v_ref[...]

    # SimplifiedAttn (attn1, shared weights): attention + residual + LayerNorm.
    o = _attn_core(q, k, v, dim_out, mxu_dtype)
    o = _layernorm(o, n1g_ref[...], n1b_ref[...], eps)

    # AdaptiveAvgPool2d((x_dim, x_dim)) as a pooling-matrix matmul, fused with
    # res_upsample, added to the already-resident attention output.
    pooled = _mm(pool_ref[...].astype(jnp.float32), x, mxu_dtype)  # (Q, Ci)
    o = o + _mm(pooled, w_r_ref[...], mxu_dtype) + b_r_ref[...]

    # AttnPost: linear1 -> GELU -> linear2 (+ residual) -> LayerNorm.
    h = _gelu(_mm(o, w1_ref[...], mxu_dtype) + b1_ref[...])
    y = _mm(h, w2_ref[...], mxu_dtype) + b2_ref[...] + o
    y = _layernorm(y, n2g_ref[...], n2b_ref[...], eps)

    out_ref[...] = y.astype(out_ref.dtype)


def cross_attn_block(x_split, pos, q_proj, pool, p, *, eps=1e-5, mxu_dtype=None):
    B, S, T, Ci = x_split.shape
    _, Q, Co = q_proj.shape
    H = p["w1"].shape[1]
    f = pl.pallas_call(
        partial(_cross_attn_block_kernel, dim_out=Co, eps=eps, mxu_dtype=mxu_dtype),
        out_shape=jax.ShapeDtypeStruct((B, S, Q, Co), q_proj.dtype),
        grid=(B, S),
        in_specs=[
            pl.BlockSpec((None, None, T, Ci), lambda b, s: (b, s, 0, 0)),  # image tile
            pl.BlockSpec((T, Ci), lambda b, s: (0, 0)),                    # pos embedding
            pl.BlockSpec((None, Q, Co), lambda b, s: (b, 0, 0)),           # projected q (bcast over s)
            pl.BlockSpec((Q, T), lambda b, s: (0, 0)),                     # pooling matrix
            pl.BlockSpec((Ci, Co), lambda b, s: (0, 0)),                   # kw weight
            pl.BlockSpec((1, Co), lambda b, s: (0, 0)),                    # kw bias
            pl.BlockSpec((Ci, Co), lambda b, s: (0, 0)),                   # vw weight
            pl.BlockSpec((1, Co), lambda b, s: (0, 0)),                    # vw bias
            pl.BlockSpec((Ci, Co), lambda b, s: (0, 0)),                   # res_upsample weight
            pl.BlockSpec((1, Co), lambda b, s: (0, 0)),                    # res_upsample bias
            pl.BlockSpec((1, Co), lambda b, s: (0, 0)),                    # norm1 gamma
            pl.BlockSpec((1, Co), lambda b, s: (0, 0)),                    # norm1 beta
            pl.BlockSpec((Co, H), lambda b, s: (0, 0)),                    # attn2_post.linear1 W
            pl.BlockSpec((1, H), lambda b, s: (0, 0)),                     # attn2_post.linear1 b
            pl.BlockSpec((H, Co), lambda b, s: (0, 0)),                    # attn2_post.linear2 W
            pl.BlockSpec((1, Co), lambda b, s: (0, 0)),                    # attn2_post.linear2 b
            pl.BlockSpec((1, Co), lambda b, s: (0, 0)),                    # norm2 gamma
            pl.BlockSpec((1, Co), lambda b, s: (0, 0)),                    # norm2 beta
        ],
        out_specs=pl.BlockSpec((None, None, Q, Co), lambda b, s: (b, s, 0, 0)),
        compiler_params=pltpu.CompilerParams(
            dimension_semantics=("parallel", "parallel")),
    )
    return f(x_split, pos, q_proj, pool,
             p["w_k"], p["b_k"].reshape(1, -1), p["w_v"], p["b_v"].reshape(1, -1),
             p["w_r"], p["b_r"].reshape(1, -1),
             p["n1_g"].reshape(1, -1), p["n1_b"].reshape(1, -1),
             p["w1"], p["b1"].reshape(1, -1), p["w2"], p["b2"].reshape(1, -1),
             p["n2_g"].reshape(1, -1), p["n2_b"].reshape(1, -1))


# ----------------------------------------------------------------------------
# AttnEmbed.forward (eval mode: dropout = identity)
# ----------------------------------------------------------------------------
def attn_embed_forward(params, im, emb, *, splits, x_dim, mxu_dtype=None):
    b, c, y, x = im.shape
    y_k = (y + splits - 1) // splits
    x_k = (x + splits - 1) // splits
    im_split = split_im_jax(im, splits)                            # (B, S, T, C_in)
    pos = sine_pos_embed(y_k, x_k, c // 2).reshape(y_k * x_k, c).astype(im_split.dtype)
    pool = adaptive_pool_matrix_2d(y_k, x_k, x_dim)                # (Q, T)

    if emb.ndim == 4:
        # the torch module only ever sees a singleton dim-1 here (it unsqueezes 3-D input)
        emb = emb[:, 0]
    assert emb.shape[1] == x_dim * x_dim, "query count must equal x_dim**2"

    q_proj = emb_query_projection(emb, params, mxu_dtype=mxu_dtype)          # (B, Q, Co)
    out = cross_attn_block(im_split, pos, q_proj, pool, params,
                           mxu_dtype=mxu_dtype)                              # (B, S, Q, Co)
    B, S, Q, Co = out.shape
    return out.reshape(B, S * Q, Co)                                         # flatten(1, 2)


# ----------------------------------------------------------------------------
# pure-JAX reference (same formulas, plain jnp) for a self-check
# ----------------------------------------------------------------------------
def attn_embed_reference(params, im, emb, *, splits, x_dim):
    hp = jax.lax.Precision.HIGHEST
    b, c, y, x = im.shape
    y_k = (y + splits - 1) // splits
    x_k = (x + splits - 1) // splits
    xs = split_im_jax(im, splits).astype(jnp.float32)             # (B, S, T, Ci)
    pos = sine_pos_embed(y_k, x_k, c // 2).reshape(1, 1, y_k * x_k, c)
    pool = adaptive_pool_matrix_2d(y_k, x_k, x_dim)

    if emb.ndim == 4:
        emb = emb[:, 0]
    e = emb.astype(jnp.float32)                                   # (B, Q, Co)
    Co = params["w_q"].shape[0]
    scale = 1.0 / math.sqrt(Co)

    def ln(v, g, bb, eps=1e-5):
        return _layernorm(v, g, bb, eps)

    def simplified_attn(q, k, v):
        s = jnp.einsum("...qd,...kd->...qk", q, k, precision=hp) * scale
        p = jax.nn.softmax(s, axis=-1)
        o = jnp.einsum("...qk,...kd->...qd", p, v, precision=hp) + q
        return ln(o, params["n1_g"], params["n1_b"])

    # emb branch
    e3 = jnp.matmul(e, params["w_emb"], precision=hp) + params["b_emb"]
    q1, k1, v1 = jnp.split(e3, 3, axis=-1)
    e_new = simplified_attn(q1, k1, v1) + e
    q = jnp.matmul(e_new, params["w_q"], precision=hp) + params["b_q"]

    # image branch
    k = jnp.matmul(xs + pos, params["w_k"], precision=hp) + params["b_k"]
    v = jnp.matmul(xs, params["w_v"], precision=hp) + params["b_v"]
    qb = jnp.broadcast_to(q[:, None], (k.shape[0], k.shape[1]) + q.shape[1:])
    a = simplified_attn(qb, k, v)

    pooled = jnp.einsum("qt,bstc->bsqc", pool, xs, precision=hp)
    a = a + jnp.matmul(pooled, params["w_r"], precision=hp) + params["b_r"]

    h = _gelu(jnp.matmul(a, params["w1"], precision=hp) + params["b1"])
    a2 = jnp.matmul(h, params["w2"], precision=hp) + params["b2"] + a
    a2 = ln(a2, params["n2_g"], params["n2_b"])
    B, S, Q, _ = a2.shape
    return a2.reshape(B, S * Q, Co)


# ----------------------------------------------------------------------------
# deterministic parameter init (weights stored as (in_features, out_features))
# ----------------------------------------------------------------------------
def init_params(key, *, dim_in, dim_out, expansion=4):
    keys = iter(jax.random.split(key, 32))

    def nrm(shape, s=0.02):
        return s * jax.random.normal(next(keys), shape, jnp.float32)

    return {
        "w_emb": nrm((dim_out, 3 * dim_out)), "b_emb": nrm((3 * dim_out,)),   # embW
        "w_q": nrm((dim_out, dim_out)), "b_q": nrm((dim_out,)),               # qw
        "w_k": nrm((dim_in, dim_out)), "b_k": nrm((dim_out,)),                # kw
        "w_v": nrm((dim_in, dim_out)), "b_v": nrm((dim_out,)),                # vw
        "w_r": nrm((dim_in, dim_out)), "b_r": nrm((dim_out,)),                # res_upsample
        "n1_g": 1.0 + nrm((dim_out,), 0.1), "n1_b": nrm((dim_out,), 0.1),     # attn1.norm1
        "w1": nrm((dim_out, expansion * dim_out)), "b1": nrm((expansion * dim_out,)),
        "w2": nrm((expansion * dim_out, dim_out)), "b2": nrm((dim_out,)),
        "n2_g": 1.0 + nrm((dim_out,), 0.1), "n2_b": nrm((dim_out,), 0.1),     # attn2_post.norm2
        # NOTE: self.attn2 (a second SimplifiedAttn) is constructed by the torch
        # module but never used in forward(), so it carries no parameters here.
    }


# ----------------------------------------------------------------------------
if __name__ == "__main__":
    B = 2
    DIM_IN = 128      # image channels c
    DIM_OUT = 128
    SPLITS = 2
    X_DIM = 4         # query tokens per split window = x_dim**2 = 16
    Y = X = 16        # image spatial -> y_k = x_k = 8, T = 64 tokens per window

    key = jax.random.PRNGKey(0)
    k_p, k_im, k_emb = jax.random.split(key, 3)
    params = init_params(k_p, dim_in=DIM_IN, dim_out=DIM_OUT)
    im = jax.random.normal(k_im, (B, DIM_IN, Y, X), jnp.float32)     # NCHW image
    emb = jax.random.normal(k_emb, (B, X_DIM ** 2, DIM_OUT), jnp.float32)

    fwd = jax.jit(partial(attn_embed_forward, splits=SPLITS, x_dim=X_DIM))
    out = jax.block_until_ready(fwd(params, im, emb))
    assert out.shape == (B, SPLITS ** 2 * X_DIM ** 2, DIM_OUT), out.shape
    assert bool(jnp.all(jnp.isfinite(out)))

    ref = jax.block_until_ready(
        jax.jit(partial(attn_embed_reference, splits=SPLITS, x_dim=X_DIM))(params, im, emb))
    max_err = float(jnp.max(jnp.abs(out - ref)))
    assert max_err < 5e-2, f"mismatch vs reference: {max_err}"

    print("KERNEL_OK")
</pallas_src>

<mosaic_0001>
module attributes {stable_mosaic.version = 11 : i64} {
  func.func @_emb_query_kernel(%arg0: i32, %arg1: memref<1x16x128xf32, #tpu.memory_space<vmem>>, %arg2: memref<128x384xf32, #tpu.memory_space<vmem>>, %arg3: memref<1x384xf32, #tpu.memory_space<vmem>>, %arg4: memref<1x128xf32, #tpu.memory_space<vmem>>, %arg5: memref<1x128xf32, #tpu.memory_space<vmem>>, %arg6: memref<128x128xf32, #tpu.memory_space<vmem>>, %arg7: memref<1x128xf32, #tpu.memory_space<vmem>>, %arg8: memref<1x16x128xf32, #tpu.memory_space<vmem>>) attributes {dimension_semantics = [#tpu.dimension_semantics<parallel>], iteration_bounds = array<i64: 2>, scalar_prefetch = 0 : i64, scratch_operands = 0 : i64, tpu.core_type = #tpu.core_type<tc>, window_params = [{transform_indices = @transform_0, window_bounds = array<i64: 1, 16, 128>}, {pipeline_mode = #tpu.pipeline_mode<synchronous>, transform_indices = @transform_1, window_bounds = array<i64: 128, 384>}, {pipeline_mode = #tpu.pipeline_mode<synchronous>, transform_indices = @transform_2, window_bounds = array<i64: 1, 384>}, {pipeline_mode = #tpu.pipeline_mode<synchronous>, transform_indices = @transform_3, window_bounds = array<i64: 1, 128>}, {pipeline_mode = #tpu.pipeline_mode<synchronous>, transform_indices = @transform_4, window_bounds = array<i64: 1, 128>}, {pipeline_mode = #tpu.pipeline_mode<synchronous>, transform_indices = @transform_5, window_bounds = array<i64: 128, 128>}, {pipeline_mode = #tpu.pipeline_mode<synchronous>, transform_indices = @transform_6, window_bounds = array<i64: 1, 128>}, {transform_indices = @transform_7, window_bounds = array<i64: 1, 16, 128>}]} {
    %c0 = arith.constant 0 : index
    %c0_0 = arith.constant 0 : index
    %c0_1 = arith.constant 0 : index
    %0 = vector.load %arg1[%c0, %c0_0, %c0_1] : memref<1x16x128xf32, #tpu.memory_space<vmem>>, vector<1x16x128xf32>
    %1 = vector.shape_cast %0 : vector<1x16x128xf32> to vector<16x128xf32>
    %c0_2 = arith.constant 0 : index
    %c0_3 = arith.constant 0 : index
    %2 = vector.load %arg2[%c0_2, %c0_3] : memref<128x384xf32, #tpu.memory_space<vmem>>, vector<128x384xf32>
    %cst = arith.constant dense<0.000000e+00> : vector<16x384xf32>
    %3 = tpu.matmul %1, %2, %cst {dimension_numbers = #tpu.dot_dimension_numbers<[1], [0], [0], [1], [0, 0, 1, 1], [], []>} : vector<16x128xf32>, vector<128x384xf32>, vector<16x384xf32> -> vector<16x384xf32>
    %c0_4 = arith.constant 0 : index
    %c0_5 = arith.constant 0 : index
    %4 = vector.load %arg3[%c0_4, %c0_5] : memref<1x384xf32, #tpu.memory_space<vmem>>, vector<1x384xf32>
    %5 = vector.broadcast %4 : vector<1x384xf32> to vector<16x384xf32>
    %6 = arith.addf %3, %5 : vector<16x384xf32>
    %7 = vector.extract_strided_slice %6 {offsets = [0, 0], sizes = [16, 128], strides = [1, 1]} : vector<16x384xf32> to vector<16x128xf32>
    %8 = vector.extract_strided_slice %6 {offsets = [0, 128], sizes = [16, 128], strides = [1, 1]} : vector<16x384xf32> to vector<16x128xf32>
    %9 = vector.extract_strided_slice %6 {offsets = [0, 256], sizes = [16, 128], strides = [1, 1]} : vector<16x384xf32> to vector<16x128xf32>
    %cst_6 = arith.constant dense<0.000000e+00> : vector<16x16xf32>
    %10 = tpu.matmul %7, %8, %cst_6 {dimension_numbers = #tpu.dot_dimension_numbers<[1], [1], [0], [0], [0, 0, 1, 0], [], []>} : vector<16x128xf32>, vector<16x128xf32>, vector<16x16xf32> -> vector<16x16xf32>
    %cst_7 = arith.constant 0.0883883461 : f32
    %11 = vector.broadcast %cst_7 : f32 to vector<16x16xf32>
    %12 = arith.mulf %10, %11 : vector<16x16xf32>
    %cst_8 = arith.constant dense<0xFF800000> : vector<16xf32>
    %13 = vector.multi_reduction <maximumf>, %12, %cst_8 [1] : vector<16x16xf32> to vector<16xf32>
    %14 = vector.shape_cast %13 : vector<16xf32> to vector<16x1xf32>
    %15 = vector.broadcast %14 : vector<16x1xf32> to vector<16x16xf32>
    %16 = arith.subf %12, %15 : vector<16x16xf32>
    %17 = math.exp %16 : vector<16x16xf32>
    %cst_9 = arith.constant dense<0.000000e+00> : vector<16xf32>
    %18 = vector.multi_reduction <add>, %17, %cst_9 [1] : vector<16x16xf32> to vector<16xf32>
    %19 = vector.shape_cast %18 : vector<16xf32> to vector<16x1xf32>
    %cst_10 = arith.constant 1.000000e+00 : f32
    %20 = vector.broadcast %cst_10 : f32 to vector<16x1xf32>
    %21 = arith.divf %20, %19 : vector<16x1xf32>
    %22 = vector.broadcast %21 : vector<16x1xf32> to vector<16x16xf32>
    %23 = arith.mulf %17, %22 : vector<16x16xf32>
    %cst_11 = arith.constant dense<0.000000e+00> : vector<16x128xf32>
    %24 = tpu.matmul %23, %9, %cst_11 {dimension_numbers = #tpu.dot_dimension_numbers<[1], [0], [0], [1], [0, 0, 1, 1], [], []>} : vector<16x16xf32>, vector<16x128xf32>, vector<16x128xf32> -> vector<16x128xf32>
    %25 = arith.addf %24, %7 : vector<16x128xf32>
    %c0_12 = arith.constant 0 : index
    %c0_13 = arith.constant 0 : index
    %26 = vector.load %arg4[%c0_12, %c0_13] : memref<1x128xf32, #tpu.memory_space<vmem>>, vector<1x128xf32>
    %c0_14 = arith.constant 0 : index
    %c0_15 = arith.constant 0 : index
    %27 = vector.load %arg5[%c0_14, %c0_15] : memref<1x128xf32, #tpu.memory_space<vmem>>, vector<1x128xf32>
    %cst_16 = arith.constant dense<0.000000e+00> : vector<16xf32>
    %28 = vector.multi_reduction <add>, %25, %cst_16 [1] : vector<16x128xf32> to vector<16xf32>
    %29 = vector.shape_cast %28 : vector<16xf32> to vector<16x1xf32>
    %cst_17 = arith.constant 1.280000e+02 : f32
    %30 = vector.broadcast %cst_17 : f32 to vector<16x1xf32>
    %31 = arith.divf %29, %30 : vector<16x1xf32>
    %32 = vector.broadcast %31 : vector<16x1xf32> to vector<16x128xf32>
    %33 = arith.subf %25, %32 : vector<16x128xf32>
    %34 = arith.mulf %33, %33 : vector<16x128xf32>
    %cst_18 = arith.constant dense<0.000000e+00> : vector<16xf32>
    %35 = vector.multi_reduction <add>, %34, %cst_18 [1] : vector<16x128xf32> to vector<16xf32>
    %36 = vector.shape_cast %35 : vector<16xf32> to vector<16x1xf32>
    %cst_19 = arith.constant 1.280000e+02 : f32
    %37 = vector.broadcast %cst_19 : f32 to vector<16x1xf32>
    %38 = arith.divf %36, %37 : vector<16x1xf32>
    %cst_20 = arith.constant 9.99999974E-6 : f32
    %39 = vector.broadcast %cst_20 : f32 to vector<16x1xf32>
    %40 = arith.addf %38, %39 : vector<16x1xf32>
    %41 = math.rsqrt %40 : vector<16x1xf32>
    %42 = vector.broadcast %41 : vector<16x1xf32> to vector<16x128xf32>
    %43 = arith.mulf %33, %42 : vector<16x128xf32>
    %44 = vector.broadcast %26 : vector<1x128xf32> to vector<16x128xf32>
    %45 = arith.mulf %43, %44 : vector<16x128xf32>
    %46 = vector.broadcast %27 : vector<1x128xf32> to vector<16x128xf32>
    %47 = arith.addf %45, %46 : vector<16x128xf32>
    %48 = arith.addf %47, %1 : vector<16x128xf32>
    %c0_21 = arith.constant 0 : index
    %c0_22 = arith.constant 0 : index
    %49 = vector.load %arg6[%c0_21, %c0_22] : memref<128x128xf32, #tpu.memory_space<vmem>>, vector<128x128xf32>
    %cst_23 = arith.constant dense<0.000000e+00> : vector<16x128xf32>
    %50 = tpu.matmul %48, %49, %cst_23 {dimension_numbers = #tpu.dot_dimension_numbers<[1], [0], [0], [1], [0, 0, 1, 1], [], []>} : vector<16x128xf32>, vector<128x128xf32>, vector<16x128xf32> -> vector<16x128xf32>
    %c0_24 = arith.constant 0 : index
    %c0_25 = arith.constant 0 : index
    %51 = vector.load %arg7[%c0_24, %c0_25] : memref<1x128xf32, #tpu.memory_space<vmem>>, vector<1x128xf32>
    %52 = vector.broadcast %51 : vector<1x128xf32> to vector<16x128xf32>
    %53 = arith.addf %50, %52 : vector<16x128xf32>
    %c0_26 = arith.constant 0 : index
    %c0_27 = arith.constant 0 : index
    %c0_28 = arith.constant 0 : index
    %54 = vector.load %arg8[%c0_26, %c0_27, %c0_28] : memref<1x16x128xf32, #tpu.memory_space<vmem>>, vector<1x16x128xf32>
    %55 = vector.shape_cast %54 : vector<1x16x128xf32> to vector<16x128xf32>
    %56 = vector.shape_cast %53 : vector<16x128xf32> to vector<1x16x128xf32>
    tpu.vector_store %arg8[%c0_26, %c0_27, %c0_28], %56 {strides = array<i32>} : memref<1x16x128xf32, #tpu.memory_space<vmem>>, vector<1x16x128xf32>,
    return
  }
  func.func @transform_0(%arg0: i32) -> (i32, i32, i32) {
    %c0_i32 = arith.constant 0 : i32
    %c0_i32_0 = arith.constant 0 : i32
    %c0_i32_1 = arith.constant 0 : i32
    return %arg0, %c0_i32, %c0_i32_0 : i32, i32, i32
  }
  func.func @transform_1(%arg0: i32) -> (i32, i32) {
    %c0_i32 = arith.constant 0 : i32
    %c0_i32_0 = arith.constant 0 : i32
    %c0_i32_1 = arith.constant 0 : i32
    return %c0_i32, %c0_i32_0 : i32, i32
  }
  func.func @transform_2(%arg0: i32) -> (i32, i32) {
    %c0_i32 = arith.constant 0 : i32
    %c0_i32_0 = arith.constant 0 : i32
    %c0_i32_1 = arith.constant 0 : i32
    return %c0_i32, %c0_i32_0 : i32, i32
  }
  func.func @transform_3(%arg0: i32) -> (i32, i32) {
    %c0_i32 = arith.constant 0 : i32
    %c0_i32_0 = arith.constant 0 : i32
    %c0_i32_1 = arith.constant 0 : i32
    return %c0_i32, %c0_i32_0 : i32, i32
  }
  func.func @transform_4(%arg0: i32) -> (i32, i32) {
    %c0_i32 = arith.constant 0 : i32
    %c0_i32_0 = arith.constant 0 : i32
    %c0_i32_1 = arith.constant 0 : i32
    return %c0_i32, %c0_i32_0 : i32, i32
  }
  func.func @transform_5(%arg0: i32) -> (i32, i32) {
    %c0_i32 = arith.constant 0 : i32
    %c0_i32_0 = arith.constant 0 : i32
    %c0_i32_1 = arith.constant 0 : i32
    return %c0_i32, %c0_i32_0 : i32, i32
  }
  func.func @transform_6(%arg0: i32) -> (i32, i32) {
    %c0_i32 = arith.constant 0 : i32
    %c0_i32_0 = arith.constant 0 : i32
    %c0_i32_1 = arith.constant 0 : i32
    return %c0_i32, %c0_i32_0 : i32, i32
  }
  func.func @transform_7(%arg0: i32) -> (i32, i32, i32) {
    %c0_i32 = arith.constant 0 : i32
    %c0_i32_0 = arith.constant 0 : i32
    %c0_i32_1 = arith.constant 0 : i32
    return %arg0, %c0_i32, %c0_i32_0 : i32, i32, i32
  }
}

module attributes {stable_mosaic.version = 11 : i64} {
  func.func @_cross_attn_block_kernel(%arg0: i32, %arg1: i32, %arg2: memref<1x1x64x128xf32, #tpu.memory_space<vmem>>, %arg3: memref<64x128xf32, #tpu.memory_space<vmem>>, %arg4: memref<1x16x128xf32, #tpu.memory_space<vmem>>, %arg5: memref<16x64xf32, #tpu.memory_space<vmem>>, %arg6: memref<128x128xf32, #tpu.memory_space<vmem>>, %arg7: memref<1x128xf32, #tpu.memory_space<vmem>>, %arg8: memref<128x128xf32, #tpu.memory_space<vmem>>, %arg9: memref<1x128xf32, #tpu.memory_space<vmem>>, %arg10: memref<128x128xf32, #tpu.memory_space<vmem>>, %arg11: memref<1x128xf32, #tpu.memory_space<vmem>>, %arg12: memref<1x128xf32, #tpu.memory_space<vmem>>, %arg13: memref<1x128xf32, #tpu.memory_space<vmem>>, %arg14: memref<128x512xf32, #tpu.memory_space<vmem>>, %arg15: memref<1x512xf32, #tpu.memory_space<vmem>>, %arg16: memref<512x128xf32, #tpu.memory_space<vmem>>, %arg17: memref<1x128xf32, #tpu.memory_space<vmem>>, %arg18: memref<1x128xf32, #tpu.memory_space<vmem>>, %arg19: memref<1x128xf32, #tpu.memory_space<vmem>>, %arg20: memref<1x1x16x128xf32, #tpu.memory_space<vmem>>) attributes {dimension_semantics = [#tpu.dimension_semantics<parallel>, #tpu.dimension_semantics<parallel>], iteration_bounds = array<i64: 2, 4>, scalar_prefetch = 0 : i64, scratch_operands = 0 : i64, tpu.core_type = #tpu.core_type<tc>, window_params = [{transform_indices = @transform_0, window_bounds = array<i64: 1, 1, 64, 128>}, {pipeline_mode = #tpu.pipeline_mode<synchronous>, transform_indices = @transform_1, window_bounds = array<i64: 64, 128>}, {transform_indices = @transform_2, window_bounds = array<i64: 1, 16, 128>}, {pipeline_mode = #tpu.pipeline_mode<synchronous>, transform_indices = @transform_3, window_bounds = array<i64: 16, 64>}, {pipeline_mode = #tpu.pipeline_mode<synchronous>, transform_indices = @transform_4, window_bounds = array<i64: 128, 128>}, {pipeline_mode = #tpu.pipeline_mode<synchronous>, transform_indices = @transform_5, window_bounds = array<i64: 1, 128>}, {pipeline_mode = #tpu.pipeline_mode<synchronous>, transform_indices = @transform_6, window_bounds = array<i64: 128, 128>}, {pipeline_mode = #tpu.pipeline_mode<synchronous>, transform_indices = @transform_7, window_bounds = array<i64: 1, 128>}, {pipeline_mode = #tpu.pipeline_mode<synchronous>, transform_indices = @transform_8, window_bounds = array<i64: 128, 128>}, {pipeline_mode = #tpu.pipeline_mode<synchronous>, transform_indices = @transform_9, window_bounds = array<i64: 1, 128>}, {pipeline_mode = #tpu.pipeline_mode<synchronous>, transform_indices = @transform_10, window_bounds = array<i64: 1, 128>}, {pipeline_mode = #tpu.pipeline_mode<synchronous>, transform_indices = @transform_11, window_bounds = array<i64: 1, 128>}, {pipeline_mode = #tpu.pipeline_mode<synchronous>, transform_indices = @transform_12, window_bounds = array<i64: 128, 512>}, {pipeline_mode = #tpu.pipeline_mode<synchronous>, transform_indices = @transform_13, window_bounds = array<i64: 1, 512>}, {pipeline_mode = #tpu.pipeline_mode<synchronous>, transform_indices = @transform_14, window_bounds = array<i64: 512, 128>}, {pipeline_mode = #tpu.pipeline_mode<synchronous>, transform_indices = @transform_15, window_bounds = array<i64: 1, 128>}, {pipeline_mode = #tpu.pipeline_mode<synchronous>, transform_indices = @transform_16, window_bounds = array<i64: 1, 128>}, {pipeline_mode = #tpu.pipeline_mode<synchronous>, transform_indices = @transform_17, window_bounds = array<i64: 1, 128>}, {transform_indices = @transform_18, window_bounds = array<i64: 1, 1, 16, 128>}]} {
    %c0 = arith.constant 0 : index
    %c0_0 = arith.constant 0 : index
    %c0_1 = arith.constant 0 : index
    %c0_2 = arith.constant 0 : index
    %0 = vector.load %arg2[%c0, %c0_0, %c0_1, %c0_2] : memref<1x1x64x128xf32, #tpu.memory_space<vmem>>, vector<1x1x64x128xf32>
    %1 = vector.shape_cast %0 : vector<1x1x64x128xf32> to vector<64x128xf32>
    %c0_3 = arith.constant 0 : index
    %c0_4 = arith.constant 0 : index
    %c0_5 = arith.constant 0 : index
    %2 = vector.load %arg4[%c0_3, %c0_4, %c0_5] : memref<1x16x128xf32, #tpu.memory_space<vmem>>, vector<1x16x128xf32>
    %3 = vector.shape_cast %2 : vector<1x16x128xf32> to vector<16x128xf32>
    %c0_6 = arith.constant 0 : index
    %c0_7 = arith.constant 0 : index
    %4 = vector.load %arg3[%c0_6, %c0_7] : memref<64x128xf32, #tpu.memory_space<vmem>>, vector<64x128xf32>
    %5 = arith.addf %1, %4 : vector<64x128xf32>
    %c0_8 = arith.constant 0 : index
    %c0_9 = arith.constant 0 : index
    %6 = vector.load %arg6[%c0_8, %c0_9] : memref<128x128xf32, #tpu.memory_space<vmem>>, vector<128x128xf32>
    %cst = arith.constant dense<0.000000e+00> : vector<64x128xf32>
    %7 = tpu.matmul %5, %6, %cst {dimension_numbers = #tpu.dot_dimension_numbers<[1], [0], [0], [1], [0, 0, 1, 1], [], []>} : vector<64x128xf32>, vector<128x128xf32>, vector<64x128xf32> -> vector<64x128xf32>
    %c0_10 = arith.constant 0 : index
    %c0_11 = arith.constant 0 : index
    %8 = vector.load %arg7[%c0_10, %c0_11] : memref<1x128xf32, #tpu.memory_space<vmem>>, vector<1x128xf32>
    %9 = vector.broadcast %8 : vector<1x128xf32> to vector<64x128xf32>
    %10 = arith.addf %7, %9 : vector<64x128xf32>
    %c0_12 = arith.constant 0 : index
    %c0_13 = arith.constant 0 : index
    %11 = vector.load %arg8[%c0_12, %c0_13] : memref<128x128xf32, #tpu.memory_space<vmem>>, vector<128x128xf32>
    %cst_14 = arith.constant dense<0.000000e+00> : vector<64x128xf32>
    %12 = tpu.matmul %1, %11, %cst_14 {dimension_numbers = #tpu.dot_dimension_numbers<[1], [0], [0], [1], [0, 0, 1, 1], [], []>} : vector<64x128xf32>, vector<128x128xf32>, vector<64x128xf32> -> vector<64x128xf32>
    %c0_15 = arith.constant 0 : index
    %c0_16 = arith.constant 0 : index
    %13 = vector.load %arg9[%c0_15, %c0_16] : memref<1x128xf32, #tpu.memory_space<vmem>>, vector<1x128xf32>
    %14 = vector.broadcast %13 : vector<1x128xf32> to vector<64x128xf32>
    %15 = arith.addf %12, %14 : vector<64x128xf32>
    %cst_17 = arith.constant dense<0.000000e+00> : vector<16x64xf32>
    %16 = tpu.matmul %3, %10, %cst_17 {dimension_numbers = #tpu.dot_dimension_numbers<[1], [1], [0], [0], [0, 0, 1, 0], [], []>} : vector<16x128xf32>, vector<64x128xf32>, vector<16x64xf32> -> vector<16x64xf32>
    %cst_18 = arith.constant 0.0883883461 : f32
    %17 = vector.broadcast %cst_18 : f32 to vector<16x64xf32>
    %18 = arith.mulf %16, %17 : vector<16x64xf32>
    %cst_19 = arith.constant dense<0xFF800000> : vector<16xf32>
    %19 = vector.multi_reduction <maximumf>, %18, %cst_19 [1] : vector<16x64xf32> to vector<16xf32>
    %20 = vector.shape_cast %19 : vector<16xf32> to vector<16x1xf32>
    %21 = vector.broadcast %20 : vector<16x1xf32> to vector<16x64xf32>
    %22 = arith.subf %18, %21 : vector<16x64xf32>
    %23 = math.exp %22 : vector<16x64xf32>
    %cst_20 = arith.constant dense<0.000000e+00> : vector<16xf32>
    %24 = vector.multi_reduction <add>, %23, %cst_20 [1] : vector<16x64xf32> to vector<16xf32>
    %25 = vector.shape_cast %24 : vector<16xf32> to vector<16x1xf32>
    %cst_21 = arith.constant 1.000000e+00 : f32
    %26 = vector.broadcast %cst_21 : f32 to vector<16x1xf32>
    %27 = arith.divf %26, %25 : vector<16x1xf32>
    %28 = vector.broadcast %27 : vector<16x1xf32> to vector<16x64xf32>
    %29 = arith.mulf %23, %28 : vector<16x64xf32>
    %cst_22 = arith.constant dense<0.000000e+00> : vector<16x128xf32>
    %30 = tpu.matmul %29, %15, %cst_22 {dimension_numbers = #tpu.dot_dimension_numbers<[1], [0], [0], [1], [0, 0, 1, 1], [], []>} : vector<16x64xf32>, vector<64x128xf32>, vector<16x128xf32> -> vector<16x128xf32>
    %31 = arith.addf %30, %3 : vector<16x128xf32>
    %c0_23 = arith.constant 0 : index
    %c0_24 = arith.constant 0 : index
    %32 = vector.load %arg12[%c0_23, %c0_24] : memref<1x128xf32, #tpu.memory_space<vmem>>, vector<1x128xf32>
    %c0_25 = arith.constant 0 : index
    %c0_26 = arith.constant 0 : index
    %33 = vector.load %arg13[%c0_25, %c0_26] : memref<1x128xf32, #tpu.memory_space<vmem>>, vector<1x128xf32>
    %cst_27 = arith.constant dense<0.000000e+00> : vector<16xf32>
    %34 = vector.multi_reduction <add>, %31, %cst_27 [1] : vector<16x128xf32> to vector<16xf32>
    %35 = vector.shape_cast %34 : vector<16xf32> to vector<16x1xf32>
    %cst_28 = arith.constant 1.280000e+02 : f32
    %36 = vector.broadcast %cst_28 : f32 to vector<16x1xf32>
    %37 = arith.divf %35, %36 : vector<16x1xf32>
    %38 = vector.broadcast %37 : vector<16x1xf32> to vector<16x128xf32>
    %39 = arith.subf %31, %38 : vector<16x128xf32>
    %40 = arith.mulf %39, %39 : vector<16x128xf32>
    %cst_29 = arith.constant dense<0.000000e+00> : vector<16xf32>
    %41 = vector.multi_reduction <add>, %40, %cst_29 [1] : vector<16x128xf32> to vector<16xf32>
    %42 = vector.shape_cast %41 : vector<16xf32> to vector<16x1xf32>
    %cst_30 = arith.constant 1.280000e+02 : f32
    %43 = vector.broadcast %cst_30 : f32 to vector<16x1xf32>
    %44 = arith.divf %42, %43 : vector<16x1xf32>
    %cst_31 = arith.constant 9.99999974E-6 : f32
    %45 = vector.broadcast %cst_31 : f32 to vector<16x1xf32>
    %46 = arith.addf %44, %45 : vector<16x1xf32>
    %47 = math.rsqrt %46 : vector<16x1xf32>
    %48 = vector.broadcast %47 : vector<16x1xf32> to vector<16x128xf32>
    %49 = arith.mulf %39, %48 : vector<16x128xf32>
    %50 = vector.broadcast %32 : vector<1x128xf32> to vector<16x128xf32>
    %51 = arith.mulf %49, %50 : vector<16x128xf32>
    %52 = vector.broadcast %33 : vector<1x128xf32> to vector<16x128xf32>
    %53 = arith.addf %51, %52 : vector<16x128xf32>
    %c0_32 = arith.constant 0 : index
    %c0_33 = arith.constant 0 : index
    %54 = vector.load %arg5[%c0_32, %c0_33] : memref<16x64xf32, #tpu.memory_space<vmem>>, vector<16x64xf32>
    %cst_34 = arith.constant dense<0.000000e+00> : vector<16x128xf32>
    %55 = tpu.matmul %54, %1, %cst_34 {dimension_numbers = #tpu.dot_dimension_numbers<[1], [0], [0], [1], [0, 0, 1, 1], [], []>} : vector<16x64xf32>, vector<64x128xf32>, vector<16x128xf32> -> vector<16x128xf32>
    %c0_35 = arith.constant 0 : index
    %c0_36 = arith.constant 0 : index
    %56 = vector.load %arg10[%c0_35, %c0_36] : memref<128x128xf32, #tpu.memory_space<vmem>>, vector<128x128xf32>
    %cst_37 = arith.constant dense<0.000000e+00> : vector<16x128xf32>
    %57 = tpu.matmul %55, %56, %cst_37 {dimension_numbers = #tpu.dot_dimension_numbers<[1], [0], [0], [1], [0, 0, 1, 1], [], []>} : vector<16x128xf32>, vector<128x128xf32>, vector<16x128xf32> -> vector<16x128xf32>
    %58 = arith.addf %53, %57 : vector<16x128xf32>
    %c0_38 = arith.constant 0 : index
    %c0_39 = arith.constant 0 : index
    %59 = vector.load %arg11[%c0_38, %c0_39] : memref<1x128xf32, #tpu.memory_space<vmem>>, vector<1x128xf32>
    %60 = vector.broadcast %59 : vector<1x128xf32> to vector<16x128xf32>
    %61 = arith.addf %58, %60 : vector<16x128xf32>
    %c0_40 = arith.constant 0 : index
    %c0_41 = arith.constant 0 : index
    %62 = vector.load %arg14[%c0_40, %c0_41] : memref<128x512xf32, #tpu.memory_space<vmem>>, vector<128x512xf32>
    %cst_42 = arith.constant dense<0.000000e+00> : vector<16x512xf32>
    %63 = tpu.matmul %61, %62, %cst_42 {dimension_numbers = #tpu.dot_dimension_numbers<[1], [0], [0], [1], [0, 0, 1, 1], [], []>} : vector<16x128xf32>, vector<128x512xf32>, vector<16x512xf32> -> vector<16x512xf32>
    %c0_43 = arith.constant 0 : index
    %c0_44 = arith.constant 0 : index
    %64 = vector.load %arg15[%c0_43, %c0_44] : memref<1x512xf32, #tpu.memory_space<vmem>>, vector<1x512xf32>
    %65 = vector.broadcast %64 : vector<1x512xf32> to vector<16x512xf32>
    %66 = arith.addf %63, %65 : vector<16x512xf32>
    %cst_45 = arith.constant 5.000000e-01 : f32
    %67 = vector.broadcast %cst_45 : f32 to vector<16x512xf32>
    %68 = arith.mulf %67, %66 : vector<16x512xf32>
    %cst_46 = arith.constant 4.471500e-02 : f32
    %69 = vector.broadcast %cst_46 : f32 to vector<16x512xf32>
    %70 = arith.mulf %69, %66 : vector<16x512xf32>
    %71 = arith.mulf %70, %66 : vector<16x512xf32>
    %72 = arith.mulf %71, %66 : vector<16x512xf32>
    %73 = arith.addf %66, %72 : vector<16x512xf32>
    %cst_47 = arith.constant 0.797884583 : f32
    %74 = vector.broadcast %cst_47 : f32 to vector<16x512xf32>
    %75 = arith.mulf %74, %73 : vector<16x512xf32>
    %76 = math.tanh %75 : vector<16x512xf32>
    %cst_48 = arith.constant 1.000000e+00 : f32
    %77 = vector.broadcast %cst_48 : f32 to vector<16x512xf32>
    %78 = arith.addf %77, %76 : vector<16x512xf32>
    %79 = arith.mulf %68, %78 : vector<16x512xf32>
    %c0_49 = arith.constant 0 : index
    %c0_50 = arith.constant 0 : index
    %80 = vector.load %arg16[%c0_49, %c0_50] : memref<512x128xf32, #tpu.memory_space<vmem>>, vector<512x128xf32>
    %cst_51 = arith.constant dense<0.000000e+00> : vector<16x128xf32>
    %81 = tpu.matmul %79, %80, %cst_51 {dimension_numbers = #tpu.dot_dimension_numbers<[1], [0], [0], [1], [0, 0, 1, 1], [], []>} : vector<16x512xf32>, vector<512x128xf32>, vector<16x128xf32> -> vector<16x128xf32>
    %c0_52 = arith.constant 0 : index
    %c0_53 = arith.constant 0 : index
    %82 = vector.load %arg17[%c0_52, %c0_53] : memref<1x128xf32, #tpu.memory_space<vmem>>, vector<1x128xf32>
    %83 = vector.broadcast %82 : vector<1x128xf32> to vector<16x128xf32>
    %84 = arith.addf %81, %83 : vector<16x128xf32>
    %85 = arith.addf %84, %61 : vector<16x128xf32>
    %c0_54 = arith.constant 0 : index
    %c0_55 = arith.constant 0 : index
    %86 = vector.load %arg18[%c0_54, %c0_55] : memref<1x128xf32, #tpu.memory_space<vmem>>, vector<1x128xf32>
    %c0_56 = arith.constant 0 : index
    %c0_57 = arith.constant 0 : index
    %87 = vector.load %arg19[%c0_56, %c0_57] : memref<1x128xf32, #tpu.memory_space<vmem>>, vector<1x128xf32>
    %cst_58 = arith.constant dense<0.000000e+00> : vector<16xf32>
    %88 = vector.multi_reduction <add>, %85, %cst_58 [1] : vector<16x128xf32> to vector<16xf32>
    %89 = vector.shape_cast %88 : vector<16xf32> to vector<16x1xf32>
    %cst_59 = arith.constant 1.280000e+02 : f32
    %90 = vector.broadcast %cst_59 : f32 to vector<16x1xf32>
    %91 = arith.divf %89, %90 : vector<16x1xf32>
    %92 = vector.broadcast %91 : vector<16x1xf32> to vector<16x128xf32>
    %93 = arith.subf %85, %92 : vector<16x128xf32>
    %94 = arith.mulf %93, %93 : vector<16x128xf32>
    %cst_60 = arith.constant dense<0.000000e+00> : vector<16xf32>
    %95 = vector.multi_reduction <add>, %94, %cst_60 [1] : vector<16x128xf32> to vector<16xf32>
    %96 = vector.shape_cast %95 : vector<16xf32> to vector<16x1xf32>
    %cst_61 = arith.constant 1.280000e+02 : f32
    %97 = vector.broadcast %cst_61 : f32 to vector<16x1xf32>
    %98 = arith.divf %96, %97 : vector<16x1xf32>
    %cst_62 = arith.constant 9.99999974E-6 : f32
    %99 = vector.broadcast %cst_62 : f32 to vector<16x1xf32>
    %100 = arith.addf %98, %99 : vector<16x1xf32>
    %101 = math.rsqrt %100 : vector<16x1xf32>
    %102 = vector.broadcast %101 : vector<16x1xf32> to vector<16x128xf32>
    %103 = arith.mulf %93, %102 : vector<16x128xf32>
    %104 = vector.broadcast %86 : vector<1x128xf32> to vector<16x128xf32>
    %105 = arith.mulf %103, %104 : vector<16x128xf32>
    %106 = vector.broadcast %87 : vector<1x128xf32> to vector<16x128xf32>
    %107 = arith.addf %105, %106 : vector<16x128xf32>
    %c0_63 = arith.constant 0 : index
    %c0_64 = arith.constant 0 : index
    %c0_65 = arith.constant 0 : index
    %c0_66 = arith.constant 0 : index
    %108 = vector.load %arg20[%c0_63, %c0_64, %c0_65, %c0_66] : memref<1x1x16x128xf32, #tpu.memory_space<vmem>>, vector<1x1x16x128xf32>
    %109 = vector.shape_cast %108 : vector<1x1x16x128xf32> to vector<16x128xf32>
    %110 = vector.shape_cast %107 : vector<16x128xf32> to vector<1x1x16x128xf32>
    tpu.vector_store %arg20[%c0_63, %c0_64, %c0_65, %c0_66], %110 {strides = array<i32>} : memref<1x1x16x128xf32, #tpu.memory_space<vmem>>, vector<1x1x16x128xf32>,
    return
  }
  func.func @transform_0(%arg0: i32, %arg1: i32) -> (i32, i32, i32, i32) {
    %c0_i32 = arith.constant 0 : i32
    %c0_i32_0 = arith.constant 0 : i32
    %c0_i32_1 = arith.constant 0 : i32
    return %arg0, %arg1, %c0_i32, %c0_i32_0 : i32, i32, i32, i32
  }
  func.func @transform_1(%arg0: i32, %arg1: i32) -> (i32, i32) {
    %c0_i32 = arith.constant 0 : i32
    %c0_i32_0 = arith.constant 0 : i32
    %c0_i32_1 = arith.constant 0 : i32
    return %c0_i32, %c0_i32_0 : i32, i32
  }
  func.func @transform_2(%arg0: i32, %arg1: i32) -> (i32, i32, i32) {
    %c0_i32 = arith.constant 0 : i32
    %c0_i32_0 = arith.constant 0 : i32
    %c0_i32_1 = arith.constant 0 : i32
    return %arg0, %c0_i32, %c0_i32_0 : i32, i32, i32
  }
  func.func @transform_3(%arg0: i32, %arg1: i32) -> (i32, i32) {
    %c0_i32 = arith.constant 0 : i32
    %c0_i32_0 = arith.constant 0 : i32
    %c0_i32_1 = arith.constant 0 : i32
    return %c0_i32, %c0_i32_0 : i32, i32
  }
  func.func @transform_4(%arg0: i32, %arg1: i32) -> (i32, i32) {
    %c0_i32 = arith.constant 0 : i32
    %c0_i32_0 = arith.constant 0 : i32
    %c0_i32_1 = arith.constant 0 : i32
    return %c0_i32, %c0_i32_0 : i32, i32
  }
  func.func @transform_5(%arg0: i32, %arg1: i32) -> (i32, i32) {
    %c0_i32 = arith.constant 0 : i32
    %c0_i32_0 = arith.constant 0 : i32
    %c0_i32_1 = arith.constant 0 : i32
    return %c0_i32, %c0_i32_0 : i32, i32
  }
  func.func @transform_6(%arg0: i32, %arg1: i32) -> (i32, i32) {
    %c0_i32 = arith.constant 0 : i32
    %c0_i32_0 = arith.constant 0 : i32
    %c0_i32_1 = arith.constant 0 : i32
    return %c0_i32, %c0_i32_0 : i32, i32
  }
  func.func @transform_7(%arg0: i32, %arg1: i32) -> (i32, i32) {
    %c0_i32 = arith.constant 0 : i32
    %c0_i32_0 = arith.constant 0 : i32
    %c0_i32_1 = arith.constant 0 : i32
    return %c0_i32, %c0_i32_0 : i32, i32
  }
  func.func @transform_8(%arg0: i32, %arg1: i32) -> (i32, i32) {
    %c0_i32 = arith.constant 0 : i32
    %c0_i32_0 = arith.constant 0 : i32
    %c0_i32_1 = arith.constant 0 : i32
    return %c0_i32, %c0_i32_0 : i32, i32
  }
  func.func @transform_9(%arg0: i32, %arg1: i32) -> (i32, i32) {
    %c0_i32 = arith.constant 0 : i32
    %c0_i32_0 = arith.constant 0 : i32
    %c0_i32_1 = arith.constant 0 : i32
    return %c0_i32, %c0_i32_0 : i32, i32
  }
  func.func @transform_10(%arg0: i32, %arg1: i32) -> (i32, i32) {
    %c0_i32 = arith.constant 0 : i32
    %c0_i32_0 = arith.constant 0 : i32
    %c0_i32_1 = arith.constant 0 : i32
    return %c0_i32, %c0_i32_0 : i32, i32
  }
  func.func @transform_11(%arg0: i32, %arg1: i32) -> (i32, i32) {
    %c0_i32 = arith.constant 0 : i32
    %c0_i32_0 = arith.constant 0 : i32
    %c0_i32_1 = arith.constant 0 : i32
    return %c0_i32, %c0_i32_0 : i32, i32
  }
  func.func @transform_12(%arg0: i32, %arg1: i32) -> (i32, i32) {
    %c0_i32 = arith.constant 0 : i32
    %c0_i32_0 = arith.constant 0 : i32
    %c0_i32_1 = arith.constant 0 : i32
    return %c0_i32, %c0_i32_0 : i32, i32
  }
  func.func @transform_13(%arg0: i32, %arg1: i32) -> (i32, i32) {
    %c0_i32 = arith.constant 0 : i32
    %c0_i32_0 = arith.constant 0 : i32
    %c0_i32_1 = arith.constant 0 : i32
    return %c0_i32, %c0_i32_0 : i32, i32
  }
  func.func @transform_14(%arg0: i32, %arg1: i32) -> (i32, i32) {
    %c0_i32 = arith.constant 0 : i32
    %c0_i32_0 = arith.constant 0 : i32
    %c0_i32_1 = arith.constant 0 : i32
    return %c0_i32, %c0_i32_0 : i32, i32
  }
  func.func @transform_15(%arg0: i32, %arg1: i32) -> (i32, i32) {
    %c0_i32 = arith.constant 0 : i32
    %c0_i32_0 = arith.constant 0 : i32
    %c0_i32_1 = arith.constant 0 : i32
    return %c0_i32, %c0_i32_0 : i32, i32
  }
  func.func @transform_16(%arg0: i32, %arg1: i32) -> (i32, i32) {
    %c0_i32 = arith.constant 0 : i32
    %c0_i32_0 = arith.constant 0 : i32
    %c0_i32_1 = arith.constant 0 : i32
    return %c0_i32, %c0_i32_0 : i32, i32
  }
  func.func @transform_17(%arg0: i32, %arg1: i32) -> (i32, i32) {
    %c0_i32 = arith.constant 0 : i32
    %c0_i32_0 = arith.constant 0 : i32
    %c0_i32_1 = arith.constant 0 : i32
    return %c0_i32, %c0_i32_0 : i32, i32
  }
  func.func @transform_18(%arg0: i32, %arg1: i32) -> (i32, i32, i32, i32) {
    %c0_i32 = arith.constant 0 : i32
    %c0_i32_0 = arith.constant 0 : i32
    %c0_i32_1 = arith.constant 0 : i32
    return %arg0, %arg1, %c0_i32, %c0_i32_0 : i32, i32, i32, i32
  }
}

</mosaic_0001>

<llo_original>
// kernel: attn_embed_forward.2
$region0: #{attn_embed_forward.2}
  #allocation0 [shape = 'u32[]', space=smem, size = 0x4, offset = 0x4, fixed_abs, tag = 'smem constant byte address 0x4 - core index']
  #allocation1 [shape = 'u32[144,128]{1,0:T(1,128)}', space=vmem, size = 0x12000, scoped, tag = 'internal scratch']
  %s0 = inlined_call_operand.vmem [shape: f32[2,16,128], index: 0, kind: input, shape index: {}]
  %s1 = inlined_call_operand.vmem [shape: f32[128,384], index: 1, kind: input, shape index: {}]
  %s2 = inlined_call_operand.vmem [shape: f32[1,384], index: 2, kind: input, shape index: {}]
  %s3 = inlined_call_operand.vmem [shape: f32[1,128], index: 3, kind: input, shape index: {}]
  %s4 = inlined_call_operand.vmem [shape: f32[1,128], index: 4, kind: input, shape index: {}]
  %s5 = inlined_call_operand.vmem [shape: f32[128,128], index: 5, kind: input, shape index: {}]
  %s6 = inlined_call_operand.vmem [shape: f32[1,128], index: 6, kind: input, shape index: {}]
  %s7 = inlined_call_operand.vmem [shape: f32[2,16,128], index: 7, kind: output, shape index: {}]
  %s8 = sld [smem:[#allocation0]]
  $region61: #{attn_embed_forward.2} parent=0
    _
  %s10 = ssub.s32 1, %s8
  %s11 = scalar_select 0, %s10, %s8
  loop: start=0, step=1, limit=4
  $region2: #{attn_embed_forward.2} parent=0 // loop_pre_header
    _
  $region3: #{attn_embed_forward.2} parent=0 // loop_header
    %s13 = sphi 0, %s17
    %p14 = scmp.ge.s32.totalorder %s13, 4
    %s23 = sphi 0, %s25
    %s26 = sphi 0, %s23
    %s27 = sphi 0, %s26
    %s43 = sphi 0, %s27
    %s47 = sphi 0, %s47
    %s49 = sphi 0, %s47
    %s50 = sphi 0, %s49
    %s64 = sphi 0, %s50
    %s68 = sphi 0, %s68
    %s70 = sphi 0, %s68
    %s71 = sphi 0, %s70
    %s85 = sphi 0, %s71
    %s89 = sphi 0, %s89
    %s91 = sphi 0, %s89
    %s92 = sphi 0, %s91
    %s106 = sphi 0, %s92
    %s110 = sphi 0, %s110
    %s112 = sphi 0, %s110
    %s113 = sphi 0, %s112
    %s127 = sphi 0, %s113
    %s131 = sphi 0, %s131
    %s133 = sphi 0, %s131
    %s134 = sphi 0, %s133
    %s148 = sphi 0, %s134
    %s152 = sphi 0, %s152
    %s154 = sphi 0, %s152
    %s155 = sphi 0, %s154
    %s169 = sphi 0, %s155
    %s175 = sphi 0, %s177
    %s178 = sphi 0, %s175
    %s179 = sphi 0, %s178
    %s195 = sphi 0, %s179
  $region4: #{attn_embed_forward.2} parent=0 // loop_header_branch
    %16 = sbr.rel (%p14) target = $region8
  $region5: #{attn_embed_forward.2} parent=0 // loop_body
    %s18 = ssub.s32 %s13, 1
    %s19 = ssub.s32 %s13, 2
    %s20 = sadd.s32 %s13, 1
    %s21 = ssub.s32 %s13, %s20
    %p22 = scmp.eq.s32.totalorder %s21, 0
    %s24 = sadd.s32 %s23, 1
    %s25 = scalar_select %p22, %s23, %s24
    %p28 = pneg %p22
    %p29 = scmp.eq.s32.totalorder %s13, 1
    %p30 = por %p28, %p29
    %p31 = scmp.ne.s32.totalorder %s23, %s26
    %p32 = scmp.eq.s32.totalorder %s13, 0
    %p33 = por %p31, %p32
    %p34 = scmp.ne.s32.totalorder %s23, %s26
    %p35 = scmp.eq.s32.totalorder %s18, 1
    %p36 = por %p34, %p35
    %p37 = scmp.ne.s32.totalorder %s26, %s27
    %p38 = scmp.eq.s32.totalorder %s18, 0
    %p39 = por %p37, %p38
    %p40 = scmp.ne.s32.totalorder %s26, %s27
    %p41 = scmp.eq.s32.totalorder %s19, 1
    %p42 = por %p40, %p41
    %p44 = scmp.ne.s32.totalorder %s27, %s43
    %p45 = scmp.eq.s32.totalorder %s19, 0
    %p46 = por %p44, %p45
    %s48 = sadd.s32 %s47, 1
    %p51 = scmp.eq.s32.totalorder %s13, 1
    %p52 = scmp.ne.s32.totalorder %s47, %s49
    %p53 = scmp.eq.s32.totalorder %s13, 0
    %p54 = por %p52, %p53
    %p55 = scmp.ne.s32.totalorder %s47, %s49
    %p56 = scmp.eq.s32.totalorder %s18, 1
    %p57 = por %p55, %p56
    %p58 = scmp.ne.s32.totalorder %s49, %s50
    %p59 = scmp.eq.s32.totalorder %s18, 0
    %p60 = por %p58, %p59
    %p61 = scmp.ne.s32.totalorder %s49, %s50
    %p62 = scmp.eq.s32.totalorder %s19, 1
    %p63 = por %p61, %p62
    %p65 = scmp.ne.s32.totalorder %s50, %s64
    %p66 = scmp.eq.s32.totalorder %s19, 0
    %p67 = por %p65, %p66
    %s69 = sadd.s32 %s68, 1
    %p72 = scmp.eq.s32.totalorder %s13, 1
    %p73 = scmp.ne.s32.totalorder %s68, %s70
    %p74 = scmp.eq.s32.totalorder %s13, 0
    %p75 = por %p73, %p74
    %p76 = scmp.ne.s32.totalorder %s68, %s70
    %p77 = scmp.eq.s32.totalorder %s18, 1
    %p78 = por %p76, %p77
    %p79 = scmp.ne.s32.totalorder %s70, %s71
    %p80 = scmp.eq.s32.totalorder %s18, 0
    %p81 = por %p79, %p80
    %p82 = scmp.ne.s32.totalorder %s70, %s71
    %p83 = scmp.eq.s32.totalorder %s19, 1
    %p84 = por %p82, %p83
    %p86 = scmp.ne.s32.totalorder %s71, %s85
    %p87 = scmp.eq.s32.totalorder %s19, 0
    %p88 = por %p86, %p87
    %s90 = sadd.s32 %s89, 1
    %p93 = scmp.eq.s32.totalorder %s13, 1
    %p94 = scmp.ne.s32.totalorder %s89, %s91
    %p95 = scmp.eq.s32.totalorder %s13, 0
    %p96 = por %p94, %p95
    %p97 = scmp.ne.s32.totalorder %s89, %s91
    %p98 = scmp.eq.s32.totalorder %s18, 1
    %p99 = por %p97, %p98
    %p100 = scmp.ne.s32.totalorder %s91, %s92
    %p101 = scmp.eq.s32.totalorder %s18, 0
    %p102 = por %p100, %p101
    %p103 = scmp.ne.s32.totalorder %s91, %s92
    %p104 = scmp.eq.s32.totalorder %s19, 1
    %p105 = por %p103, %p104
    %p107 = scmp.ne.s32.totalorder %s92, %s106
    %p108 = scmp.eq.s32.totalorder %s19, 0
    %p109 = por %p107, %p108
    %s111 = sadd.s32 %s110, 1
    %p114 = scmp.eq.s32.totalorder %s13, 1
    %p115 = scmp.ne.s32.totalorder %s110, %s112
    %p116 = scmp.eq.s32.totalorder %s13, 0
    %p117 = por %p115, %p116
    %p118 = scmp.ne.s32.totalorder %s110, %s112
    %p119 = scmp.eq.s32.totalorder %s18, 1
    %p120 = por %p118, %p119
    %p121 = scmp.ne.s32.totalorder %s112, %s113
    %p122 = scmp.eq.s32.totalorder %s18, 0
    %p123 = por %p121, %p122
    %p124 = scmp.ne.s32.totalorder %s112, %s113
    %p125 = scmp.eq.s32.totalorder %s19, 1
    %p126 = por %p124, %p125
    %p128 = scmp.ne.s32.totalorder %s113, %s127
    %p129 = scmp.eq.s32.totalorder %s19, 0
    %p130 = por %p128, %p129
    %s132 = sadd.s32 %s131, 1
    %p135 = scmp.eq.s32.totalorder %s13, 1
    %p136 = scmp.ne.s32.totalorder %s131, %s133
    %p137 = scmp.eq.s32.totalorder %s13, 0
    %p138 = por %p136, %p137
    %p139 = scmp.ne.s32.totalorder %s131, %s133
    %p140 = scmp.eq.s32.totalorder %s18, 1
    %p141 = por %p139, %p140
    %p142 = scmp.ne.s32.totalorder %s133, %s134
    %p143 = scmp.eq.s32.totalorder %s18, 0
    %p144 = por %p142, %p143
    %p145 = scmp.ne.s32.totalorder %s133, %s134
    %p146 = scmp.eq.s32.totalorder %s19, 1
    %p147 = por %p145, %p146
    %p149 = scmp.ne.s32.totalorder %s134, %s148
    %p150 = scmp.eq.s32.totalorder %s19, 0
    %p151 = por %p149, %p150
    %s153 = sadd.s32 %s152, 1
    %p156 = scmp.eq.s32.totalorder %s13, 1
    %p157 = scmp.ne.s32.totalorder %s152, %s154
    %p158 = scmp.eq.s32.totalorder %s13, 0
    %p159 = por %p157, %p158
    %p160 = scmp.ne.s32.totalorder %s152, %s154
    %p161 = scmp.eq.s32.totalorder %s18, 1
    %p162 = por %p160, %p161
    %p163 = scmp.ne.s32.totalorder %s154, %s155
    %p164 = scmp.eq.s32.totalorder %s18, 0
    %p165 = por %p163, %p164
    %p166 = scmp.ne.s32.totalorder %s154, %s155
    %p167 = scmp.eq.s32.totalorder %s19, 1
    %p168 = por %p166, %p167
    %p170 = scmp.ne.s32.totalorder %s155, %s169
    %p171 = scmp.eq.s32.totalorder %s19, 0
    %p172 = por %p170, %p171
    %s173 = ssub.s32 %s13, %s20
    %p174 = scmp.eq.s32.totalorder %s173, 0
    %s176 = sadd.s32 %s175, 1
    %s177 = scalar_select %p174, %s175, %s176
    %p180 = pneg %p174
    %p181 = scmp.eq.s32.totalorder %s13, 1
    %p182 = por %p180, %p181
    %p183 = scmp.ne.s32.totalorder %s175, %s178
    %p184 = scmp.eq.s32.totalorder %s13, 0
    %p185 = por %p183, %p184
    %p186 = scmp.ne.s32.totalorder %s175, %s178
    %p187 = scmp.eq.s32.totalorder %s18, 1
    %p188 = por %p186, %p187
    %p189 = scmp.ne.s32.totalorder %s178, %s179
    %p190 = scmp.eq.s32.totalorder %s18, 0
    %p191 = por %p189, %p190
    %p192 = scmp.ne.s32.totalorder %s178, %s179
    %p193 = scmp.eq.s32.totalorder %s19, 1
    %p194 = por %p192, %p193
    %p196 = scmp.ne.s32.totalorder %s179, %s195
    %p197 = scmp.eq.s32.totalorder %s19, 0
    %p198 = por %p196, %p197
    %p199 = scmp.le.s32.totalorder 1, %s13
    %p200 = scmp.lt.s32.totalorder %s13, 3
    %p201 = pnand %p199, %p200
    %p202 = pneg %p201
    // Predicated region
    $region9: #{attn_embed_forward.2} parent=5 // pred_check
      _
    $region10: #{attn_embed_forward.2} parent=5 // pred_check_branch
      %204 = sbr.rel (%p201) target = $region12
    $region11: #{attn_embed_forward.2} parent=5 // pred_region
      %s205 = ssub.s32 %s13, 1
      // Predicated region
      $region13: #{attn_embed_forward.2} parent=11 // pred_check
        %p206 = pneg %p60
      $region14: #{attn_embed_forward.2} parent=11 // pred_check_branch
        %208 = sbr.rel (%p206) target = $region16
      $region15: #{attn_embed_forward.2} parent=11 // pred_region
        _
      $region16: #{attn_embed_forward.2} parent=11 // pred_fallthru
        _
      // Predicated region
      $region17: #{attn_embed_forward.2} parent=11 // pred_check
        %p209 = pneg %p81
      $region18: #{attn_embed_forward.2} parent=11 // pred_check_branch
        %211 = sbr.rel (%p209) target = $region20
      $region19: #{attn_embed_forward.2} parent=11 // pred_region
        _
      $region20: #{attn_embed_forward.2} parent=11 // pred_fallthru
        _
      // Predicated region
      $region21: #{attn_embed_forward.2} parent=11 // pred_check
        %p212 = pneg %p102
      $region22: #{attn_embed_forward.2} parent=11 // pred_check_branch
        %214 = sbr.rel (%p212) target = $region24
      $region23: #{attn_embed_forward.2} parent=11 // pred_region
        _
      $region24: #{attn_embed_forward.2} parent=11 // pred_fallthru
        _
      // Predicated region
      $region25: #{attn_embed_forward.2} parent=11 // pred_check
        %p215 = pneg %p123
      $region26: #{attn_embed_forward.2} parent=11 // pred_check_branch
        %217 = sbr.rel (%p215) target = $region28
      $region27: #{attn_embed_forward.2} parent=11 // pred_region
        _
      $region28: #{attn_embed_forward.2} parent=11 // pred_fallthru
        _
      // Predicated region
      $region29: #{attn_embed_forward.2} parent=11 // pred_check
        %p218 = pneg %p144
      $region30: #{attn_embed_forward.2} parent=11 // pred_check_branch
        %220 = sbr.rel (%p218) target = $region32
      $region31: #{attn_embed_forward.2} parent=11 // pred_region
        _
      $region32: #{attn_embed_forward.2} parent=11 // pred_fallthru
        _
      // Predicated region
      $region33: #{attn_embed_forward.2} parent=11 // pred_check
        %p221 = pneg %p165
      $region34: #{attn_embed_forward.2} parent=11 // pred_check_branch
        %223 = sbr.rel (%p221) target = $region36
      $region35: #{attn_embed_forward.2} parent=11 // pred_region
        _
      $region36: #{attn_embed_forward.2} parent=11 // pred_fallthru
        _
    $region12: #{attn_embed_forward.2} parent=5 // pred_fallthru
      _
    %p224 = scmp.lt.s32.totalorder %s13, 2
    // Predicated region
    $region37: #{attn_embed_forward.2} parent=5 // pred_check
      %p225 = pneg %p224
    $region38: #{attn_embed_forward.2} parent=5 // pred_check_branch
      %227 = sbr.rel (%p225) target = $region40
    $region39: #{attn_embed_forward.2} parent=5 // pred_region
      // Predicated region
      $region41: #{attn_embed_forward.2} parent=39 // pred_check
        %p228 = pneg %p33
      $region42: #{attn_embed_forward.2} parent=39 // pred_check_branch
        %230 = sbr.rel (%p228) target = $region44
      $region43: #{attn_embed_forward.2} parent=39 // pred_region
        %p231 = scmp.lt.s32.totalorder %s13, 1
        %s232 = scalar_select %p231, %s13, 1
        %s233 = smul.addr %s232, 2
        %s234 = smul.addr %s233, 8
        %s235 = scalar_lea.vmem %s0, %s234
      $region44: #{attn_embed_forward.2} parent=39 // pred_fallthru
        _
    $region40: #{attn_embed_forward.2} parent=5 // pred_fallthru
      _
    %p236 = scmp.le.s32.totalorder 1, %s13
    %p237 = scmp.lt.s32.totalorder %s13, 3
    %p238 = pnand %p236, %p237
    %p239 = pneg %p238
    // Predicated region
    $region45: #{attn_embed_forward.2} parent=5 // pred_check
      _
    $region46: #{attn_embed_forward.2} parent=5 // pred_check_branch
      %241 = sbr.rel (%p238) target = $region48
    $region47: #{attn_embed_forward.2} parent=5 // pred_region
      %s242 = ssub.s32 %s13, 1
      %p243 = scmp.lt.s32.totalorder %s18, 1
      %s244 = scalar_select %p243, %s18, 1
      %s245 = smul.addr %s244, 2
      %s246 = smul.addr %s245, 8
      %s247 = scalar_lea.vmem %s0, %s246
      %p248 = pneg %p39
      %p249 = pneg %p36
      %p250 = pneg %p60
      %p251 = pneg %p57
      %p252 = pneg %p81
      %p253 = pneg %p78
      %p254 = pneg %p102
      %p255 = pneg %p99
      %p256 = pneg %p123
      %p257 = pneg %p120
      %p258 = pneg %p144
      %p259 = pneg %p141
      %p260 = pneg %p165
      %p261 = pneg %p162
      %p262 = pneg %p191
      %p263 = pneg %p188
      %p264 = scmp.lt.s32.totalorder %s18, 1
      %s265 = scalar_select %p264, %s18, 1
      %s266 = smul.addr %s265, 2
      %s267 = smul.addr %s266, 8
      %s268 = scalar_lea.vmem %s7, %s267
      %p269 = scmp.lt.s32.totalorder %s18, 1
      %s270 = scalar_select %p269, %s18, 1
      %s271 = smul.addr %s270, 2
      %s272 = smul.addr %s271, 8
      %s273 = scalar_lea.vmem %s0, %s272
      %p274 = scmp.lt.s32.totalorder %s18, 1
      %s275 = scalar_select %p274, %s18, 1
      %s276 = smul.addr %s275, 2
      %s277 = smul.addr %s276, 8
      %s278 = scalar_lea.vmem %s7, %s277
      %v279 = vld [vmem:[%s273] sm:$0xff]
      %v280 = vld [vmem:[%s273 + $0x8] sm:$0xff]
      %v281 = vld [vmem:[%s1] sm:$0xff]
      %v282 = vld [vmem:[%s1 + $0x8] sm:$0xff]
      %v283 = vld [vmem:[%s1 + $0x10] sm:$0xff]
      %v284 = vld [vmem:[%s1 + $0x18] sm:$0xff]
      %v285 = vld [vmem:[%s1 + $0x20] sm:$0xff]
      %v286 = vld [vmem:[%s1 + $0x28] sm:$0xff]
      %v287 = vld [vmem:[%s1 + $0x30] sm:$0xff]
      %v288 = vld [vmem:[%s1 + $0x38] sm:$0xff]
      %v289 = vld [vmem:[%s1 + $0x40] sm:$0xff]
      %v290 = vld [vmem:[%s1 + $0x48] sm:$0xff]
      %v291 = vld [vmem:[%s1 + $0x50] sm:$0xff]
      %v292 = vld [vmem:[%s1 + $0x58] sm:$0xff]
      %v293 = vld [vmem:[%s1 + $0x60] sm:$0xff]
      %v294 = vld [vmem:[%s1 + $0x68] sm:$0xff]
      %v295 = vld [vmem:[%s1 + $0x70] sm:$0xff]
      %v296 = vld [vmem:[%s1 + $0x78] sm:$0xff]
      %v297 = vld [vmem:[%s1 + $0x80] sm:$0xff]
      %v298 = vld [vmem:[%s1 + $0x88] sm:$0xff]
      %v299 = vld [vmem:[%s1 + $0x90] sm:$0xff]
      %v300 = vld [vmem:[%s1 + $0x98] sm:$0xff]
      %v301 = vld [vmem:[%s1 + $0xa0] sm:$0xff]
      %v302 = vld [vmem:[%s1 + $0xa8] sm:$0xff]
      %v303 = vld [vmem:[%s1 + $0xb0] sm:$0xff]
      %v304 = vld [vmem:[%s1 + $0xb8] sm:$0xff]
      %v305 = vld [vmem:[%s1 + $0xc0] sm:$0xff]
      %v306 = vld [vmem:[%s1 + $0xc8] sm:$0xff]
      %v307 = vld [vmem:[%s1 + $0xd0] sm:$0xff]
      %v308 = vld [vmem:[%s1 + $0xd8] sm:$0xff]
      %v309 = vld [vmem:[%s1 + $0xe0] sm:$0xff]
      %v310 = vld [vmem:[%s1 + $0xe8] sm:$0xff]
      %v311 = vld [vmem:[%s1 + $0xf0] sm:$0xff]
      %v312 = vld [vmem:[%s1 + $0xf8] sm:$0xff]
      %v313 = vld [vmem:[%s1 + $0x100] sm:$0xff]
      %v314 = vld [vmem:[%s1 + $0x108] sm:$0xff]
      %v315 = vld [vmem:[%s1 + $0x110] sm:$0xff]
      %v316 = vld [vmem:[%s1 + $0x118] sm:$0xff]
      %v317 = vld [vmem:[%s1 + $0x120] sm:$0xff]
      %v318 = vld [vmem:[%s1 + $0x128] sm:$0xff]
      %v319 = vld [vmem:[%s1 + $0x130] sm:$0xff]
      %v320 = vld [vmem:[%s1 + $0x138] sm:$0xff]
      %v321 = vld [vmem:[%s1 + $0x140] sm:$0xff]
      %v322 = vld [vmem:[%s1 + $0x148] sm:$0xff]
      %v323 = vld [vmem:[%s1 + $0x150] sm:$0xff]
      %v324 = vld [vmem:[%s1 + $0x158] sm:$0xff]
      %v325 = vld [vmem:[%s1 + $0x160] sm:$0xff]
      %v326 = vld [vmem:[%s1 + $0x168] sm:$0xff]
      %v327 = vld [vmem:[%s1 + $0x170] sm:$0xff]
      %v328 = vld [vmem:[%s1 + $0x178] sm:$0xff]
      %v329 = vld [vmem:[%s2] sm:$0x7]
      %v331 = vlaneseq
      %v332 = vshrl.u32 %v331, 7
      %v333 = vsub.s32 0, %v332
      %v334 = vrot.slane %v329, %v333
      %v335 = vlaneseq
      %v336 = vshrl.u32 %v335, 7
      %v337 = vsub.s32 1, %v336
      %v338 = vrot.slane %v329, %v337
      %v339 = vlaneseq
      %v340 = vshrl.u32 %v339, 7
      %v341 = vsub.s32 2, %v340
      %v342 = vrot.slane %v329, %v341
      %346 = vmatprep.subr.mxu0 %v282
      %347 = vmatpush1.msra.mxu0 %v281
      %348 = vmatprep.subr.mxu0 %v285
      %349 = vmatpush1.msra.mxu0 %v284
      %350 = vmatprep.subr.mxu0 %v288
      %351 = vmatpush1.msra.mxu0 %v287
      %352 = vmatprep.subr.mxu0 %v291
      %353 = vmatpush1.msra.mxu0 %v290
      %354 = vmatprep.subr.mxu0 %v294
      %355 = vmatpush1.msra.mxu0 %v293
      %356 = vmatprep.subr.mxu0 %v297
      %357 = vmatpush1.msra.mxu0 %v296
      %358 = vmatprep.subr.mxu0 %v300
      %359 = vmatpush1.msra.mxu0 %v299
      %360 = vmatprep.subr.mxu0 %v303
      %361 = vmatpush1.msra.mxu0 %v302
      %362 = vmatprep.subr.mxu0 %v306
      %363 = vmatpush1.msra.mxu0 %v305
      %364 = vmatprep.subr.mxu0 %v309
      %365 = vmatpush1.msra.mxu0 %v308
      %366 = vmatprep.subr.mxu0 %v312
      %367 = vmatpush1.msra.mxu0 %v311
      %368 = vmatprep.subr.mxu0 %v315
      %369 = vmatpush1.msra.mxu0 %v314
      %370 = vmatprep.subr.mxu0 %v318
      %371 = vmatpush1.msra.mxu0 %v317
      %372 = vmatprep.subr.mxu0 %v321
      %373 = vmatpush1.msra.mxu0 %v320
      %374 = vmatprep.subr.mxu0 %v324
      %375 = vmatpush1.msra.mxu0 %v323
      %376 = vmatprep.subr.mxu0 %v327
      %377 = vmatpush1.msra.mxu0 %v326
      %378 = vmatprep.subr.mxu0 0.0
      %379 = vmatpush1.msra.mxu0 0.0
      %380 = vmatprep.subr.mxu0 0.0
      %381 = vmatpush1.msra.mxu0 0.0
      %382 = vmatprep.subr.mxu0 0.0
      %383 = vmatpush1.msra.mxu0 0.0
      %384 = vmatprep.subr.mxu0 0.0
      %385 = vmatpush1.msra.mxu0 0.0
      %386 = vmatprep.subr.mxu0 0.0
      %387 = vmatpush1.msra.mxu0 0.0
      %388 = vmatprep.subr.mxu0 0.0
      %389 = vmatpush1.msra.mxu0 0.0
      %390 = vmatprep.subr.mxu0 0.0
      %391 = vmatpush1.msra.mxu0 0.0
      %392 = vmatprep.subr.mxu0 0.0
      %393 = vmatpush1.msra.mxu0 0.0
      %394 = vmatprep.subr.mxu0 0.0
      %395 = vmatpush1.msra.mxu0 0.0
      %396 = vmatprep.subr.mxu0 0.0
      %397 = vmatpush1.msra.mxu0 0.0
      %398 = vmatprep.subr.mxu0 0.0
      %399 = vmatpush1.msra.mxu0 0.0
      %400 = vmatprep.subr.mxu0 0.0
      %401 = vmatpush1.msra.mxu0 0.0
      %402 = vmatprep.subr.mxu0 0.0
      %403 = vmatpush1.msra.mxu0 0.0
      %404 = vmatprep.subr.mxu0 0.0
      %405 = vmatpush1.msra.mxu0 0.0
      %406 = vmatprep.subr.mxu0 0.0
      %407 = vmatpush1.msra.mxu0 0.0
      %408 = vmatprep.subr.mxu0 0.0
      %409 = vmatpush1.msra.mxu0 0.0
      %410 = vmatprep.mubr.f32.mxu0 0.0
      %411 = vmatmul.mubr.f32.gmra.mrb[0].mxu0 %v279
      %v412 = vpop.f32.mrb[0].mxu0
      %v413 = vadd.f32 %v334, %v412
      %v414 = vpop.f32.mrb[0].mxu0
      %v415 = vadd.f32 %v338, %v414
      %416 = vmatprep.mubr.f32.mxu0 0.0
      %417 = vmatmul.mubr.f32.gmra.mrb[0].mxu0 %v280
      %v418 = vpop.f32.mrb[0].mxu0
      %v419 = vadd.f32 %v334, %v418
      %v420 = vpop.f32.mrb[0].mxu0
      %v421 = vadd.f32 %v338, %v420
      %422 = vdwg.mxu0
      %423 = vmatprep.subr.mxu0 0.0
      %424 = vmatpush1.msra.mxu0 %v283
      %425 = vmatprep.subr.mxu0 0.0
      %426 = vmatpush1.msra.mxu0 %v286
      %427 = vmatprep.subr.mxu0 0.0
      %428 = vmatpush1.msra.mxu0 %v289
      %429 = vmatprep.subr.mxu0 0.0
      %430 = vmatpush1.msra.mxu0 %v292
      %431 = vmatprep.subr.mxu0 0.0
      %432 = vmatpush1.msra.mxu0 %v295
      %433 = vmatprep.subr.mxu0 0.0
      %434 = vmatpush1.msra.mxu0 %v298
      %435 = vmatprep.subr.mxu0 0.0
      %436 = vmatpush1.msra.mxu0 %v301
      %437 = vmatprep.subr.mxu0 0.0
      %438 = vmatpush1.msra.mxu0 %v304
      %439 = vmatprep.subr.mxu0 0.0
      %440 = vmatpush1.msra.mxu0 %v307
      %441 = vmatprep.subr.mxu0 0.0
      %442 = vmatpush1.msra.mxu0 %v310
      %443 = vmatprep.subr.mxu0 0.0
      %444 = vmatpush1.msra.mxu0 %v313
      %445 = vmatprep.subr.mxu0 0.0
      %446 = vmatpush1.msra.mxu0 %v316
      %447 = vmatprep.subr.mxu0 0.0
      %448 = vmatpush1.msra.mxu0 %v319
      %449 = vmatprep.subr.mxu0 0.0
      %450 = vmatpush1.msra.mxu0 %v322
      %451 = vmatprep.subr.mxu0 0.0
      %452 = vmatpush1.msra.mxu0 %v325
      %453 = vmatprep.subr.mxu0 0.0
      %454 = vmatpush1.msra.mxu0 %v328
      %455 = vmatprep.subr.mxu0 0.0
      %456 = vmatpush1.msra.mxu0 0.0
      %457 = vmatprep.subr.mxu0 0.0
      %458 = vmatpush1.msra.mxu0 0.0
      %459 = vmatprep.subr.mxu0 0.0
      %460 = vmatpush1.msra.mxu0 0.0
      %461 = vmatprep.subr.mxu0 0.0
      %462 = vmatpush1.msra.mxu0 0.0
      %463 = vmatprep.subr.mxu0 0.0
      %464 = vmatpush1.msra.mxu0 0.0
      %465 = vmatprep.subr.mxu0 0.0
      %466 = vmatpush1.msra.mxu0 0.0
      %467 = vmatprep.subr.mxu0 0.0
      %468 = vmatpush1.msra.mxu0 0.0
      %469 = vmatprep.subr.mxu0 0.0
      %470 = vmatpush1.msra.mxu0 0.0
      %471 = vmatprep.subr.mxu0 0.0
      %472 = vmatpush1.msra.mxu0 0.0
      %473 = vmatprep.subr.mxu0 0.0
      %474 = vmatpush1.msra.mxu0 0.0
      %475 = vmatprep.subr.mxu0 0.0
      %476 = vmatpush1.msra.mxu0 0.0
      %477 = vmatprep.subr.mxu0 0.0
      %478 = vmatpush1.msra.mxu0 0.0
      %479 = vmatprep.subr.mxu0 0.0
      %480 = vmatpush1.msra.mxu0 0.0
      %481 = vmatprep.subr.mxu0 0.0
      %482 = vmatpush1.msra.mxu0 0.0
      %483 = vmatprep.subr.mxu0 0.0
      %484 = vmatpush1.msra.mxu0 0.0
      %485 = vmatprep.subr.mxu0 0.0
      %486 = vmatpush1.msra.mxu0 0.0
      %487 = vmatprep.mubr.f32.mxu0 0.0
      %488 = vmatmul.mubr.f32.gmra.mrb[0].mxu0 %v279
      %v489 = vpop.f32.mrb[0].mxu0
      %v490 = vadd.f32 %v342, %v489
      %v491 = vpop.f32.mrb[0].mxu0
      %492 = vmatprep.mubr.f32.mxu0 0.0
      %493 = vmatmul.mubr.f32.gmra.mrb[0].mxu0 %v280
      %v494 = vpop.f32.mrb[0].mxu0
      %v495 = vadd.f32 %v342, %v494
      %v496 = vpop.f32.mrb[0].mxu0
      %497 = vdwg.mxu0
      %498 = vmatprep.subr.mxu0 0.0
      %499 = vmatpush1.xpose.msra.mxu0 %v415
      %500 = vmatprep.subr.mxu0 0.0
      %501 = vmatpush1.xpose.msra.mxu0 %v421
      %502 = vmatprep.subr.mxu0 0.0
      %503 = vmatpush1.xpose.msra.mxu0 0.0
      %504 = vmatprep.subr.mxu0 0.0
      %505 = vmatpush1.xpose.msra.mxu0 0.0
      %506 = vmatprep.subr.mxu0 0.0
      %507 = vmatpush1.xpose.msra.mxu0 0.0
      %508 = vmatprep.subr.mxu0 0.0
      %509 = vmatpush1.xpose.msra.mxu0 0.0
      %510 = vmatprep.subr.mxu0 0.0
      %511 = vmatpush1.xpose.msra.mxu0 0.0
      %512 = vmatprep.subr.mxu0 0.0
      %513 = vmatpush1.xpose.msra.mxu0 0.0
      %514 = vmatprep.subr.mxu0 0.0
      %515 = vmatpush1.xpose.msra.mxu0 0.0
      %516 = vmatprep.subr.mxu0 0.0
      %517 = vmatpush1.xpose.msra.mxu0 0.0
      %518 = vmatprep.subr.mxu0 0.0
      %519 = vmatpush1.xpose.msra.mxu0 0.0
      %520 = vmatprep.subr.mxu0 0.0
      %521 = vmatpush1.xpose.msra.mxu0 0.0
      %522 = vmatprep.subr.mxu0 0.0
      %523 = vmatpush1.xpose.msra.mxu0 0.0
      %524 = vmatprep.subr.mxu0 0.0
      %525 = vmatpush1.xpose.msra.mxu0 0.0
      %526 = vmatprep.subr.mxu0 0.0
      %527 = vmatpush1.xpose.msra.mxu0 0.0
      %528 = vmatprep.subr.mxu0 0.0
      %529 = vmatpush1.xpose.msra.mxu0 0.0
      %530 = vmatprep.subr.mxu0 0.0
      %531 = vmatpush1.xpose.msra.mxu0 0.0
      %532 = vmatprep.subr.mxu0 0.0
      %533 = vmatpush1.xpose.msra.mxu0 0.0
      %534 = vmatprep.subr.mxu0 0.0
      %535 = vmatpush1.xpose.msra.mxu0 0.0
      %536 = vmatprep.subr.mxu0 0.0
      %537 = vmatpush1.xpose.msra.mxu0 0.0
      %538 = vmatprep.subr.mxu0 0.0
      %539 = vmatpush1.xpose.msra.mxu0 0.0
      %540 = vmatprep.subr.mxu0 0.0
      %541 = vmatpush1.xpose.msra.mxu0 0.0
      %542 = vmatprep.subr.mxu0 0.0
      %543 = vmatpush1.xpose.msra.mxu0 0.0
      %544 = vmatprep.subr.mxu0 0.0
      %545 = vmatpush1.xpose.msra.mxu0 0.0
      %546 = vmatprep.subr.mxu0 0.0
      %547 = vmatpush1.xpose.msra.mxu0 0.0
      %548 = vmatprep.subr.mxu0 0.0
      %549 = vmatpush1.xpose.msra.mxu0 0.0
      %550 = vmatprep.subr.mxu0 0.0
      %551 = vmatpush1.xpose.msra.mxu0 0.0
      %552 = vmatprep.subr.mxu0 0.0
      %553 = vmatpush1.xpose.msra.mxu0 0.0
      %554 = vmatprep.subr.mxu0 0.0
      %555 = vmatpush1.xpose.msra.mxu0 0.0
      %556 = vmatprep.subr.mxu0 0.0
      %557 = vmatpush1.xpose.msra.mxu0 0.0
      %558 = vmatprep.subr.mxu0 0.0
      %559 = vmatpush1.xpose.msra.mxu0 0.0
      %560 = vmatprep.subr.mxu0 0.0
      %561 = vmatpush1.xpose.msra.mxu0 0.0
      %562 = vmatprep.mubr.f32.mxu0 0.0
      %563 = vmatmul.mubr.f32.gmra.mrb[0].mxu0 %v413
      %v564 = vpop.f32.mrb[0].mxu0
      %v565 = vadd.f32 0.0, %v564
      %v566 = vpop.f32.mrb[0].mxu0
      %567 = vmatprep.mubr.f32.mxu0 0.0
      %568 = vmatmul.mubr.f32.gmra.mrb[0].mxu0 %v419
      %v569 = vpop.f32.mrb[0].mxu0
      %v570 = vadd.f32 0.0, %v569
      %v571 = vpop.f32.mrb[0].mxu0
      %572 = vdwg.mxu0
      %v573 = vmul.f32 %v565, 0.088388346
      %v574 = vmul.f32 %v570, 0.088388346
      %vm575 = vcmask 130048
      %v576 = vsel %vm575, %v573, -inf
      %577 = vmax.xlane.f32.xlu0 %v576
      %v578 = vpop.xlane.xlu0 %577
      %v579 = vsel %vm575, %v574, -inf
      %580 = vmax.xlane.f32.xlu0 %v579
      %v581 = vpop.xlane.xlu0 %580
      %v582 = vsub.f32 %v573, %v578
      %v583 = vsub.f32 %v574, %v581
      %v584 = vmul.f32 %v582, 1.442695
      %v585 = vpow.pop %v584
      %v586 = vmul.f32 %v583, 1.442695
      %v587 = vpow.pop %v586
      %v588 = vsel %vm575, %v585, 0.0
      %589 = vadd.xlane.f32.xlu0 %v588
      %v590 = vpop.xlane.xlu0 %589
      %v591 = vsel %vm575, %v587, 0.0
      %592 = vadd.xlane.f32.xlu0 %v591
      %v593 = vpop.xlane.xlu0 %592
      %v594 = vrcp.pop %v590
      %v595 = vmul.f32 1.0, %v594
      %v596 = vrcp.pop %v593
      %v597 = vmul.f32 1.0, %v596
      %v598 = vmul.f32 %v585, %v595
      %v599 = vmul.f32 %v587, %v597
      %v601 = vsel %vm575, %v598, 0
      %v604 = vsel %vm575, %v599, 0
      %606 = vmatprep.subr.mxu0 0.0
      %607 = vmatpush1.msra.mxu0 %v490
      %608 = vmatprep.subr.mxu0 0.0
      %609 = vmatpush1.msra.mxu0 %v495
      %610 = vmatprep.subr.mxu0 0.0
      %611 = vmatpush1.msra.mxu0 0.0
      %612 = vmatprep.subr.mxu0 0.0
      %613 = vmatpush1.msra.mxu0 0.0
      %614 = vmatprep.subr.mxu0 0.0
      %615 = vmatpush1.msra.mxu0 0.0
      %616 = vmatprep.subr.mxu0 0.0
      %617 = vmatpush1.msra.mxu0 0.0
      %618 = vmatprep.subr.mxu0 0.0
      %619 = vmatpush1.msra.mxu0 0.0
      %620 = vmatprep.subr.mxu0 0.0
      %621 = vmatpush1.msra.mxu0 0.0
      %622 = vmatprep.subr.mxu0 0.0
      %623 = vmatpush1.msra.mxu0 0.0
      %624 = vmatprep.subr.mxu0 0.0
      %625 = vmatpush1.msra.mxu0 0.0
      %626 = vmatprep.subr.mxu0 0.0
      %627 = vmatpush1.msra.mxu0 0.0
      %628 = vmatprep.subr.mxu0 0.0
      %629 = vmatpush1.msra.mxu0 0.0
      %630 = vmatprep.subr.mxu0 0.0
      %631 = vmatpush1.msra.mxu0 0.0
      %632 = vmatprep.subr.mxu0 0.0
      %633 = vmatpush1.msra.mxu0 0.0
      %634 = vmatprep.subr.mxu0 0.0
      %635 = vmatpush1.msra.mxu0 0.0
      %636 = vmatprep.subr.mxu0 0.0
      %637 = vmatpush1.msra.mxu0 0.0
      %638 = vmatprep.subr.mxu0 0.0
      %639 = vmatpush1.msra.mxu0 0.0
      %640 = vmatprep.subr.mxu0 0.0
      %641 = vmatpush1.msra.mxu0 0.0
      %642 = vmatprep.subr.mxu0 0.0
      %643 = vmatpush1.msra.mxu0 0.0
      %644 = vmatprep.subr.mxu0 0.0
      %645 = vmatpush1.msra.mxu0 0.0
      %646 = vmatprep.subr.mxu0 0.0
      %647 = vmatpush1.msra.mxu0 0.0
      %648 = vmatprep.subr.mxu0 0.0
      %649 = vmatpush1.msra.mxu0 0.0
      %650 = vmatprep.subr.mxu0 0.0
      %651 = vmatpush1.msra.mxu0 0.0
      %652 = vmatprep.subr.mxu0 0.0
      %653 = vmatpush1.msra.mxu0 0.0
      %654 = vmatprep.subr.mxu0 0.0
      %655 = vmatpush1.msra.mxu0 0.0
      %656 = vmatprep.subr.mxu0 0.0
      %657 = vmatpush1.msra.mxu0 0.0
      %658 = vmatprep.subr.mxu0 0.0
      %659 = vmatpush1.msra.mxu0 0.0
      %660 = vmatprep.subr.mxu0 0.0
      %661 = vmatpush1.msra.mxu0 0.0
      %662 = vmatprep.subr.mxu0 0.0
      %663 = vmatpush1.msra.mxu0 0.0
      %664 = vmatprep.subr.mxu0 0.0
      %665 = vmatpush1.msra.mxu0 0.0
      %666 = vmatprep.subr.mxu0 0.0
      %667 = vmatpush1.msra.mxu0 0.0
      %668 = vmatprep.subr.mxu0 0.0
      %669 = vmatpush1.msra.mxu0 0.0
      %670 = vmatprep.mubr.f32.mxu0 0.0
      %671 = vmatmul.mubr.f32.gmra.mrb[0].mxu0 %v601
      %v672 = vpop.f32.mrb[0].mxu0
      %v673 = vadd.f32 %v413, %v672
      %v674 = vpop.f32.mrb[0].mxu0
      %675 = vmatprep.mubr.f32.mxu0 0.0
      %676 = vmatmul.mubr.f32.gmra.mrb[0].mxu0 %v604
      %v677 = vpop.f32.mrb[0].mxu0
      %v678 = vadd.f32 %v419, %v677
      %v679 = vpop.f32.mrb[0].mxu0
      %680 = vdwg.mxu0
      %v681 = vld [vmem:[%s3] sm:$0x1]
      %v682 = vld [vmem:[%s4] sm:$0x1]
      %683 = vadd.xlane.f32.xlu0 %v673
      %v684 = vpop.xlane.xlu0 %683
      %685 = vadd.xlane.f32.xlu0 %v678
      %v686 = vpop.xlane.xlu0 %685
      %v687 = vrcp.pop 128.0
      %v688 = vmul.f32 %v684, %v687
      %v689 = vmul.f32 %v686, %v687
      %v690 = vsub.f32 %v673, %v688
      %v691 = vsub.f32 %v678, %v689
      %v692 = vmul.f32 %v690, %v690
      %v693 = vmul.f32 %v691, %v691
      %694 = vadd.xlane.f32.xlu0 %v692
      %v695 = vpop.xlane.xlu0 %694
      %696 = vadd.xlane.f32.xlu0 %v693
      %v697 = vpop.xlane.xlu0 %696
      %v698 = vmul.f32 %v695, %v687
      %v699 = vmul.f32 %v697, %v687
      %v700 = vadd.f32 %v698, 1e-05
      %v701 = vadd.f32 %v699, 1e-05
      %v702 = vrsqrt.pop %v700
      %v703 = vrsqrt.pop %v701
      %v704 = vmul.f32 %v690, %v702
      %v705 = vmul.f32 %v691, %v703
      %v707 = vlaneseq
      %v708 = vshrl.u32 %v707, 7
      %v709 = vsub.s32 0, %v708
      %v710 = vrot.slane %v681, %v709
      %v712 = vmul.f32 %v704, %v710
      %v713 = vmul.f32 %v705, %v710
      %v715 = vlaneseq
      %v716 = vshrl.u32 %v715, 7
      %v717 = vsub.s32 0, %v716
      %v718 = vrot.slane %v682, %v717
      %v720 = vadd.f32 %v712, %v718
      %v721 = vadd.f32 %v713, %v718
      %v722 = vadd.f32 %v720, %v279
      %v723 = vadd.f32 %v721, %v280
      %v724 = vld [vmem:[%s5] sm:$0xff]
      %v725 = vld [vmem:[%s5 + $0x8] sm:$0xff]
      %v726 = vld [vmem:[%s5 + $0x10] sm:$0xff]
      %v727 = vld [vmem:[%s5 + $0x18] sm:$0xff]
      %v728 = vld [vmem:[%s5 + $0x20] sm:$0xff]
      %v729 = vld [vmem:[%s5 + $0x28] sm:$0xff]
      %v730 = vld [vmem:[%s5 + $0x30] sm:$0xff]
      %v731 = vld [vmem:[%s5 + $0x38] sm:$0xff]
      %v732 = vld [vmem:[%s5 + $0x40] sm:$0xff]
      %v733 = vld [vmem:[%s5 + $0x48] sm:$0xff]
      %v734 = vld [vmem:[%s5 + $0x50] sm:$0xff]
      %v735 = vld [vmem:[%s5 + $0x58] sm:$0xff]
      %v736 = vld [vmem:[%s5 + $0x60] sm:$0xff]
      %v737 = vld [vmem:[%s5 + $0x68] sm:$0xff]
      %v738 = vld [vmem:[%s5 + $0x70] sm:$0xff]
      %v739 = vld [vmem:[%s5 + $0x78] sm:$0xff]
      %v740 = vld [vmem:[%s6] sm:$0x1]
      %v742 = vlaneseq
      %v743 = vshrl.u32 %v742, 7
      %v744 = vsub.s32 0, %v743
      %v745 = vrot.slane %v740, %v744
      %747 = vmatprep.subr.mxu0 0.0
      %748 = vmatpush1.msra.mxu0 %v724
      %749 = vmatprep.subr.mxu0 0.0
      %750 = vmatpush1.msra.mxu0 %v725
      %751 = vmatprep.subr.mxu0 0.0
      %752 = vmatpush1.msra.mxu0 %v726
      %753 = vmatprep.subr.mxu0 0.0
      %754 = vmatpush1.msra.mxu0 %v727
      %755 = vmatprep.subr.mxu0 0.0
      %756 = vmatpush1.msra.mxu0 %v728
      %757 = vmatprep.subr.mxu0 0.0
      %758 = vmatpush1.msra.mxu0 %v729
      %759 = vmatprep.subr.mxu0 0.0
      %760 = vmatpush1.msra.mxu0 %v730
      %761 = vmatprep.subr.mxu0 0.0
      %762 = vmatpush1.msra.mxu0 %v731
      %763 = vmatprep.subr.mxu0 0.0
      %764 = vmatpush1.msra.mxu0 %v732
      %765 = vmatprep.subr.mxu0 0.0
      %766 = vmatpush1.msra.mxu0 %v733
      %767 = vmatprep.subr.mxu0 0.0
      %768 = vmatpush1.msra.mxu0 %v734
      %769 = vmatprep.subr.mxu0 0.0
      %770 = vmatpush1.msra.mxu0 %v735
      %771 = vmatprep.subr.mxu0 0.0
      %772 = vmatpush1.msra.mxu0 %v736
      %773 = vmatprep.subr.mxu0 0.0
      %774 = vmatpush1.msra.mxu0 %v737
      %775 = vmatprep.subr.mxu0 0.0
      %776 = vmatpush1.msra.mxu0 %v738
      %777 = vmatprep.subr.mxu0 0.0
      %778 = vmatpush1.msra.mxu0 %v739
      %779 = vmatprep.subr.mxu0 0.0
      %780 = vmatpush1.msra.mxu0 0.0
      %781 = vmatprep.subr.mxu0 0.0
      %782 = vmatpush1.msra.mxu0 0.0
      %783 = vmatprep.subr.mxu0 0.0
      %784 = vmatpush1.msra.mxu0 0.0
      %785 = vmatprep.subr.mxu0 0.0
      %786 = vmatpush1.msra.mxu0 0.0
      %787 = vmatprep.subr.mxu0 0.0
      %788 = vmatpush1.msra.mxu0 0.0
      %789 = vmatprep.subr.mxu0 0.0
      %790 = vmatpush1.msra.mxu0 0.0
      %791 = vmatprep.subr.mxu0 0.0
      %792 = vmatpush1.msra.mxu0 0.0
      %793 = vmatprep.subr.mxu0 0.0
      %794 = vmatpush1.msra.mxu0 0.0
      %795 = vmatprep.subr.mxu0 0.0
      %796 = vmatpush1.msra.mxu0 0.0
      %797 = vmatprep.subr.mxu0 0.0
      %798 = vmatpush1.msra.mxu0 0.0
      %799 = vmatprep.subr.mxu0 0.0
      %800 = vmatpush1.msra.mxu0 0.0
      %801 = vmatprep.subr.mxu0 0.0
      %802 = vmatpush1.msra.mxu0 0.0
      %803 = vmatprep.subr.mxu0 0.0
      %804 = vmatpush1.msra.mxu0 0.0
      %805 = vmatprep.subr.mxu0 0.0
      %806 = vmatpush1.msra.mxu0 0.0
      %807 = vmatprep.subr.mxu0 0.0
      %808 = vmatpush1.msra.mxu0 0.0
      %809 = vmatprep.subr.mxu0 0.0
      %810 = vmatpush1.msra.mxu0 0.0
      %811 = vmatprep.mubr.f32.mxu0 0.0
      %812 = vmatmul.mubr.f32.gmra.mrb[0].mxu0 %v722
      %v813 = vpop.f32.mrb[0].mxu0
      %v814 = vadd.f32 %v745, %v813
      %v815 = vpop.f32.mrb[0].mxu0
      %816 = vmatprep.mubr.f32.mxu0 0.0
      %817 = vmatmul.mubr.f32.gmra.mrb[0].mxu0 %v723
      %v818 = vpop.f32.mrb[0].mxu0
      %v819 = vadd.f32 %v745, %v818
      %v820 = vpop.f32.mrb[0].mxu0
      %821 = vdwg.mxu0
      %822 = vst [vmem:[%s278] sm:$0xff] %v814
      %823 = vst [vmem:[%s278 + $0x8] sm:$0xff] %v819
      %p824 = scmp.lt.s32.totalorder %s18, 1
      %s825 = scalar_select %p824, %s18, 1
      %s826 = smul.addr %s825, 2
      %s827 = smul.addr %s826, 8
      %s828 = scalar_lea.vmem %s7, %s827
      // Predicated region
      $region49: #{attn_embed_forward.2} parent=47 // pred_check
        %p829 = pneg %p188
      $region50: #{attn_embed_forward.2} parent=47 // pred_check_branch
        %831 = sbr.rel (%p829) target = $region52
      $region51: #{attn_embed_forward.2} parent=47 // pred_region
        _
      $region52: #{attn_embed_forward.2} parent=47 // pred_fallthru
        _
    $region48: #{attn_embed_forward.2} parent=5 // pred_fallthru
      _
    %p832 = scmp.le.s32.totalorder 2, %s13
    // Predicated region
    $region53: #{attn_embed_forward.2} parent=5 // pred_check
      %p833 = pneg %p832
    $region54: #{attn_embed_forward.2} parent=5 // pred_check_branch
      %835 = sbr.rel (%p833) target = $region56
    $region55: #{attn_embed_forward.2} parent=5 // pred_region
      %s836 = ssub.s32 %s13, 2
      // Predicated region
      $region57: #{attn_embed_forward.2} parent=55 // pred_check
        %p837 = pneg %p194
      $region58: #{attn_embed_forward.2} parent=55 // pred_check_branch
        %839 = sbr.rel (%p837) target = $region60
      $region59: #{attn_embed_forward.2} parent=55 // pred_region
        %p840 = scmp.lt.s32.totalorder %s19, 1
        %s841 = scalar_select %p840, %s19, 1
        %s842 = smul.addr %s841, 2
        %s843 = smul.addr %s842, 8
        %s844 = scalar_lea.vmem %s7, %s843
      $region60: #{attn_embed_forward.2} parent=55 // pred_fallthru
        _
    $region56: #{attn_embed_forward.2} parent=5 // pred_fallthru
      _
  $region6: #{attn_embed_forward.2} parent=0 // loop_footer
    %s17 = sadd.s32 1, %s13
  $region7: #{attn_embed_forward.2} parent=0 // loop_footer_branch
    %12 = sbr.rel target = $region3
  $region8: #{attn_embed_forward.2} parent=0 // loop_exit
    _

// kernel: attn_embed_forward.3
$region0: #{attn_embed_forward.3}
  #allocation0 [shape = 'u32[]', space=smem, size = 0x4, offset = 0x4, fixed_abs, tag = 'smem constant byte address 0x4 - core index']
  #allocation1 [shape = 'u32[144,128]{1,0:T(1,128)}', space=vmem, size = 0x12000, scoped, tag = 'internal scratch']
  %s0 = inlined_call_operand.vmem [shape: f32[2,4,64,128], index: 0, kind: input, shape index: {}]
  %s1 = inlined_call_operand.vmem [shape: f32[64,128], index: 1, kind: input, shape index: {}]
  %s2 = inlined_call_operand.vmem [shape: f32[2,16,128], index: 2, kind: input, shape index: {}]
  %s3 = inlined_call_operand.vmem [shape: f32[16,64], index: 3, kind: input, shape index: {}]
  %s4 = inlined_call_operand.vmem [shape: f32[128,128], index: 4, kind: input, shape index: {}]
  %s5 = inlined_call_operand.vmem [shape: f32[1,128], index: 5, kind: input, shape index: {}]
  %s6 = inlined_call_operand.vmem [shape: f32[128,128], index: 6, kind: input, shape index: {}]
  %s7 = inlined_call_operand.vmem [shape: f32[1,128], index: 7, kind: input, shape index: {}]
  %s8 = inlined_call_operand.vmem [shape: f32[128,128], index: 8, kind: input, shape index: {}]
  %s9 = inlined_call_operand.vmem [shape: f32[1,128], index: 9, kind: input, shape index: {}]
  %s10 = inlined_call_operand.vmem [shape: f32[1,128], index: 10, kind: input, shape index: {}]
  %s11 = inlined_call_operand.vmem [shape: f32[1,128], index: 11, kind: input, shape index: {}]
  %s12 = inlined_call_operand.vmem [shape: f32[128,512], index: 12, kind: input, shape index: {}]
  %s13 = inlined_call_operand.vmem [shape: f32[1,512], index: 13, kind: input, shape index: {}]
  %s14 = inlined_call_operand.vmem [shape: f32[512,128], index: 14, kind: input, shape index: {}]
  %s15 = inlined_call_operand.vmem [shape: f32[1,128], index: 15, kind: input, shape index: {}]
  %s16 = inlined_call_operand.vmem [shape: f32[1,128], index: 16, kind: input, shape index: {}]
  %s17 = inlined_call_operand.vmem [shape: f32[1,128], index: 17, kind: input, shape index: {}]
  %s18 = inlined_call_operand.hbm [shape: f32[2,4,16,128], index: 18, kind: output, shape index: {}]
  %s19 = sld [smem:[#allocation0]]
  $region105: #{attn_embed_forward.3} parent=0
    _
  %s21 = ssub.s32 1, %s19
  %s22 = scalar_select 0, %s21, %s19
  $region1: #{attn_embed_forward.3} parent=0
    #allocation2 [shape = 'u8[16384]{0}', space=vmem, size = 0x4000, scoped, tag = 'output window, operand 0']
    #allocation3 [shape = 's32[2]{0}', space=sflag, size = 0x8, scoped, tag = 'scoped memory for attn_embed_forward.3']
    %23 = vsyncpa [#allocation3], 0
    %s24 = scalar_lea.sflag [#allocation3], 1
    %25 = vsyncpa %s24, 0
    loop: start=0, step=1, limit=10
    $region2: #{attn_embed_forward.3} parent=1 // loop_pre_header
      _
    $region3: #{attn_embed_forward.3} parent=1 // loop_header
      %s27 = sphi 0, %s31
      %p28 = scmp.ge.s32.totalorder %s27, 10
      %s34 = sphi 0, %s46
      %s35 = sphi 0, %s42
      %s36 = sphi 0, %s34
      %s37 = sphi 0, %s35
      %s38 = sphi 0, %s36
      %s39 = sphi 0, %s37
      %s51 = sphi 0, %s53
      %s54 = sphi 0, %s51
      %s55 = sphi 0, %s54
      %s71 = sphi 0, %s55
      %s75 = sphi 0, %s75
      %s77 = sphi 0, %s75
      %s78 = sphi 0, %s77
      %s92 = sphi 0, %s78
      %s98 = sphi 0, %s100
      %s101 = sphi 0, %s98
      %s102 = sphi 0, %s101
      %s118 = sphi 0, %s102
      %s122 = sphi 0, %s122
      %s124 = sphi 0, %s122
      %s125 = sphi 0, %s124
      %s139 = sphi 0, %s125
      %s143 = sphi 0, %s143
      %s145 = sphi 0, %s143
      %s146 = sphi 0, %s145
      %s160 = sphi 0, %s146
      %s164 = sphi 0, %s164
      %s166 = sphi 0, %s164
      %s167 = sphi 0, %s166
      %s181 = sphi 0, %s167
      %s185 = sphi 0, %s185
      %s187 = sphi 0, %s185
      %s188 = sphi 0, %s187
      %s202 = sphi 0, %s188
      %s206 = sphi 0, %s206
      %s208 = sphi 0, %s206
      %s209 = sphi 0, %s208
      %s223 = sphi 0, %s209
      %s227 = sphi 0, %s227
      %s229 = sphi 0, %s227
      %s230 = sphi 0, %s229
      %s244 = sphi 0, %s230
      %s248 = sphi 0, %s248
      %s250 = sphi 0, %s248
      %s251 = sphi 0, %s250
      %s265 = sphi 0, %s251
      %s269 = sphi 0, %s269
      %s271 = sphi 0, %s269
      %s272 = sphi 0, %s271
      %s286 = sphi 0, %s272
      %s290 = sphi 0, %s290
      %s292 = sphi 0, %s290
      %s293 = sphi 0, %s292
      %s307 = sphi 0, %s293
      %s311 = sphi 0, %s311
      %s313 = sphi 0, %s311
      %s314 = sphi 0, %s313
      %s328 = sphi 0, %s314
      %s332 = sphi 0, %s332
      %s334 = sphi 0, %s332
      %s335 = sphi 0, %s334
      %s349 = sphi 0, %s335
      %s353 = sphi 0, %s353
      %s355 = sphi 0, %s353
      %s356 = sphi 0, %s355
      %s370 = sphi 0, %s356
      %s374 = sphi 0, %s374
      %s376 = sphi 0, %s374
      %s377 = sphi 0, %s376
      %s391 = sphi 0, %s377
      %s395 = sphi 0, %s395
      %s397 = sphi 0, %s395
      %s398 = sphi 0, %s397
      %s412 = sphi 0, %s398
      %s416 = sphi 0, %s416
      %s418 = sphi 0, %s416
      %s419 = sphi 0, %s418
      %s433 = sphi 0, %s419
      %s441 = sphi 0, %s443
      %s444 = sphi 0, %s441
      %s445 = sphi 0, %s444
      %s461 = sphi 0, %s445
    $region4: #{attn_embed_forward.3} parent=1 // loop_header_branch
      %30 = sbr.rel (%p28) target = $region8
    $region5: #{attn_embed_forward.3} parent=1 // loop_body
      %s32 = ssub.s32 %s27, 1
      %s33 = ssub.s32 %s27, 2
      %s40 = sadd.s32 1, %s35
      %p41 = scmp.ge.s32.totalorder %s40, 4
      %s42 = scalar_select %p41, 0, %s40
      %s43 = sadd.s32 1, %s34
      %s44 = scalar_select %p41, %s43, %s34
      %p45 = scmp.ge.s32.totalorder %s44, 2
      %s46 = scalar_select %p45, 0, %s44
      %s47 = ssub.s32 %s34, %s46
      %s48 = ssub.s32 %s35, %s42
      %s49 = sor.u32 %s47, %s48
      %p50 = scmp.eq.s32.totalorder %s49, 0
      %s52 = sadd.s32 %s51, 1
      %s53 = scalar_select %p50, %s51, %s52
      %p56 = pneg %p50
      %p57 = scmp.eq.s32.totalorder %s27, 7
      %p58 = por %p56, %p57
      %p59 = scmp.ne.s32.totalorder %s51, %s54
      %p60 = scmp.eq.s32.totalorder %s27, 0
      %p61 = por %p59, %p60
      %p62 = scmp.ne.s32.totalorder %s51, %s54
      %p63 = scmp.eq.s32.totalorder %s32, 7
      %p64 = por %p62, %p63
      %p65 = scmp.ne.s32.totalorder %s54, %s55
      %p66 = scmp.eq.s32.totalorder %s32, 0
      %p67 = por %p65, %p66
      %p68 = scmp.ne.s32.totalorder %s54, %s55
      %p69 = scmp.eq.s32.totalorder %s33, 7
      %p70 = por %p68, %p69
      %p72 = scmp.ne.s32.totalorder %s55, %s71
      %p73 = scmp.eq.s32.totalorder %s33, 0
      %p74 = por %p72, %p73
      %s76 = sadd.s32 %s75, 1
      %p79 = scmp.eq.s32.totalorder %s27, 7
      %p80 = scmp.ne.s32.totalorder %s75, %s77
      %p81 = scmp.eq.s32.totalorder %s27, 0
      %p82 = por %p80, %p81
      %p83 = scmp.ne.s32.totalorder %s75, %s77
      %p84 = scmp.eq.s32.totalorder %s32, 7
      %p85 = por %p83, %p84
      %p86 = scmp.ne.s32.totalorder %s77, %s78
      %p87 = scmp.eq.s32.totalorder %s32, 0
      %p88 = por %p86, %p87
      %p89 = scmp.ne.s32.totalorder %s77, %s78
      %p90 = scmp.eq.s32.totalorder %s33, 7
      %p91 = por %p89, %p90
      %p93 = scmp.ne.s32.totalorder %s78, %s92
      %p94 = scmp.eq.s32.totalorder %s33, 0
      %p95 = por %p93, %p94
      %s96 = ssub.s32 %s34, %s46
      %p97 = scmp.eq.s32.totalorder %s96, 0
      %s99 = sadd.s32 %s98, 1
      %s100 = scalar_select %p97, %s98, %s99
      %p103 = pneg %p97
      %p104 = scmp.eq.s32.totalorder %s27, 7
      %p105 = por %p103, %p104
      %p106 = scmp.ne.s32.totalorder %s98, %s101
      %p107 = scmp.eq.s32.totalorder %s27, 0
      %p108 = por %p106, %p107
      %p109 = scmp.ne.s32.totalorder %s98, %s101
      %p110 = scmp.eq.s32.totalorder %s32, 7
      %p111 = por %p109, %p110
      %p112 = scmp.ne.s32.totalorder %s101, %s102
      %p113 = scmp.eq.s32.totalorder %s32, 0
      %p114 = por %p112, %p113
      %p115 = scmp.ne.s32.totalorder %s101, %s102
      %p116 = scmp.eq.s32.totalorder %s33, 7
      %p117 = por %p115, %p116
      %p119 = scmp.ne.s32.totalorder %s102, %s118
      %p120 = scmp.eq.s32.totalorder %s33, 0
      %p121 = por %p119, %p120
      %s123 = sadd.s32 %s122, 1
      %p126 = scmp.eq.s32.totalorder %s27, 7
      %p127 = scmp.ne.s32.totalorder %s122, %s124
      %p128 = scmp.eq.s32.totalorder %s27, 0
      %p129 = por %p127, %p128
      %p130 = scmp.ne.s32.totalorder %s122, %s124
      %p131 = scmp.eq.s32.totalorder %s32, 7
      %p132 = por %p130, %p131
      %p133 = scmp.ne.s32.totalorder %s124, %s125
      %p134 = scmp.eq.s32.totalorder %s32, 0
      %p135 = por %p133, %p134
      %p136 = scmp.ne.s32.totalorder %s124, %s125
      %p137 = scmp.eq.s32.totalorder %s33, 7
      %p138 = por %p136, %p137
      %p140 = scmp.ne.s32.totalorder %s125, %s139
      %p141 = scmp.eq.s32.totalorder %s33, 0
      %p142 = por %p140, %p141
      %s144 = sadd.s32 %s143, 1
      %p147 = scmp.eq.s32.totalorder %s27, 7
      %p148 = scmp.ne.s32.totalorder %s143, %s145
      %p149 = scmp.eq.s32.totalorder %s27, 0
      %p150 = por %p148, %p149
      %p151 = scmp.ne.s32.totalorder %s143, %s145
      %p152 = scmp.eq.s32.totalorder %s32, 7
      %p153 = por %p151, %p152
      %p154 = scmp.ne.s32.totalorder %s145, %s146
      %p155 = scmp.eq.s32.totalorder %s32, 0
      %p156 = por %p154, %p155
      %p157 = scmp.ne.s32.totalorder %s145, %s146
      %p158 = scmp.eq.s32.totalorder %s33, 7
      %p159 = por %p157, %p158
      %p161 = scmp.ne.s32.totalorder %s146, %s160
      %p162 = scmp.eq.s32.totalorder %s33, 0
      %p163 = por %p161, %p162
      %s165 = sadd.s32 %s164, 1
      %p168 = scmp.eq.s32.totalorder %s27, 7
      %p169 = scmp.ne.s32.totalorder %s164, %s166
      %p170 = scmp.eq.s32.totalorder %s27, 0
      %p171 = por %p169, %p170
      %p172 = scmp.ne.s32.totalorder %s164, %s166
      %p173 = scmp.eq.s32.totalorder %s32, 7
      %p174 = por %p172, %p173
      %p175 = scmp.ne.s32.totalorder %s166, %s167
      %p176 = scmp.eq.s32.totalorder %s32, 0
      %p177 = por %p175, %p176
      %p178 = scmp.ne.s32.totalorder %s166, %s167
      %p179 = scmp.eq.s32.totalorder %s33, 7
      %p180 = por %p178, %p179
      %p182 = scmp.ne.s32.totalorder %s167, %s181
      %p183 = scmp.eq.s32.totalorder %s33, 0
      %p184 = por %p182, %p183
      %s186 = sadd.s32 %s185, 1
      %p189 = scmp.eq.s32.totalorder %s27, 7
      %p190 = scmp.ne.s32.totalorder %s185, %s187
      %p191 = scmp.eq.s32.totalorder %s27, 0
      %p192 = por %p190, %p191
      %p193 = scmp.ne.s32.totalorder %s185, %s187
      %p194 = scmp.eq.s32.totalorder %s32, 7
      %p195 = por %p193, %p194
      %p196 = scmp.ne.s32.totalorder %s187, %s188
      %p197 = scmp.eq.s32.totalorder %s32, 0
      %p198 = por %p196, %p197
      %p199 = scmp.ne.s32.totalorder %s187, %s188
      %p200 = scmp.eq.s32.totalorder %s33, 7
      %p201 = por %p199, %p200
      %p203 = scmp.ne.s32.totalorder %s188, %s202
      %p204 = scmp.eq.s32.totalorder %s33, 0
      %p205 = por %p203, %p204
      %s207 = sadd.s32 %s206, 1
      %p210 = scmp.eq.s32.totalorder %s27, 7
      %p211 = scmp.ne.s32.totalorder %s206, %s208
      %p212 = scmp.eq.s32.totalorder %s27, 0
      %p213 = por %p211, %p212
      %p214 = scmp.ne.s32.totalorder %s206, %s208
      %p215 = scmp.eq.s32.totalorder %s32, 7
      %p216 = por %p214, %p215
      %p217 = scmp.ne.s32.totalorder %s208, %s209
      %p218 = scmp.eq.s32.totalorder %s32, 0
      %p219 = por %p217, %p218
      %p220 = scmp.ne.s32.totalorder %s208, %s209
      %p221 = scmp.eq.s32.totalorder %s33, 7
      %p222 = por %p220, %p221
      %p224 = scmp.ne.s32.totalorder %s209, %s223
      %p225 = scmp.eq.s32.totalorder %s33, 0
      %p226 = por %p224, %p225
      %s228 = sadd.s32 %s227, 1
      %p231 = scmp.eq.s32.totalorder %s27, 7
      %p232 = scmp.ne.s32.totalorder %s227, %s229
      %p233 = scmp.eq.s32.totalorder %s27, 0
      %p234 = por %p232, %p233
      %p235 = scmp.ne.s32.totalorder %s227, %s229
      %p236 = scmp.eq.s32.totalorder %s32, 7
      %p237 = por %p235, %p236
      %p238 = scmp.ne.s32.totalorder %s229, %s230
      %p239 = scmp.eq.s32.totalorder %s32, 0
      %p240 = por %p238, %p239
      %p241 = scmp.ne.s32.totalorder %s229, %s230
      %p242 = scmp.eq.s32.totalorder %s33, 7
      %p243 = por %p241, %p242
      %p245 = scmp.ne.s32.totalorder %s230, %s244
      %p246 = scmp.eq.s32.totalorder %s33, 0
      %p247 = por %p245, %p246
      %s249 = sadd.s32 %s248, 1
      %p252 = scmp.eq.s32.totalorder %s27, 7
      %p253 = scmp.ne.s32.totalorder %s248, %s250
      %p254 = scmp.eq.s32.totalorder %s27, 0
      %p255 = por %p253, %p254
      %p256 = scmp.ne.s32.totalorder %s248, %s250
      %p257 = scmp.eq.s32.totalorder %s32, 7
      %p258 = por %p256, %p257
      %p259 = scmp.ne.s32.totalorder %s250, %s251
      %p260 = scmp.eq.s32.totalorder %s32, 0
      %p261 = por %p259, %p260
      %p262 = scmp.ne.s32.totalorder %s250, %s251
      %p263 = scmp.eq.s32.totalorder %s33, 7
      %p264 = por %p262, %p263
      %p266 = scmp.ne.s32.totalorder %s251, %s265
      %p267 = scmp.eq.s32.totalorder %s33, 0
      %p268 = por %p266, %p267
      %s270 = sadd.s32 %s269, 1
      %p273 = scmp.eq.s32.totalorder %s27, 7
      %p274 = scmp.ne.s32.totalorder %s269, %s271
      %p275 = scmp.eq.s32.totalorder %s27, 0
      %p276 = por %p274, %p275
      %p277 = scmp.ne.s32.totalorder %s269, %s271
      %p278 = scmp.eq.s32.totalorder %s32, 7
      %p279 = por %p277, %p278
      %p280 = scmp.ne.s32.totalorder %s271, %s272
      %p281 = scmp.eq.s32.totalorder %s32, 0
      %p282 = por %p280, %p281
      %p283 = scmp.ne.s32.totalorder %s271, %s272
      %p284 = scmp.eq.s32.totalorder %s33, 7
      %p285 = por %p283, %p284
      %p287 = scmp.ne.s32.totalorder %s272, %s286
      %p288 = scmp.eq.s32.totalorder %s33, 0
      %p289 = por %p287, %p288
      %s291 = sadd.s32 %s290, 1
      %p294 = scmp.eq.s32.totalorder %s27, 7
      %p295 = scmp.ne.s32.totalorder %s290, %s292
      %p296 = scmp.eq.s32.totalorder %s27, 0
      %p297 = por %p295, %p296
      %p298 = scmp.ne.s32.totalorder %s290, %s292
      %p299 = scmp.eq.s32.totalorder %s32, 7
      %p300 = por %p298, %p299
      %p301 = scmp.ne.s32.totalorder %s292, %s293
      %p302 = scmp.eq.s32.totalorder %s32, 0
      %p303 = por %p301, %p302
      %p304 = scmp.ne.s32.totalorder %s292, %s293
      %p305 = scmp.eq.s32.totalorder %s33, 7
      %p306 = por %p304, %p305
      %p308 = scmp.ne.s32.totalorder %s293, %s307
      %p309 = scmp.eq.s32.totalorder %s33, 0
      %p310 = por %p308, %p309
      %s312 = sadd.s32 %s311, 1
      %p315 = scmp.eq.s32.totalorder %s27, 7
      %p316 = scmp.ne.s32.totalorder %s311, %s313
      %p317 = scmp.eq.s32.totalorder %s27, 0
      %p318 = por %p316, %p317
      %p319 = scmp.ne.s32.totalorder %s311, %s313
      %p320 = scmp.eq.s32.totalorder %s32, 7
      %p321 = por %p319, %p320
      %p322 = scmp.ne.s32.totalorder %s313, %s314
      %p323 = scmp.eq.s32.totalorder %s32, 0
      %p324 = por %p322, %p323
      %p325 = scmp.ne.s32.totalorder %s313, %s314
      %p326 = scmp.eq.s32.totalorder %s33, 7
      %p327 = por %p325, %p326
      %p329 = scmp.ne.s32.totalorder %s314, %s328
      %p330 = scmp.eq.s32.totalorder %s33, 0
      %p331 = por %p329, %p330
      %s333 = sadd.s32 %s332, 1
      %p336 = scmp.eq.s32.totalorder %s27, 7
      %p337 = scmp.ne.s32.totalorder %s332, %s334
      %p338 = scmp.eq.s32.totalorder %s27, 0
      %p339 = por %p337, %p338
      %p340 = scmp.ne.s32.totalorder %s332, %s334
      %p341 = scmp.eq.s32.totalorder %s32, 7
      %p342 = por %p340, %p341
      %p343 = scmp.ne.s32.totalorder %s334, %s335
      %p344 = scmp.eq.s32.totalorder %s32, 0
      %p345 = por %p343, %p344
      %p346 = scmp.ne.s32.totalorder %s334, %s335
      %p347 = scmp.eq.s32.totalorder %s33, 7
      %p348 = por %p346, %p347
      %p350 = scmp.ne.s32.totalorder %s335, %s349
      %p351 = scmp.eq.s32.totalorder %s33, 0
      %p352 = por %p350, %p351
      %s354 = sadd.s32 %s353, 1
      %p357 = scmp.eq.s32.totalorder %s27, 7
      %p358 = scmp.ne.s32.totalorder %s353, %s355
      %p359 = scmp.eq.s32.totalorder %s27, 0
      %p360 = por %p358, %p359
      %p361 = scmp.ne.s32.totalorder %s353, %s355
      %p362 = scmp.eq.s32.totalorder %s32, 7
      %p363 = por %p361, %p362
      %p364 = scmp.ne.s32.totalorder %s355, %s356
      %p365 = scmp.eq.s32.totalorder %s32, 0
      %p366 = por %p364, %p365
      %p367 = scmp.ne.s32.totalorder %s355, %s356
      %p368 = scmp.eq.s32.totalorder %s33, 7
      %p369 = por %p367, %p368
      %p371 = scmp.ne.s32.totalorder %s356, %s370
      %p372 = scmp.eq.s32.totalorder %s33, 0
      %p373 = por %p371, %p372
      %s375 = sadd.s32 %s374, 1
      %p378 = scmp.eq.s32.totalorder %s27, 7
      %p379 = scmp.ne.s32.totalorder %s374, %s376
      %p380 = scmp.eq.s32.totalorder %s27, 0
      %p381 = por %p379, %p380
      %p382 = scmp.ne.s32.totalorder %s374, %s376
      %p383 = scmp.eq.s32.totalorder %s32, 7
      %p384 = por %p382, %p383
      %p385 = scmp.ne.s32.totalorder %s376, %s377
      %p386 = scmp.eq.s32.totalorder %s32, 0
      %p387 = por %p385, %p386
      %p388 = scmp.ne.s32.totalorder %s376, %s377
      %p389 = scmp.eq.s32.totalorder %s33, 7
      %p390 = por %p388, %p389
      %p392 = scmp.ne.s32.totalorder %s377, %s391
      %p393 = scmp.eq.s32.totalorder %s33, 0
      %p394 = por %p392, %p393
      %s396 = sadd.s32 %s395, 1
      %p399 = scmp.eq.s32.totalorder %s27, 7
      %p400 = scmp.ne.s32.totalorder %s395, %s397
      %p401 = scmp.eq.s32.totalorder %s27, 0
      %p402 = por %p400, %p401
      %p403 = scmp.ne.s32.totalorder %s395, %s397
      %p404 = scmp.eq.s32.totalorder %s32, 7
      %p405 = por %p403, %p404
      %p406 = scmp.ne.s32.totalorder %s397, %s398
      %p407 = scmp.eq.s32.totalorder %s32, 0
      %p408 = por %p406, %p407
      %p409 = scmp.ne.s32.totalorder %s397, %s398
      %p410 = scmp.eq.s32.totalorder %s33, 7
      %p411 = por %p409, %p410
      %p413 = scmp.ne.s32.totalorder %s398, %s412
      %p414 = scmp.eq.s32.totalorder %s33, 0
      %p415 = por %p413, %p414
      %s417 = sadd.s32 %s416, 1
      %p420 = scmp.eq.s32.totalorder %s27, 7
      %p421 = scmp.ne.s32.totalorder %s416, %s418
      %p422 = scmp.eq.s32.totalorder %s27, 0
      %p423 = por %p421, %p422
      %p424 = scmp.ne.s32.totalorder %s416, %s418
      %p425 = scmp.eq.s32.totalorder %s32, 7
      %p426 = por %p424, %p425
      %p427 = scmp.ne.s32.totalorder %s418, %s419
      %p428 = scmp.eq.s32.totalorder %s32, 0
      %p429 = por %p427, %p428
      %p430 = scmp.ne.s32.totalorder %s418, %s419
      %p431 = scmp.eq.s32.totalorder %s33, 7
      %p432 = por %p430, %p431
      %p434 = scmp.ne.s32.totalorder %s419, %s433
      %p435 = scmp.eq.s32.totalorder %s33, 0
      %p436 = por %p434, %p435
      %s437 = ssub.s32 %s34, %s46
      %s438 = ssub.s32 %s35, %s42
      %s439 = sor.u32 %s437, %s438
      %p440 = scmp.eq.s32.totalorder %s439, 0
      %s442 = sadd.s32 %s441, 1
      %s443 = scalar_select %p440, %s441, %s442
      %p446 = pneg %p440
      %p447 = scmp.eq.s32.totalorder %s27, 7
      %p448 = por %p446, %p447
      %p449 = scmp.ne.s32.totalorder %s441, %s444
      %p450 = scmp.eq.s32.totalorder %s27, 0
      %p451 = por %p449, %p450
      %p452 = scmp.ne.s32.totalorder %s441, %s444
      %p453 = scmp.eq.s32.totalorder %s32, 7
      %p454 = por %p452, %p453
      %p455 = scmp.ne.s32.totalorder %s444, %s445
      %p456 = scmp.eq.s32.totalorder %s32, 0
      %p457 = por %p455, %p456
      %p458 = scmp.ne.s32.totalorder %s444, %s445
      %p459 = scmp.eq.s32.totalorder %s33, 7
      %p460 = por %p458, %p459
      %p462 = scmp.ne.s32.totalorder %s445, %s461
      %p463 = scmp.eq.s32.totalorder %s33, 0
      %p464 = por %p462, %p463
      %p465 = scmp.le.s32.totalorder 1, %s27
      %p466 = scmp.lt.s32.totalorder %s27, 9
      %p467 = pnand %p465, %p466
      %p468 = pneg %p467
      // Predicated region
      $region9: #{attn_embed_forward.3} parent=5 // pred_check
        _
      $region10: #{attn_embed_forward.3} parent=5 // pred_check_branch
        %470 = sbr.rel (%p467) target = $region12
      $region11: #{attn_embed_forward.3} parent=5 // pred_region
        %s471 = ssub.s32 %s27, 1
        // Predicated region
        $region13: #{attn_embed_forward.3} parent=11 // pred_check
          %p472 = pneg %p88
        $region14: #{attn_embed_forward.3} parent=11 // pred_check_branch
          %474 = sbr.rel (%p472) target = $region16
        $region15: #{attn_embed_forward.3} parent=11 // pred_region
          _
        $region16: #{attn_embed_forward.3} parent=11 // pred_fallthru
          _
        // Predicated region
        $region17: #{attn_embed_forward.3} parent=11 // pred_check
          %p475 = pneg %p135
        $region18: #{attn_embed_forward.3} parent=11 // pred_check_branch
          %477 = sbr.rel (%p475) target = $region20
        $region19: #{attn_embed_forward.3} parent=11 // pred_region
          _
        $region20: #{attn_embed_forward.3} parent=11 // pred_fallthru
          _
        // Predicated region
        $region21: #{attn_embed_forward.3} parent=11 // pred_check
          %p478 = pneg %p156
        $region22: #{attn_embed_forward.3} parent=11 // pred_check_branch
          %480 = sbr.rel (%p478) target = $region24
        $region23: #{attn_embed_forward.3} parent=11 // pred_region
          _
        $region24: #{attn_embed_forward.3} parent=11 // pred_fallthru
          _
        // Predicated region
        $region25: #{attn_embed_forward.3} parent=11 // pred_check
          %p481 = pneg %p177
        $region26: #{attn_embed_forward.3} parent=11 // pred_check_branch
          %483 = sbr.rel (%p481) target = $region28
        $region27: #{attn_embed_forward.3} parent=11 // pred_region
          _
        $region28: #{attn_embed_forward.3} parent=11 // pred_fallthru
          _
        // Predicated region
        $region29: #{attn_embed_forward.3} parent=11 // pred_check
          %p484 = pneg %p198
        $region30: #{attn_embed_forward.3} parent=11 // pred_check_branch
          %486 = sbr.rel (%p484) target = $region32
        $region31: #{attn_embed_forward.3} parent=11 // pred_region
          _
        $region32: #{attn_embed_forward.3} parent=11 // pred_fallthru
          _
        // Predicated region
        $region33: #{attn_embed_forward.3} parent=11 // pred_check
          %p487 = pneg %p219
        $region34: #{attn_embed_forward.3} parent=11 // pred_check_branch
          %489 = sbr.rel (%p487) target = $region36
        $region35: #{attn_embed_forward.3} parent=11 // pred_region
          _
        $region36: #{attn_embed_forward.3} parent=11 // pred_fallthru
          _
        // Predicated region
        $region37: #{attn_embed_forward.3} parent=11 // pred_check
          %p490 = pneg %p240
        $region38: #{attn_embed_forward.3} parent=11 // pred_check_branch
          %492 = sbr.rel (%p490) target = $region40
        $region39: #{attn_embed_forward.3} parent=11 // pred_region
          _
        $region40: #{attn_embed_forward.3} parent=11 // pred_fallthru
          _
        // Predicated region
        $region41: #{attn_embed_forward.3} parent=11 // pred_check
          %p493 = pneg %p261
        $region42: #{attn_embed_forward.3} parent=11 // pred_check_branch
          %495 = sbr.rel (%p493) target = $region44
        $region43: #{attn_embed_forward.3} parent=11 // pred_region
          _
        $region44: #{attn_embed_forward.3} parent=11 // pred_fallthru
          _
        // Predicated region
        $region45: #{attn_embed_forward.3} parent=11 // pred_check
          %p496 = pneg %p282
        $region46: #{attn_embed_forward.3} parent=11 // pred_check_branch
          %498 = sbr.rel (%p496) target = $region48
        $region47: #{attn_embed_forward.3} parent=11 // pred_region
          _
        $region48: #{attn_embed_forward.3} parent=11 // pred_fallthru
          _
        // Predicated region
        $region49: #{attn_embed_forward.3} parent=11 // pred_check
          %p499 = pneg %p303
        $region50: #{attn_embed_forward.3} parent=11 // pred_check_branch
          %501 = sbr.rel (%p499) target = $region52
        $region51: #{attn_embed_forward.3} parent=11 // pred_region
          _
        $region52: #{attn_embed_forward.3} parent=11 // pred_fallthru
          _
        // Predicated region
        $region53: #{attn_embed_forward.3} parent=11 // pred_check
          %p502 = pneg %p324
        $region54: #{attn_embed_forward.3} parent=11 // pred_check_branch
          %504 = sbr.rel (%p502) target = $region56
        $region55: #{attn_embed_forward.3} parent=11 // pred_region
          _
        $region56: #{attn_embed_forward.3} parent=11 // pred_fallthru
          _
        // Predicated region
        $region57: #{attn_embed_forward.3} parent=11 // pred_check
          %p505 = pneg %p345
        $region58: #{attn_embed_forward.3} parent=11 // pred_check_branch
          %507 = sbr.rel (%p505) target = $region60
        $region59: #{attn_embed_forward.3} parent=11 // pred_region
          _
        $region60: #{attn_embed_forward.3} parent=11 // pred_fallthru
          _
        // Predicated region
        $region61: #{attn_embed_forward.3} parent=11 // pred_check
          %p508 = pneg %p366
        $region62: #{attn_embed_forward.3} parent=11 // pred_check_branch
          %510 = sbr.rel (%p508) target = $region64
        $region63: #{attn_embed_forward.3} parent=11 // pred_region
          _
        $region64: #{attn_embed_forward.3} parent=11 // pred_fallthru
          _
        // Predicated region
        $region65: #{attn_embed_forward.3} parent=11 // pred_check
          %p511 = pneg %p387
        $region66: #{attn_embed_forward.3} parent=11 // pred_check_branch
          %513 = sbr.rel (%p511) target = $region68
        $region67: #{attn_embed_forward.3} parent=11 // pred_region
          _
        $region68: #{attn_embed_forward.3} parent=11 // pred_fallthru
          _
        // Predicated region
        $region69: #{attn_embed_forward.3} parent=11 // pred_check
          %p514 = pneg %p408
        $region70: #{attn_embed_forward.3} parent=11 // pred_check_branch
          %516 = sbr.rel (%p514) target = $region72
        $region71: #{attn_embed_forward.3} parent=11 // pred_region
          _
        $region72: #{attn_embed_forward.3} parent=11 // pred_fallthru
          _
        // Predicated region
        $region73: #{attn_embed_forward.3} parent=11 // pred_check
          %p517 = pneg %p429
        $region74: #{attn_embed_forward.3} parent=11 // pred_check_branch
          %519 = sbr.rel (%p517) target = $region76
        $region75: #{attn_embed_forward.3} parent=11 // pred_region
          _
        $region76: #{attn_embed_forward.3} parent=11 // pred_fallthru
          _
      $region12: #{attn_embed_forward.3} parent=5 // pred_fallthru
        _
      %p520 = scmp.lt.s32.totalorder %s27, 8
      // Predicated region
      $region77: #{attn_embed_forward.3} parent=5 // pred_check
        %p521 = pneg %p520
      $region78: #{attn_embed_forward.3} parent=5 // pred_check_branch
        %523 = sbr.rel (%p521) target = $region80
      $region79: #{attn_embed_forward.3} parent=5 // pred_region
        // Predicated region
        $region81: #{attn_embed_forward.3} parent=79 // pred_check
          %p524 = pneg %p61
        $region82: #{attn_embed_forward.3} parent=79 // pred_check_branch
          %526 = sbr.rel (%p524) target = $region84
        $region83: #{attn_embed_forward.3} parent=79 // pred_region
          %p527 = scmp.lt.s32.totalorder %s34, 1
          %s528 = scalar_select %p527, %s34, 1
          %p529 = scmp.lt.s32.totalorder %s35, 3
          %s530 = scalar_select %p529, %s35, 3
          %s531 = smul.addr %s530, 8
          %s532 = smul.addr %s528, 32
          %s533 = sadd.s32 %s531, %s532
          %s534 = smul.addr %s533, 8
          %s535 = scalar_lea.vmem %s0, %s534
        $region84: #{attn_embed_forward.3} parent=79 // pred_fallthru
          _
        // Predicated region
        $region85: #{attn_embed_forward.3} parent=79 // pred_check
          %p536 = pneg %p108
        $region86: #{attn_embed_forward.3} parent=79 // pred_check_branch
          %538 = sbr.rel (%p536) target = $region88
        $region87: #{attn_embed_forward.3} parent=79 // pred_region
          %p539 = scmp.lt.s32.totalorder %s34, 1
          %s540 = scalar_select %p539, %s34, 1
          %s541 = smul.addr %s540, 2
          %s542 = smul.addr %s541, 8
          %s543 = scalar_lea.vmem %s2, %s542
        $region88: #{attn_embed_forward.3} parent=79 // pred_fallthru
          _
      $region80: #{attn_embed_forward.3} parent=5 // pred_fallthru
        _
      %p544 = scmp.le.s32.totalorder 1, %s27
      %p545 = scmp.lt.s32.totalorder %s27, 9
      %p546 = pnand %p544, %p545
      %p547 = pneg %p546
      // Predicated region
      $region89: #{attn_embed_forward.3} parent=5 // pred_check
        _
      $region90: #{attn_embed_forward.3} parent=5 // pred_check_branch
        %549 = sbr.rel (%p546) target = $region92
      $region91: #{attn_embed_forward.3} parent=5 // pred_region
        %s550 = ssub.s32 %s27, 1
        %p551 = scmp.lt.s32.totalorder %s36, 1
        %s552 = scalar_select %p551, %s36, 1
        %p553 = scmp.lt.s32.totalorder %s37, 3
        %s554 = scalar_select %p553, %s37, 3
        %s555 = smul.addr %s554, 8
        %s556 = smul.addr %s552, 32
        %s557 = sadd.s32 %s555, %s556
        %s558 = smul.addr %s557, 8
        %s559 = scalar_lea.vmem %s0, %s558
        %p560 = pneg %p67
        %p561 = pneg %p64
        %p562 = pneg %p88
        %p563 = pneg %p85
        %p564 = scmp.lt.s32.totalorder %s36, 1
        %s565 = scalar_select %p564, %s36, 1
        %s566 = smul.addr %s565, 2
        %s567 = smul.addr %s566, 8
        %s568 = scalar_lea.vmem %s2, %s567
        %p569 = pneg %p114
        %p570 = pneg %p111
        %p571 = pneg %p135
        %p572 = pneg %p132
        %p573 = pneg %p156
        %p574 = pneg %p153
        %p575 = pneg %p177
        %p576 = pneg %p174
        %p577 = pneg %p198
        %p578 = pneg %p195
        %p579 = pneg %p219
        %p580 = pneg %p216
        %p581 = pneg %p240
        %p582 = pneg %p237
        %p583 = pneg %p261
        %p584 = pneg %p258
        %p585 = pneg %p282
        %p586 = pneg %p279
        %p587 = pneg %p303
        %p588 = pneg %p300
        %p589 = pneg %p324
        %p590 = pneg %p321
        %p591 = pneg %p345
        %p592 = pneg %p342
        %p593 = pneg %p366
        %p594 = pneg %p363
        %p595 = pneg %p387
        %p596 = pneg %p384
        %p597 = pneg %p408
        %p598 = pneg %p405
        %p599 = pneg %p429
        %p600 = pneg %p426
        %p601 = pneg %p457
        %p602 = pneg %p454
        %s603 = sand.u32 %s444, 1
        %s604 = scalar_lea.sflag [#allocation3], %s603
        %s605 = sand.u32 %s444, 1
        %s606 = smul.addr %s605, 16
        %s607 = scalar_lea.vmem [#allocation2], %s606
        %p608 = scmp.lt.s32.totalorder %s36, 1
        %s609 = scalar_select %p608, %s36, 1
        %p610 = scmp.lt.s32.totalorder %s37, 3
        %s611 = scalar_select %p610, %s37, 3
        %s612 = smul.addr %s611, 8
        %s613 = smul.addr %s609, 32
        %s614 = sadd.s32 %s612, %s613
        %s615 = smul.addr %s614, 8
        %s616 = scalar_lea.vmem %s0, %s615
        %p617 = scmp.lt.s32.totalorder %s36, 1
        %s618 = scalar_select %p617, %s36, 1
        %s619 = smul.addr %s618, 2
        %s620 = smul.addr %s619, 8
        %s621 = scalar_lea.vmem %s2, %s620
        %v622 = vld [vmem:[%s616] sm:$0xff]
        %v623 = vld [vmem:[%s616 + $0x8] sm:$0xff]
        %v624 = vld [vmem:[%s616 + $0x10] sm:$0xff]
        %v625 = vld [vmem:[%s616 + $0x18] sm:$0xff]
        %v626 = vld [vmem:[%s616 + $0x20] sm:$0xff]
        %v627 = vld [vmem:[%s616 + $0x28] sm:$0xff]
        %v628 = vld [vmem:[%s616 + $0x30] sm:$0xff]
        %v629 = vld [vmem:[%s616 + $0x38] sm:$0xff]
        %v630 = vld [vmem:[%s621] sm:$0xff]
        %v631 = vld [vmem:[%s621 + $0x8] sm:$0xff]
        %v632 = vld [vmem:[%s1] sm:$0xff]
        %v633 = vld [vmem:[%s1 + $0x8] sm:$0xff]
        %v634 = vld [vmem:[%s1 + $0x10] sm:$0xff]
        %v635 = vld [vmem:[%s1 + $0x18] sm:$0xff]
        %v636 = vld [vmem:[%s1 + $0x20] sm:$0xff]
        %v637 = vld [vmem:[%s1 + $0x28] sm:$0xff]
        %v638 = vld [vmem:[%s1 + $0x30] sm:$0xff]
        %v639 = vld [vmem:[%s1 + $0x38] sm:$0xff]
        %v640 = vadd.f32 %v622, %v632
        %v641 = vadd.f32 %v623, %v633
        %v642 = vadd.f32 %v624, %v634
        %v643 = vadd.f32 %v625, %v635
        %v644 = vadd.f32 %v626, %v636
        %v645 = vadd.f32 %v627, %v637
        %v646 = vadd.f32 %v628, %v638
        %v647 = vadd.f32 %v629, %v639
        %v648 = vld [vmem:[%s4] sm:$0xff]
        %v649 = vld [vmem:[%s4 + $0x8] sm:$0xff]
        %v650 = vld [vmem:[%s4 + $0x10] sm:$0xff]
        %v651 = vld [vmem:[%s4 + $0x18] sm:$0xff]
        %v652 = vld [vmem:[%s4 + $0x20] sm:$0xff]
        %v653 = vld [vmem:[%s4 + $0x28] sm:$0xff]
        %v654 = vld [vmem:[%s4 + $0x30] sm:$0xff]
        %v655 = vld [vmem:[%s4 + $0x38] sm:$0xff]
        %v656 = vld [vmem:[%s4 + $0x40] sm:$0xff]
        %v657 = vld [vmem:[%s4 + $0x48] sm:$0xff]
        %v658 = vld [vmem:[%s4 + $0x50] sm:$0xff]
        %v659 = vld [vmem:[%s4 + $0x58] sm:$0xff]
        %v660 = vld [vmem:[%s4 + $0x60] sm:$0xff]
        %v661 = vld [vmem:[%s4 + $0x68] sm:$0xff]
        %v662 = vld [vmem:[%s4 + $0x70] sm:$0xff]
        %v663 = vld [vmem:[%s4 + $0x78] sm:$0xff]
        %v664 = vld [vmem:[%s5] sm:$0x1]
        %v666 = vlaneseq
        %v667 = vshrl.u32 %v666, 7
        %v668 = vsub.s32 0, %v667
        %v669 = vrot.slane %v664, %v668
        %671 = vmatprep.subr.mxu0 0.0
        %672 = vmatpush1.msra.mxu0 %v648
        %673 = vmatprep.subr.mxu0 0.0
        %674 = vmatpush1.msra.mxu0 %v649
        %675 = vmatprep.subr.mxu0 0.0
        %676 = vmatpush1.msra.mxu0 %v650
        %677 = vmatprep.subr.mxu0 0.0
        %678 = vmatpush1.msra.mxu0 %v651
        %679 = vmatprep.subr.mxu0 0.0
        %680 = vmatpush1.msra.mxu0 %v652
        %681 = vmatprep.subr.mxu0 0.0
        %682 = vmatpush1.msra.mxu0 %v653
        %683 = vmatprep.subr.mxu0 0.0
        %684 = vmatpush1.msra.mxu0 %v654
        %685 = vmatprep.subr.mxu0 0.0
        %686 = vmatpush1.msra.mxu0 %v655
        %687 = vmatprep.subr.mxu0 0.0
        %688 = vmatpush1.msra.mxu0 %v656
        %689 = vmatprep.subr.mxu0 0.0
        %690 = vmatpush1.msra.mxu0 %v657
        %691 = vmatprep.subr.mxu0 0.0
        %692 = vmatpush1.msra.mxu0 %v658
        %693 = vmatprep.subr.mxu0 0.0
        %694 = vmatpush1.msra.mxu0 %v659
        %695 = vmatprep.subr.mxu0 0.0
        %696 = vmatpush1.msra.mxu0 %v660
        %697 = vmatprep.subr.mxu0 0.0
        %698 = vmatpush1.msra.mxu0 %v661
        %699 = vmatprep.subr.mxu0 0.0
        %700 = vmatpush1.msra.mxu0 %v662
        %701 = vmatprep.subr.mxu0 0.0
        %702 = vmatpush1.msra.mxu0 %v663
        %703 = vmatprep.subr.mxu0 0.0
        %704 = vmatpush1.msra.mxu0 0.0
        %705 = vmatprep.subr.mxu0 0.0
        %706 = vmatpush1.msra.mxu0 0.0
        %707 = vmatprep.subr.mxu0 0.0
        %708 = vmatpush1.msra.mxu0 0.0
        %709 = vmatprep.subr.mxu0 0.0
        %710 = vmatpush1.msra.mxu0 0.0
        %711 = vmatprep.subr.mxu0 0.0
        %712 = vmatpush1.msra.mxu0 0.0
        %713 = vmatprep.subr.mxu0 0.0
        %714 = vmatpush1.msra.mxu0 0.0
        %715 = vmatprep.subr.mxu0 0.0
        %716 = vmatpush1.msra.mxu0 0.0
        %717 = vmatprep.subr.mxu0 0.0
        %718 = vmatpush1.msra.mxu0 0.0
        %719 = vmatprep.subr.mxu0 0.0
        %720 = vmatpush1.msra.mxu0 0.0
        %721 = vmatprep.subr.mxu0 0.0
        %722 = vmatpush1.msra.mxu0 0.0
        %723 = vmatprep.subr.mxu0 0.0
        %724 = vmatpush1.msra.mxu0 0.0
        %725 = vmatprep.subr.mxu0 0.0
        %726 = vmatpush1.msra.mxu0 0.0
        %727 = vmatprep.subr.mxu0 0.0
        %728 = vmatpush1.msra.mxu0 0.0
        %729 = vmatprep.subr.mxu0 0.0
        %730 = vmatpush1.msra.mxu0 0.0
        %731 = vmatprep.subr.mxu0 0.0
        %732 = vmatpush1.msra.mxu0 0.0
        %733 = vmatprep.subr.mxu0 0.0
        %734 = vmatpush1.msra.mxu0 0.0
        %735 = vmatprep.mubr.f32.mxu0 0.0
        %736 = vmatmul.mubr.f32.gmra.mrb[0].mxu0 %v640
        %v737 = vpop.f32.mrb[0].mxu0
        %v738 = vadd.f32 %v669, %v737
        %v739 = vpop.f32.mrb[0].mxu0
        %740 = vmatprep.mubr.f32.mxu0 0.0
        %741 = vmatmul.mubr.f32.gmra.mrb[0].mxu0 %v641
        %v742 = vpop.f32.mrb[0].mxu0
        %v743 = vadd.f32 %v669, %v742
        %v744 = vpop.f32.mrb[0].mxu0
        %745 = vmatprep.mubr.f32.mxu0 0.0
        %746 = vmatmul.mubr.f32.gmra.mrb[0].mxu0 %v642
        %v747 = vpop.f32.mrb[0].mxu0
        %v748 = vadd.f32 %v669, %v747
        %v749 = vpop.f32.mrb[0].mxu0
        %750 = vmatprep.mubr.f32.mxu0 0.0
        %751 = vmatmul.mubr.f32.gmra.mrb[0].mxu0 %v643
        %v752 = vpop.f32.mrb[0].mxu0
        %v753 = vadd.f32 %v669, %v752
        %v754 = vpop.f32.mrb[0].mxu0
        %755 = vmatprep.mubr.f32.mxu0 0.0
        %756 = vmatmul.mubr.f32.gmra.mrb[0].mxu0 %v644
        %v757 = vpop.f32.mrb[0].mxu0
        %v758 = vadd.f32 %v669, %v757
        %v759 = vpop.f32.mrb[0].mxu0
        %760 = vmatprep.mubr.f32.mxu0 0.0
        %761 = vmatmul.mubr.f32.gmra.mrb[0].mxu0 %v645
        %v762 = vpop.f32.mrb[0].mxu0
        %v763 = vadd.f32 %v669, %v762
        %v764 = vpop.f32.mrb[0].mxu0
        %765 = vmatprep.mubr.f32.mxu0 0.0
        %766 = vmatmul.mubr.f32.gmra.mrb[0].mxu0 %v646
        %v767 = vpop.f32.mrb[0].mxu0
        %v768 = vadd.f32 %v669, %v767
        %v769 = vpop.f32.mrb[0].mxu0
        %770 = vmatprep.mubr.f32.mxu0 0.0
        %771 = vmatmul.mubr.f32.gmra.mrb[0].mxu0 %v647
        %v772 = vpop.f32.mrb[0].mxu0
        %v773 = vadd.f32 %v669, %v772
        %v774 = vpop.f32.mrb[0].mxu0
        %775 = vdwg.mxu0
        %v776 = vld [vmem:[%s6] sm:$0xff]
        %v777 = vld [vmem:[%s6 + $0x8] sm:$0xff]
        %v778 = vld [vmem:[%s6 + $0x10] sm:$0xff]
        %v779 = vld [vmem:[%s6 + $0x18] sm:$0xff]
        %v780 = vld [vmem:[%s6 + $0x20] sm:$0xff]
        %v781 = vld [vmem:[%s6 + $0x28] sm:$0xff]
        %v782 = vld [vmem:[%s6 + $0x30] sm:$0xff]
        %v783 = vld [vmem:[%s6 + $0x38] sm:$0xff]
        %v784 = vld [vmem:[%s6 + $0x40] sm:$0xff]
        %v785 = vld [vmem:[%s6 + $0x48] sm:$0xff]
        %v786 = vld [vmem:[%s6 + $0x50] sm:$0xff]
        %v787 = vld [vmem:[%s6 + $0x58] sm:$0xff]
        %v788 = vld [vmem:[%s6 + $0x60] sm:$0xff]
        %v789 = vld [vmem:[%s6 + $0x68] sm:$0xff]
        %v790 = vld [vmem:[%s6 + $0x70] sm:$0xff]
        %v791 = vld [vmem:[%s6 + $0x78] sm:$0xff]
        %v792 = vld [vmem:[%s7] sm:$0x1]
        %v794 = vlaneseq
        %v795 = vshrl.u32 %v794, 7
        %v796 = vsub.s32 0, %v795
        %v797 = vrot.slane %v792, %v796
        %799 = vmatprep.subr.mxu0 0.0
        %800 = vmatpush1.msra.mxu0 %v776
        %801 = vmatprep.subr.mxu0 0.0
        %802 = vmatpush1.msra.mxu0 %v777
        %803 = vmatprep.subr.mxu0 0.0
        %804 = vmatpush1.msra.mxu0 %v778
        %805 = vmatprep.subr.mxu0 0.0
        %806 = vmatpush1.msra.mxu0 %v779
        %807 = vmatprep.subr.mxu0 0.0
        %808 = vmatpush1.msra.mxu0 %v780
        %809 = vmatprep.subr.mxu0 0.0
        %810 = vmatpush1.msra.mxu0 %v781
        %811 = vmatprep.subr.mxu0 0.0
        %812 = vmatpush1.msra.mxu0 %v782
        %813 = vmatprep.subr.mxu0 0.0
        %814 = vmatpush1.msra.mxu0 %v783
        %815 = vmatprep.subr.mxu0 0.0
        %816 = vmatpush1.msra.mxu0 %v784
        %817 = vmatprep.subr.mxu0 0.0
        %818 = vmatpush1.msra.mxu0 %v785
        %819 = vmatprep.subr.mxu0 0.0
        %820 = vmatpush1.msra.mxu0 %v786
        %821 = vmatprep.subr.mxu0 0.0
        %822 = vmatpush1.msra.mxu0 %v787
        %823 = vmatprep.subr.mxu0 0.0
        %824 = vmatpush1.msra.mxu0 %v788
        %825 = vmatprep.subr.mxu0 0.0
        %826 = vmatpush1.msra.mxu0 %v789
        %827 = vmatprep.subr.mxu0 0.0
        %828 = vmatpush1.msra.mxu0 %v790
        %829 = vmatprep.subr.mxu0 0.0
        %830 = vmatpush1.msra.mxu0 %v791
        %831 = vmatprep.subr.mxu0 0.0
        %832 = vmatpush1.msra.mxu0 0.0
        %833 = vmatprep.subr.mxu0 0.0
        %834 = vmatpush1.msra.mxu0 0.0
        %835 = vmatprep.subr.mxu0 0.0
        %836 = vmatpush1.msra.mxu0 0.0
        %837 = vmatprep.subr.mxu0 0.0
        %838 = vmatpush1.msra.mxu0 0.0
        %839 = vmatprep.subr.mxu0 0.0
        %840 = vmatpush1.msra.mxu0 0.0
        %841 = vmatprep.subr.mxu0 0.0
        %842 = vmatpush1.msra.mxu0 0.0
        %843 = vmatprep.subr.mxu0 0.0
        %844 = vmatpush1.msra.mxu0 0.0
        %845 = vmatprep.subr.mxu0 0.0
        %846 = vmatpush1.msra.mxu0 0.0
        %847 = vmatprep.subr.mxu0 0.0
        %848 = vmatpush1.msra.mxu0 0.0
        %849 = vmatprep.subr.mxu0 0.0
        %850 = vmatpush1.msra.mxu0 0.0
        %851 = vmatprep.subr.mxu0 0.0
        %852 = vmatpush1.msra.mxu0 0.0
        %853 = vmatprep.subr.mxu0 0.0
        %854 = vmatpush1.msra.mxu0 0.0
        %855 = vmatprep.subr.mxu0 0.0
        %856 = vmatpush1.msra.mxu0 0.0
        %857 = vmatprep.subr.mxu0 0.0
        %858 = vmatpush1.msra.mxu0 0.0
        %859 = vmatprep.subr.mxu0 0.0
        %860 = vmatpush1.msra.mxu0 0.0
        %861 = vmatprep.subr.mxu0 0.0
        %862 = vmatpush1.msra.mxu0 0.0
        %863 = vmatprep.mubr.f32.mxu0 0.0
        %864 = vmatmul.mubr.f32.gmra.mrb[0].mxu0 %v622
        %v865 = vpop.f32.mrb[0].mxu0
        %v866 = vadd.f32 %v797, %v865
        %v867 = vpop.f32.mrb[0].mxu0
        %868 = vmatprep.mubr.f32.mxu0 0.0
        %869 = vmatmul.mubr.f32.gmra.mrb[0].mxu0 %v623
        %v870 = vpop.f32.mrb[0].mxu0
        %v871 = vadd.f32 %v797, %v870
        %v872 = vpop.f32.mrb[0].mxu0
        %873 = vmatprep.mubr.f32.mxu0 0.0
        %874 = vmatmul.mubr.f32.gmra.mrb[0].mxu0 %v624
        %v875 = vpop.f32.mrb[0].mxu0
        %v876 = vadd.f32 %v797, %v875
        %v877 = vpop.f32.mrb[0].mxu0
        %878 = vmatprep.mubr.f32.mxu0 0.0
        %879 = vmatmul.mubr.f32.gmra.mrb[0].mxu0 %v625
        %v880 = vpop.f32.mrb[0].mxu0
        %v881 = vadd.f32 %v797, %v880
        %v882 = vpop.f32.mrb[0].mxu0
        %883 = vmatprep.mubr.f32.mxu0 0.0
        %884 = vmatmul.mubr.f32.gmra.mrb[0].mxu0 %v626
        %v885 = vpop.f32.mrb[0].mxu0
        %v886 = vadd.f32 %v797, %v885
        %v887 = vpop.f32.mrb[0].mxu0
        %888 = vmatprep.mubr.f32.mxu0 0.0
        %889 = vmatmul.mubr.f32.gmra.mrb[0].mxu0 %v627
        %v890 = vpop.f32.mrb[0].mxu0
        %v891 = vadd.f32 %v797, %v890
        %v892 = vpop.f32.mrb[0].mxu0
        %893 = vmatprep.mubr.f32.mxu0 0.0
        %894 = vmatmul.mubr.f32.gmra.mrb[0].mxu0 %v628
        %v895 = vpop.f32.mrb[0].mxu0
        %v896 = vadd.f32 %v797, %v895
        %v897 = vpop.f32.mrb[0].mxu0
        %898 = vmatprep.mubr.f32.mxu0 0.0
        %899 = vmatmul.mubr.f32.gmra.mrb[0].mxu0 %v629
        %v900 = vpop.f32.mrb[0].mxu0
        %v901 = vadd.f32 %v797, %v900
        %v902 = vpop.f32.mrb[0].mxu0
        %903 = vdwg.mxu0
        %904 = vmatprep.subr.mxu0 0.0
        %905 = vmatpush1.xpose.msra.mxu0 %v738
        %906 = vmatprep.subr.mxu0 0.0
        %907 = vmatpush1.xpose.msra.mxu0 %v743
        %908 = vmatprep.subr.mxu0 0.0
        %909 = vmatpush1.xpose.msra.mxu0 %v748
        %910 = vmatprep.subr.mxu0 0.0
        %911 = vmatpush1.xpose.msra.mxu0 %v753
        %912 = vmatprep.subr.mxu0 0.0
        %913 = vmatpush1.xpose.msra.mxu0 %v758
        %914 = vmatprep.subr.mxu0 0.0
        %915 = vmatpush1.xpose.msra.mxu0 %v763
        %916 = vmatprep.subr.mxu0 0.0
        %917 = vmatpush1.xpose.msra.mxu0 %v768
        %918 = vmatprep.subr.mxu0 0.0
        %919 = vmatpush1.xpose.msra.mxu0 %v773
        %920 = vmatprep.subr.mxu0 0.0
        %921 = vmatpush1.xpose.msra.mxu0 0.0
        %922 = vmatprep.subr.mxu0 0.0
        %923 = vmatpush1.xpose.msra.mxu0 0.0
        %924 = vmatprep.subr.mxu0 0.0
        %925 = vmatpush1.xpose.msra.mxu0 0.0
        %926 = vmatprep.subr.mxu0 0.0
        %927 = vmatpush1.xpose.msra.mxu0 0.0
        %928 = vmatprep.subr.mxu0 0.0
        %929 = vmatpush1.xpose.msra.mxu0 0.0
        %930 = vmatprep.subr.mxu0 0.0
        %931 = vmatpush1.xpose.msra.mxu0 0.0
        %932 = vmatprep.subr.mxu0 0.0
        %933 = vmatpush1.xpose.msra.mxu0 0.0
        %934 = vmatprep.subr.mxu0 0.0
        %935 = vmatpush1.xpose.msra.mxu0 0.0
        %936 = vmatprep.subr.mxu0 0.0
        %937 = vmatpush1.xpose.msra.mxu0 0.0
        %938 = vmatprep.subr.mxu0 0.0
        %939 = vmatpush1.xpose.msra.mxu0 0.0
        %940 = vmatprep.subr.mxu0 0.0
        %941 = vmatpush1.xpose.msra.mxu0 0.0
        %942 = vmatprep.subr.mxu0 0.0
        %943 = vmatpush1.xpose.msra.mxu0 0.0
        %944 = vmatprep.subr.mxu0 0.0
        %945 = vmatpush1.xpose.msra.mxu0 0.0
        %946 = vmatprep.subr.mxu0 0.0
        %947 = vmatpush1.xpose.msra.mxu0 0.0
        %948 = vmatprep.subr.mxu0 0.0
        %949 = vmatpush1.xpose.msra.mxu0 0.0
        %950 = vmatprep.subr.mxu0 0.0
        %951 = vmatpush1.xpose.msra.mxu0 0.0
        %952 = vmatprep.subr.mxu0 0.0
        %953 = vmatpush1.xpose.msra.mxu0 0.0
        %954 = vmatprep.subr.mxu0 0.0
        %955 = vmatpush1.xpose.msra.mxu0 0.0
        %956 = vmatprep.subr.mxu0 0.0
        %957 = vmatpush1.xpose.msra.mxu0 0.0
        %958 = vmatprep.subr.mxu0 0.0
        %959 = vmatpush1.xpose.msra.mxu0 0.0
        %960 = vmatprep.subr.mxu0 0.0
        %961 = vmatpush1.xpose.msra.mxu0 0.0
        %962 = vmatprep.subr.mxu0 0.0
        %963 = vmatpush1.xpose.msra.mxu0 0.0
        %964 = vmatprep.subr.mxu0 0.0
        %965 = vmatpush1.xpose.msra.mxu0 0.0
        %966 = vmatprep.subr.mxu0 0.0
        %967 = vmatpush1.xpose.msra.mxu0 0.0
        %968 = vmatprep.mubr.f32.mxu0 0.0
        %969 = vmatmul.mubr.f32.gmra.mrb[0].mxu0 %v630
        %v970 = vpop.f32.mrb[0].mxu0
        %v971 = vadd.f32 0.0, %v970
        %v972 = vpop.f32.mrb[0].mxu0
        %973 = vmatprep.mubr.f32.mxu0 0.0
        %974 = vmatmul.mubr.f32.gmra.mrb[0].mxu0 %v631
        %v975 = vpop.f32.mrb[0].mxu0
        %v976 = vadd.f32 0.0, %v975
        %v977 = vpop.f32.mrb[0].mxu0
        %978 = vdwg.mxu0
        %v979 = vmul.f32 %v971, 0.088388346
        %v980 = vmul.f32 %v976, 0.088388346
        %vm981 = vcmask 523264
        %v982 = vsel %vm981, %v979, -inf
        %983 = vmax.xlane.f32.xlu0 %v982
        %v984 = vpop.xlane.xlu0 %983
        %v985 = vsel %vm981, %v980, -inf
        %986 = vmax.xlane.f32.xlu0 %v985
        %v987 = vpop.xlane.xlu0 %986
        %v988 = vsub.f32 %v979, %v984
        %v989 = vsub.f32 %v980, %v987
        %v990 = vmul.f32 %v988, 1.442695
        %v991 = vpow.pop %v990
        %v992 = vmul.f32 %v989, 1.442695
        %v993 = vpow.pop %v992
        %v994 = vsel %vm981, %v991, 0.0
        %995 = vadd.xlane.f32.xlu0 %v994
        %v996 = vpop.xlane.xlu0 %995
        %v997 = vsel %vm981, %v993, 0.0
        %998 = vadd.xlane.f32.xlu0 %v997
        %v999 = vpop.xlane.xlu0 %998
        %v1000 = vrcp.pop %v996
        %v1001 = vmul.f32 1.0, %v1000
        %v1002 = vrcp.pop %v999
        %v1003 = vmul.f32 1.0, %v1002
        %v1004 = vmul.f32 %v991, %v1001
        %v1005 = vmul.f32 %v993, %v1003
        %v1007 = vsel %vm981, %v1004, 0
        %v1010 = vsel %vm981, %v1005, 0
        %1012 = vmatprep.subr.mxu0 0.0
        %1013 = vmatpush1.msra.mxu0 %v866
        %1014 = vmatprep.subr.mxu0 0.0
        %1015 = vmatpush1.msra.mxu0 %v871
        %1016 = vmatprep.subr.mxu0 0.0
        %1017 = vmatpush1.msra.mxu0 %v876
        %1018 = vmatprep.subr.mxu0 0.0
        %1019 = vmatpush1.msra.mxu0 %v881
        %1020 = vmatprep.subr.mxu0 0.0
        %1021 = vmatpush1.msra.mxu0 %v886
        %1022 = vmatprep.subr.mxu0 0.0
        %1023 = vmatpush1.msra.mxu0 %v891
        %1024 = vmatprep.subr.mxu0 0.0
        %1025 = vmatpush1.msra.mxu0 %v896
        %1026 = vmatprep.subr.mxu0 0.0
        %1027 = vmatpush1.msra.mxu0 %v901
        %1028 = vmatprep.subr.mxu0 0.0
        %1029 = vmatpush1.msra.mxu0 0.0
        %1030 = vmatprep.subr.mxu0 0.0
        %1031 = vmatpush1.msra.mxu0 0.0
        %1032 = vmatprep.subr.mxu0 0.0
        %1033 = vmatpush1.msra.mxu0 0.0
        %1034 = vmatprep.subr.mxu0 0.0
        %1035 = vmatpush1.msra.mxu0 0.0
        %1036 = vmatprep.subr.mxu0 0.0
        %1037 = vmatpush1.msra.mxu0 0.0
        %1038 = vmatprep.subr.mxu0 0.0
        %1039 = vmatpush1.msra.mxu0 0.0
        %1040 = vmatprep.subr.mxu0 0.0
        %1041 = vmatpush1.msra.mxu0 0.0
        %1042 = vmatprep.subr.mxu0 0.0
        %1043 = vmatpush1.msra.mxu0 0.0
        %1044 = vmatprep.subr.mxu0 0.0
        %1045 = vmatpush1.msra.mxu0 0.0
        %1046 = vmatprep.subr.mxu0 0.0
        %1047 = vmatpush1.msra.mxu0 0.0
        %1048 = vmatprep.subr.mxu0 0.0
        %1049 = vmatpush1.msra.mxu0 0.0
        %1050 = vmatprep.subr.mxu0 0.0
        %1051 = vmatpush1.msra.mxu0 0.0
        %1052 = vmatprep.subr.mxu0 0.0
        %1053 = vmatpush1.msra.mxu0 0.0
        %1054 = vmatprep.subr.mxu0 0.0
        %1055 = vmatpush1.msra.mxu0 0.0
        %1056 = vmatprep.subr.mxu0 0.0
        %1057 = vmatpush1.msra.mxu0 0.0
        %1058 = vmatprep.subr.mxu0 0.0
        %1059 = vmatpush1.msra.mxu0 0.0
        %1060 = vmatprep.subr.mxu0 0.0
        %1061 = vmatpush1.msra.mxu0 0.0
        %1062 = vmatprep.subr.mxu0 0.0
        %1063 = vmatpush1.msra.mxu0 0.0
        %1064 = vmatprep.subr.mxu0 0.0
        %1065 = vmatpush1.msra.mxu0 0.0
        %1066 = vmatprep.subr.mxu0 0.0
        %1067 = vmatpush1.msra.mxu0 0.0
        %1068 = vmatprep.subr.mxu0 0.0
        %1069 = vmatpush1.msra.mxu0 0.0
        %1070 = vmatprep.subr.mxu0 0.0
        %1071 = vmatpush1.msra.mxu0 0.0
        %1072 = vmatprep.subr.mxu0 0.0
        %1073 = vmatpush1.msra.mxu0 0.0
        %1074 = vmatprep.subr.mxu0 0.0
        %1075 = vmatpush1.msra.mxu0 0.0
        %1076 = vmatprep.mubr.f32.mxu0 0.0
        %1077 = vmatmul.mubr.f32.gmra.mrb[0].mxu0 %v1007
        %v1078 = vpop.f32.mrb[0].mxu0
        %v1079 = vadd.f32 %v630, %v1078
        %v1080 = vpop.f32.mrb[0].mxu0
        %1081 = vmatprep.mubr.f32.mxu0 0.0
        %1082 = vmatmul.mubr.f32.gmra.mrb[0].mxu0 %v1010
        %v1083 = vpop.f32.mrb[0].mxu0
        %v1084 = vadd.f32 %v631, %v1083
        %v1085 = vpop.f32.mrb[0].mxu0
        %1086 = vdwg.mxu0
        %v1087 = vld [vmem:[%s10] sm:$0x1]
        %v1088 = vld [vmem:[%s11] sm:$0x1]
        %1089 = vadd.xlane.f32.xlu0 %v1079
        %v1090 = vpop.xlane.xlu0 %1089
        %1091 = vadd.xlane.f32.xlu0 %v1084
        %v1092 = vpop.xlane.xlu0 %1091
        %v1093 = vrcp.pop 128.0
        %v1094 = vmul.f32 %v1090, %v1093
        %v1095 = vmul.f32 %v1092, %v1093
        %v1096 = vsub.f32 %v1079, %v1094
        %v1097 = vsub.f32 %v1084, %v1095
        %v1098 = vmul.f32 %v1096, %v1096
        %v1099 = vmul.f32 %v1097, %v1097
        %1100 = vadd.xlane.f32.xlu0 %v1098
        %v1101 = vpop.xlane.xlu0 %1100
        %1102 = vadd.xlane.f32.xlu0 %v1099
        %v1103 = vpop.xlane.xlu0 %1102
        %v1104 = vmul.f32 %v1101, %v1093
        %v1105 = vmul.f32 %v1103, %v1093
        %v1106 = vadd.f32 %v1104, 1e-05
        %v1107 = vadd.f32 %v1105, 1e-05
        %v1108 = vrsqrt.pop %v1106
        %v1109 = vrsqrt.pop %v1107
        %v1110 = vmul.f32 %v1096, %v1108
        %v1111 = vmul.f32 %v1097, %v1109
        %v1113 = vlaneseq
        %v1114 = vshrl.u32 %v1113, 7
        %v1115 = vsub.s32 0, %v1114
        %v1116 = vrot.slane %v1087, %v1115
        %v1118 = vmul.f32 %v1110, %v1116
        %v1119 = vmul.f32 %v1111, %v1116
        %v1121 = vlaneseq
        %v1122 = vshrl.u32 %v1121, 7
        %v1123 = vsub.s32 0, %v1122
        %v1124 = vrot.slane %v1088, %v1123
        %v1126 = vadd.f32 %v1118, %v1124
        %v1127 = vadd.f32 %v1119, %v1124
        %v1128 = vld [vmem:[%s3] sm:$0xff]
        %v1129 = vld [vmem:[%s3 + $0x8] sm:$0xff]
        %v1131 = vsel %vm981, %v1128, 0
        %v1134 = vsel %vm981, %v1129, 0
        %1136 = vmatprep.subr.mxu0 0.0
        %1137 = vmatpush1.msra.mxu0 %v622
        %1138 = vmatprep.subr.mxu0 0.0
        %1139 = vmatpush1.msra.mxu0 %v623
        %1140 = vmatprep.subr.mxu0 0.0
        %1141 = vmatpush1.msra.mxu0 %v624
        %1142 = vmatprep.subr.mxu0 0.0
        %1143 = vmatpush1.msra.mxu0 %v625
        %1144 = vmatprep.subr.mxu0 0.0
        %1145 = vmatpush1.msra.mxu0 %v626
        %1146 = vmatprep.subr.mxu0 0.0
        %1147 = vmatpush1.msra.mxu0 %v627
        %1148 = vmatprep.subr.mxu0 0.0
        %1149 = vmatpush1.msra.mxu0 %v628
        %1150 = vmatprep.subr.mxu0 0.0
        %1151 = vmatpush1.msra.mxu0 %v629
        %1152 = vmatprep.subr.mxu0 0.0
        %1153 = vmatpush1.msra.mxu0 0.0
        %1154 = vmatprep.subr.mxu0 0.0
        %1155 = vmatpush1.msra.mxu0 0.0
        %1156 = vmatprep.subr.mxu0 0.0
        %1157 = vmatpush1.msra.mxu0 0.0
        %1158 = vmatprep.subr.mxu0 0.0
        %1159 = vmatpush1.msra.mxu0 0.0
        %1160 = vmatprep.subr.mxu0 0.0
        %1161 = vmatpush1.msra.mxu0 0.0
        %1162 = vmatprep.subr.mxu0 0.0
        %1163 = vmatpush1.msra.mxu0 0.0
        %1164 = vmatprep.subr.mxu0 0.0
        %1165 = vmatpush1.msra.mxu0 0.0
        %1166 = vmatprep.subr.mxu0 0.0
        %1167 = vmatpush1.msra.mxu0 0.0
        %1168 = vmatprep.subr.mxu0 0.0
        %1169 = vmatpush1.msra.mxu0 0.0
        %1170 = vmatprep.subr.mxu0 0.0
        %1171 = vmatpush1.msra.mxu0 0.0
        %1172 = vmatprep.subr.mxu0 0.0
        %1173 = vmatpush1.msra.mxu0 0.0
        %1174 = vmatprep.subr.mxu0 0.0
        %1175 = vmatpush1.msra.mxu0 0.0
        %1176 = vmatprep.subr.mxu0 0.0
        %1177 = vmatpush1.msra.mxu0 0.0
        %1178 = vmatprep.subr.mxu0 0.0
        %1179 = vmatpush1.msra.mxu0 0.0
        %1180 = vmatprep.subr.mxu0 0.0
        %1181 = vmatpush1.msra.mxu0 0.0
        %1182 = vmatprep.subr.mxu0 0.0
        %1183 = vmatpush1.msra.mxu0 0.0
        %1184 = vmatprep.subr.mxu0 0.0
        %1185 = vmatpush1.msra.mxu0 0.0
        %1186 = vmatprep.subr.mxu0 0.0
        %1187 = vmatpush1.msra.mxu0 0.0
        %1188 = vmatprep.subr.mxu0 0.0
        %1189 = vmatpush1.msra.mxu0 0.0
        %1190 = vmatprep.subr.mxu0 0.0
        %1191 = vmatpush1.msra.mxu0 0.0
        %1192 = vmatprep.subr.mxu0 0.0
        %1193 = vmatpush1.msra.mxu0 0.0
        %1194 = vmatprep.subr.mxu0 0.0
        %1195 = vmatpush1.msra.mxu0 0.0
        %1196 = vmatprep.subr.mxu0 0.0
        %1197 = vmatpush1.msra.mxu0 0.0
        %1198 = vmatprep.subr.mxu0 0.0
        %1199 = vmatpush1.msra.mxu0 0.0
        %1200 = vmatprep.mubr.f32.mxu0 0.0
        %1201 = vmatmul.mubr.f32.gmra.mrb[0].mxu0 %v1131
        %v1202 = vpop.f32.mrb[0].mxu0
        %v1203 = vadd.f32 0.0, %v1202
        %v1204 = vpop.f32.mrb[0].mxu0
        %1205 = vmatprep.mubr.f32.mxu0 0.0
        %1206 = vmatmul.mubr.f32.gmra.mrb[0].mxu0 %v1134
        %v1207 = vpop.f32.mrb[0].mxu0
        %v1208 = vadd.f32 0.0, %v1207
        %v1209 = vpop.f32.mrb[0].mxu0
        %1210 = vdwg.mxu0
        %v1211 = vld [vmem:[%s8] sm:$0xff]
        %v1212 = vld [vmem:[%s8 + $0x8] sm:$0xff]
        %v1213 = vld [vmem:[%s8 + $0x10] sm:$0xff]
        %v1214 = vld [vmem:[%s8 + $0x18] sm:$0xff]
        %v1215 = vld [vmem:[%s8 + $0x20] sm:$0xff]
        %v1216 = vld [vmem:[%s8 + $0x28] sm:$0xff]
        %v1217 = vld [vmem:[%s8 + $0x30] sm:$0xff]
        %v1218 = vld [vmem:[%s8 + $0x38] sm:$0xff]
        %v1219 = vld [vmem:[%s8 + $0x40] sm:$0xff]
        %v1220 = vld [vmem:[%s8 + $0x48] sm:$0xff]
        %v1221 = vld [vmem:[%s8 + $0x50] sm:$0xff]
        %v1222 = vld [vmem:[%s8 + $0x58] sm:$0xff]
        %v1223 = vld [vmem:[%s8 + $0x60] sm:$0xff]
        %v1224 = vld [vmem:[%s8 + $0x68] sm:$0xff]
        %v1225 = vld [vmem:[%s8 + $0x70] sm:$0xff]
        %v1226 = vld [vmem:[%s8 + $0x78] sm:$0xff]
        %1227 = vmatprep.subr.mxu0 0.0
        %1228 = vmatpush1.msra.mxu0 %v1211
        %1229 = vmatprep.subr.mxu0 0.0
        %1230 = vmatpush1.msra.mxu0 %v1212
        %1231 = vmatprep.subr.mxu0 0.0
        %1232 = vmatpush1.msra.mxu0 %v1213
        %1233 = vmatprep.subr.mxu0 0.0
        %1234 = vmatpush1.msra.mxu0 %v1214
        %1235 = vmatprep.subr.mxu0 0.0
        %1236 = vmatpush1.msra.mxu0 %v1215
        %1237 = vmatprep.subr.mxu0 0.0
        %1238 = vmatpush1.msra.mxu0 %v1216
        %1239 = vmatprep.subr.mxu0 0.0
        %1240 = vmatpush1.msra.mxu0 %v1217
        %1241 = vmatprep.subr.mxu0 0.0
        %1242 = vmatpush1.msra.mxu0 %v1218
        %1243 = vmatprep.subr.mxu0 0.0
        %1244 = vmatpush1.msra.mxu0 %v1219
        %1245 = vmatprep.subr.mxu0 0.0
        %1246 = vmatpush1.msra.mxu0 %v1220
        %1247 = vmatprep.subr.mxu0 0.0
        %1248 = vmatpush1.msra.mxu0 %v1221
        %1249 = vmatprep.subr.mxu0 0.0
        %1250 = vmatpush1.msra.mxu0 %v1222
        %1251 = vmatprep.subr.mxu0 0.0
        %1252 = vmatpush1.msra.mxu0 %v1223
        %1253 = vmatprep.subr.mxu0 0.0
        %1254 = vmatpush1.msra.mxu0 %v1224
        %1255 = vmatprep.subr.mxu0 0.0
        %1256 = vmatpush1.msra.mxu0 %v1225
        %1257 = vmatprep.subr.mxu0 0.0
        %1258 = vmatpush1.msra.mxu0 %v1226
        %1259 = vmatprep.subr.mxu0 0.0
        %1260 = vmatpush1.msra.mxu0 0.0
        %1261 = vmatprep.subr.mxu0 0.0
        %1262 = vmatpush1.msra.mxu0 0.0
        %1263 = vmatprep.subr.mxu0 0.0
        %1264 = vmatpush1.msra.mxu0 0.0
        %1265 = vmatprep.subr.mxu0 0.0
        %1266 = vmatpush1.msra.mxu0 0.0
        %1267 = vmatprep.subr.mxu0 0.0
        %1268 = vmatpush1.msra.mxu0 0.0
        %1269 = vmatprep.subr.mxu0 0.0
        %1270 = vmatpush1.msra.mxu0 0.0
        %1271 = vmatprep.subr.mxu0 0.0
        %1272 = vmatpush1.msra.mxu0 0.0
        %1273 = vmatprep.subr.mxu0 0.0
        %1274 = vmatpush1.msra.mxu0 0.0
        %1275 = vmatprep.subr.mxu0 0.0
        %1276 = vmatpush1.msra.mxu0 0.0
        %1277 = vmatprep.subr.mxu0 0.0
        %1278 = vmatpush1.msra.mxu0 0.0
        %1279 = vmatprep.subr.mxu0 0.0
        %1280 = vmatpush1.msra.mxu0 0.0
        %1281 = vmatprep.subr.mxu0 0.0
        %1282 = vmatpush1.msra.mxu0 0.0
        %1283 = vmatprep.subr.mxu0 0.0
        %1284 = vmatpush1.msra.mxu0 0.0
        %1285 = vmatprep.subr.mxu0 0.0
        %1286 = vmatpush1.msra.mxu0 0.0
        %1287 = vmatprep.subr.mxu0 0.0
        %1288 = vmatpush1.msra.mxu0 0.0
        %1289 = vmatprep.subr.mxu0 0.0
        %1290 = vmatpush1.msra.mxu0 0.0
        %1291 = vmatprep.mubr.f32.mxu0 0.0
        %1292 = vmatmul.mubr.f32.gmra.mrb[0].mxu0 %v1203
        %v1293 = vpop.f32.mrb[0].mxu0
        %v1294 = vadd.f32 0.0, %v1293
        %v1295 = vpop.f32.mrb[0].mxu0
        %1296 = vmatprep.mubr.f32.mxu0 0.0
        %1297 = vmatmul.mubr.f32.gmra.mrb[0].mxu0 %v1208
        %v1298 = vpop.f32.mrb[0].mxu0
        %v1299 = vadd.f32 0.0, %v1298
        %v1300 = vpop.f32.mrb[0].mxu0
        %1301 = vdwg.mxu0
        %v1302 = vadd.f32 %v1126, %v1294
        %v1303 = vadd.f32 %v1127, %v1299
        %v1304 = vld [vmem:[%s9] sm:$0x1]
        %v1306 = vlaneseq
        %v1307 = vshrl.u32 %v1306, 7
        %v1308 = vsub.s32 0, %v1307
        %v1309 = vrot.slane %v1304, %v1308
        %v1311 = vadd.f32 %v1302, %v1309
        %v1312 = vadd.f32 %v1303, %v1309
        %v1313 = vld [vmem:[%s12] sm:$0xff]
        %v1314 = vld [vmem:[%s12 + $0x8] sm:$0xff]
        %v1315 = vld [vmem:[%s12 + $0x10] sm:$0xff]
        %v1316 = vld [vmem:[%s12 + $0x18] sm:$0xff]
        %v1317 = vld [vmem:[%s12 + $0x20] sm:$0xff]
        %v1318 = vld [vmem:[%s12 + $0x28] sm:$0xff]
        %v1319 = vld [vmem:[%s12 + $0x30] sm:$0xff]
        %v1320 = vld [vmem:[%s12 + $0x38] sm:$0xff]
        %v1321 = vld [vmem:[%s12 + $0x40] sm:$0xff]
        %v1322 = vld [vmem:[%s12 + $0x48] sm:$0xff]
        %v1323 = vld [vmem:[%s12 + $0x50] sm:$0xff]
        %v1324 = vld [vmem:[%s12 + $0x58] sm:$0xff]
        %v1325 = vld [vmem:[%s12 + $0x60] sm:$0xff]
        %v1326 = vld [vmem:[%s12 + $0x68] sm:$0xff]
        %v1327 = vld [vmem:[%s12 + $0x70] sm:$0xff]
        %v1328 = vld [vmem:[%s12 + $0x78] sm:$0xff]
        %v1329 = vld [vmem:[%s12 + $0x80] sm:$0xff]
        %v1330 = vld [vmem:[%s12 + $0x88] sm:$0xff]
        %v1331 = vld [vmem:[%s12 + $0x90] sm:$0xff]
        %v1332 = vld [vmem:[%s12 + $0x98] sm:$0xff]
        %v1333 = vld [vmem:[%s12 + $0xa0] sm:$0xff]
        %v1334 = vld [vmem:[%s12 + $0xa8] sm:$0xff]
        %v1335 = vld [vmem:[%s12 + $0xb0] sm:$0xff]
        %v1336 = vld [vmem:[%s12 + $0xb8] sm:$0xff]
        %v1337 = vld [vmem:[%s12 + $0xc0] sm:$0xff]
        %v1338 = vld [vmem:[%s12 + $0xc8] sm:$0xff]
        %v1339 = vld [vmem:[%s12 + $0xd0] sm:$0xff]
        %v1340 = vld [vmem:[%s12 + $0xd8] sm:$0xff]
        %v1341 = vld [vmem:[%s12 + $0xe0] sm:$0xff]
        %v1342 = vld [vmem:[%s12 + $0xe8] sm:$0xff]
        %v1343 = vld [vmem:[%s12 + $0xf0] sm:$0xff]
        %v1344 = vld [vmem:[%s12 + $0xf8] sm:$0xff]
        %v1345 = vld [vmem:[%s12 + $0x100] sm:$0xff]
        %v1346 = vld [vmem:[%s12 + $0x108] sm:$0xff]
        %v1347 = vld [vmem:[%s12 + $0x110] sm:$0xff]
        %v1348 = vld [vmem:[%s12 + $0x118] sm:$0xff]
        %v1349 = vld [vmem:[%s12 + $0x120] sm:$0xff]
        %v1350 = vld [vmem:[%s12 + $0x128] sm:$0xff]
        %v1351 = vld [vmem:[%s12 + $0x130] sm:$0xff]
        %v1352 = vld [vmem:[%s12 + $0x138] sm:$0xff]
        %v1353 = vld [vmem:[%s12 + $0x140] sm:$0xff]
        %v1354 = vld [vmem:[%s12 + $0x148] sm:$0xff]
        %v1355 = vld [vmem:[%s12 + $0x150] sm:$0xff]
        %v1356 = vld [vmem:[%s12 + $0x158] sm:$0xff]
        %v1357 = vld [vmem:[%s12 + $0x160] sm:$0xff]
        %v1358 = vld [vmem:[%s12 + $0x168] sm:$0xff]
        %v1359 = vld [vmem:[%s12 + $0x170] sm:$0xff]
        %v1360 = vld [vmem:[%s12 + $0x178] sm:$0xff]
        %v1361 = vld [vmem:[%s12 + $0x180] sm:$0xff]
        %v1362 = vld [vmem:[%s12 + $0x188] sm:$0xff]
        %v1363 = vld [vmem:[%s12 + $0x190] sm:$0xff]
        %v1364 = vld [vmem:[%s12 + $0x198] sm:$0xff]
        %v1365 = vld [vmem:[%s12 + $0x1a0] sm:$0xff]
        %v1366 = vld [vmem:[%s12 + $0x1a8] sm:$0xff]
        %v1367 = vld [vmem:[%s12 + $0x1b0] sm:$0xff]
        %v1368 = vld [vmem:[%s12 + $0x1b8] sm:$0xff]
        %v1369 = vld [vmem:[%s12 + $0x1c0] sm:$0xff]
        %v1370 = vld [vmem:[%s12 + $0x1c8] sm:$0xff]
        %v1371 = vld [vmem:[%s12 + $0x1d0] sm:$0xff]
        %v1372 = vld [vmem:[%s12 + $0x1d8] sm:$0xff]
        %v1373 = vld [vmem:[%s12 + $0x1e0] sm:$0xff]
        %v1374 = vld [vmem:[%s12 + $0x1e8] sm:$0xff]
        %v1375 = vld [vmem:[%s12 + $0x1f0] sm:$0xff]
        %v1376 = vld [vmem:[%s12 + $0x1f8] sm:$0xff]
        %v1377 = vld [vmem:[%s13] sm:$0xf]
        %v1379 = vlaneseq
        %v1380 = vshrl.u32 %v1379, 7
        %v1381 = vsub.s32 0, %v1380
        %v1382 = vrot.slane %v1377, %v1381
        %v1383 = vlaneseq
        %v1384 = vshrl.u32 %v1383, 7
        %v1385 = vsub.s32 1, %v1384
        %v1386 = vrot.slane %v1377, %v1385
        %v1387 = vlaneseq
        %v1388 = vshrl.u32 %v1387, 7
        %v1389 = vsub.s32 2, %v1388
        %v1390 = vrot.slane %v1377, %v1389
        %v1391 = vlaneseq
        %v1392 = vshrl.u32 %v1391, 7
        %v1393 = vsub.s32 3, %v1392
        %v1394 = vrot.slane %v1377, %v1393
        %1399 = vmatprep.subr.mxu0 %v1314
        %1400 = vmatpush1.msra.mxu0 %v1313
        %1401 = vmatprep.subr.mxu0 %v1318
        %1402 = vmatpush1.msra.mxu0 %v1317
        %1403 = vmatprep.subr.mxu0 %v1322
        %1404 = vmatpush1.msra.mxu0 %v1321
        %1405 = vmatprep.subr.mxu0 %v1326
        %1406 = vmatpush1.msra.mxu0 %v1325
        %1407 = vmatprep.subr.mxu0 %v1330
        %1408 = vmatpush1.msra.mxu0 %v1329
        %1409 = vmatprep.subr.mxu0 %v1334
        %1410 = vmatpush1.msra.mxu0 %v1333
        %1411 = vmatprep.subr.mxu0 %v1338
        %1412 = vmatpush1.msra.mxu0 %v1337
        %1413 = vmatprep.subr.mxu0 %v1342
        %1414 = vmatpush1.msra.mxu0 %v1341
        %1415 = vmatprep.subr.mxu0 %v1346
        %1416 = vmatpush1.msra.mxu0 %v1345
        %1417 = vmatprep.subr.mxu0 %v1350
        %1418 = vmatpush1.msra.mxu0 %v1349
        %1419 = vmatprep.subr.mxu0 %v1354
        %1420 = vmatpush1.msra.mxu0 %v1353
        %1421 = vmatprep.subr.mxu0 %v1358
        %1422 = vmatpush1.msra.mxu0 %v1357
        %1423 = vmatprep.subr.mxu0 %v1362
        %1424 = vmatpush1.msra.mxu0 %v1361
        %1425 = vmatprep.subr.mxu0 %v1366
        %1426 = vmatpush1.msra.mxu0 %v1365
        %1427 = vmatprep.subr.mxu0 %v1370
        %1428 = vmatpush1.msra.mxu0 %v1369
        %1429 = vmatprep.subr.mxu0 %v1374
        %1430 = vmatpush1.msra.mxu0 %v1373
        %1431 = vmatprep.subr.mxu0 0.0
        %1432 = vmatpush1.msra.mxu0 0.0
        %1433 = vmatprep.subr.mxu0 0.0
        %1434 = vmatpush1.msra.mxu0 0.0
        %1435 = vmatprep.subr.mxu0 0.0
        %1436 = vmatpush1.msra.mxu0 0.0
        %1437 = vmatprep.subr.mxu0 0.0
        %1438 = vmatpush1.msra.mxu0 0.0
        %1439 = vmatprep.subr.mxu0 0.0
        %1440 = vmatpush1.msra.mxu0 0.0
        %1441 = vmatprep.subr.mxu0 0.0
        %1442 = vmatpush1.msra.mxu0 0.0
        %1443 = vmatprep.subr.mxu0 0.0
        %1444 = vmatpush1.msra.mxu0 0.0
        %1445 = vmatprep.subr.mxu0 0.0
        %1446 = vmatpush1.msra.mxu0 0.0
        %1447 = vmatprep.subr.mxu0 0.0
        %1448 = vmatpush1.msra.mxu0 0.0
        %1449 = vmatprep.subr.mxu0 0.0
        %1450 = vmatpush1.msra.mxu0 0.0
        %1451 = vmatprep.subr.mxu0 0.0
        %1452 = vmatpush1.msra.mxu0 0.0
        %1453 = vmatprep.subr.mxu0 0.0
        %1454 = vmatpush1.msra.mxu0 0.0
        %1455 = vmatprep.subr.mxu0 0.0
        %1456 = vmatpush1.msra.mxu0 0.0
        %1457 = vmatprep.subr.mxu0 0.0
        %1458 = vmatpush1.msra.mxu0 0.0
        %1459 = vmatprep.subr.mxu0 0.0
        %1460 = vmatpush1.msra.mxu0 0.0
        %1461 = vmatprep.subr.mxu0 0.0
        %1462 = vmatpush1.msra.mxu0 0.0
        %1463 = vmatprep.mubr.f32.mxu0 0.0
        %1464 = vmatmul.mubr.f32.gmra.mrb[0].mxu0 %v1311
        %v1465 = vpop.f32.mrb[0].mxu0
        %v1466 = vadd.f32 %v1382, %v1465
        %v1467 = vpop.f32.mrb[0].mxu0
        %v1468 = vadd.f32 %v1386, %v1467
        %1469 = vmatprep.mubr.f32.mxu0 0.0
        %1470 = vmatmul.mubr.f32.gmra.mrb[0].mxu0 %v1312
        %v1471 = vpop.f32.mrb[0].mxu0
        %v1472 = vadd.f32 %v1382, %v1471
        %v1473 = vpop.f32.mrb[0].mxu0
        %v1474 = vadd.f32 %v1386, %v1473
        %1475 = vdwg.mxu0
        %1476 = vmatprep.subr.mxu0 %v1316
        %1477 = vmatpush1.msra.mxu0 %v1315
        %1478 = vmatprep.subr.mxu0 %v1320
        %1479 = vmatpush1.msra.mxu0 %v1319
        %1480 = vmatprep.subr.mxu0 %v1324
        %1481 = vmatpush1.msra.mxu0 %v1323
        %1482 = vmatprep.subr.mxu0 %v1328
        %1483 = vmatpush1.msra.mxu0 %v1327
        %1484 = vmatprep.subr.mxu0 %v1332
        %1485 = vmatpush1.msra.mxu0 %v1331
        %1486 = vmatprep.subr.mxu0 %v1336
        %1487 = vmatpush1.msra.mxu0 %v1335
        %1488 = vmatprep.subr.mxu0 %v1340
        %1489 = vmatpush1.msra.mxu0 %v1339
        %1490 = vmatprep.subr.mxu0 %v1344
        %1491 = vmatpush1.msra.mxu0 %v1343
        %1492 = vmatprep.subr.mxu0 %v1348
        %1493 = vmatpush1.msra.mxu0 %v1347
        %1494 = vmatprep.subr.mxu0 %v1352
        %1495 = vmatpush1.msra.mxu0 %v1351
        %1496 = vmatprep.subr.mxu0 %v1356
        %1497 = vmatpush1.msra.mxu0 %v1355
        %1498 = vmatprep.subr.mxu0 %v1360
        %1499 = vmatpush1.msra.mxu0 %v1359
        %1500 = vmatprep.subr.mxu0 %v1364
        %1501 = vmatpush1.msra.mxu0 %v1363
        %1502 = vmatprep.subr.mxu0 %v1368
        %1503 = vmatpush1.msra.mxu0 %v1367
        %1504 = vmatprep.subr.mxu0 %v1372
        %1505 = vmatpush1.msra.mxu0 %v1371
        %1506 = vmatprep.subr.mxu0 %v1376
        %1507 = vmatpush1.msra.mxu0 %v1375
        %1508 = vmatprep.subr.mxu0 0.0
        %1509 = vmatpush1.msra.mxu0 0.0
        %1510 = vmatprep.subr.mxu0 0.0
        %1511 = vmatpush1.msra.mxu0 0.0
        %1512 = vmatprep.subr.mxu0 0.0
        %1513 = vmatpush1.msra.mxu0 0.0
        %1514 = vmatprep.subr.mxu0 0.0
        %1515 = vmatpush1.msra.mxu0 0.0
        %1516 = vmatprep.subr.mxu0 0.0
        %1517 = vmatpush1.msra.mxu0 0.0
        %1518 = vmatprep.subr.mxu0 0.0
        %1519 = vmatpush1.msra.mxu0 0.0
        %1520 = vmatprep.subr.mxu0 0.0
        %1521 = vmatpush1.msra.mxu0 0.0
        %1522 = vmatprep.subr.mxu0 0.0
        %1523 = vmatpush1.msra.mxu0 0.0
        %1524 = vmatprep.subr.mxu0 0.0
        %1525 = vmatpush1.msra.mxu0 0.0
        %1526 = vmatprep.subr.mxu0 0.0
        %1527 = vmatpush1.msra.mxu0 0.0
        %1528 = vmatprep.subr.mxu0 0.0
        %1529 = vmatpush1.msra.mxu0 0.0
        %1530 = vmatprep.subr.mxu0 0.0
        %1531 = vmatpush1.msra.mxu0 0.0
        %1532 = vmatprep.subr.mxu0 0.0
        %1533 = vmatpush1.msra.mxu0 0.0
        %1534 = vmatprep.subr.mxu0 0.0
        %1535 = vmatpush1.msra.mxu0 0.0
        %1536 = vmatprep.subr.mxu0 0.0
        %1537 = vmatpush1.msra.mxu0 0.0
        %1538 = vmatprep.subr.mxu0 0.0
        %1539 = vmatpush1.msra.mxu0 0.0
        %1540 = vmatprep.mubr.f32.mxu0 0.0
        %1541 = vmatmul.mubr.f32.gmra.mrb[0].mxu0 %v1311
        %v1542 = vpop.f32.mrb[0].mxu0
        %v1543 = vadd.f32 %v1390, %v1542
        %v1544 = vpop.f32.mrb[0].mxu0
        %v1545 = vadd.f32 %v1394, %v1544
        %1546 = vmatprep.mubr.f32.mxu0 0.0
        %1547 = vmatmul.mubr.f32.gmra.mrb[0].mxu0 %v1312
        %v1548 = vpop.f32.mrb[0].mxu0
        %v1549 = vadd.f32 %v1390, %v1548
        %v1550 = vpop.f32.mrb[0].mxu0
        %v1551 = vadd.f32 %v1394, %v1550
        %1552 = vdwg.mxu0
        %v1553 = vmul.f32 %v1466, 0.5
        %v1554 = vmul.f32 %v1468, 0.5
        %v1555 = vmul.f32 %v1543, 0.5
        %v1556 = vmul.f32 %v1545, 0.5
        %v1557 = vmul.f32 %v1472, 0.5
        %v1558 = vmul.f32 %v1474, 0.5
        %v1559 = vmul.f32 %v1549, 0.5
        %v1560 = vmul.f32 %v1551, 0.5
        %v1561 = vmul.f32 %v1466, 0.044715
        %v1562 = vmul.f32 %v1468, 0.044715
        %v1563 = vmul.f32 %v1543, 0.044715
        %v1564 = vmul.f32 %v1545, 0.044715
        %v1565 = vmul.f32 %v1472, 0.044715
        %v1566 = vmul.f32 %v1474, 0.044715
        %v1567 = vmul.f32 %v1549, 0.044715
        %v1568 = vmul.f32 %v1551, 0.044715
        %v1569 = vmul.f32 %v1561, %v1466
        %v1570 = vmul.f32 %v1562, %v1468
        %v1571 = vmul.f32 %v1563, %v1543
        %v1572 = vmul.f32 %v1564, %v1545
        %v1573 = vmul.f32 %v1565, %v1472
        %v1574 = vmul.f32 %v1566, %v1474
        %v1575 = vmul.f32 %v1567, %v1549
        %v1576 = vmul.f32 %v1568, %v1551
        %v1577 = vmul.f32 %v1569, %v1466
        %v1578 = vmul.f32 %v1570, %v1468
        %v1579 = vmul.f32 %v1571, %v1543
        %v1580 = vmul.f32 %v1572, %v1545
        %v1581 = vmul.f32 %v1573, %v1472
        %v1582 = vmul.f32 %v1574, %v1474
        %v1583 = vmul.f32 %v1575, %v1549
        %v1584 = vmul.f32 %v1576, %v1551
        %v1585 = vadd.f32 %v1466, %v1577
        %v1586 = vadd.f32 %v1468, %v1578
        %v1587 = vadd.f32 %v1543, %v1579
        %v1588 = vadd.f32 %v1545, %v1580
        %v1589 = vadd.f32 %v1472, %v1581
        %v1590 = vadd.f32 %v1474, %v1582
        %v1591 = vadd.f32 %v1549, %v1583
        %v1592 = vadd.f32 %v1551, %v1584
        %v1593 = vmul.f32 %v1585, 0.7978846
        %v1594 = vmul.f32 %v1586, 0.7978846
        %v1595 = vmul.f32 %v1587, 0.7978846
        %v1596 = vmul.f32 %v1588, 0.7978846
        %v1597 = vmul.f32 %v1589, 0.7978846
        %v1598 = vmul.f32 %v1590, 0.7978846
        %v1599 = vmul.f32 %v1591, 0.7978846
        %v1600 = vmul.f32 %v1592, 0.7978846
        %v1601 = vtanh.pop %v1593
        %v1602 = vtanh.pop %v1594
        %v1603 = vtanh.pop %v1595
        %v1604 = vtanh.pop %v1596
        %v1605 = vtanh.pop %v1597
        %v1606 = vtanh.pop %v1598
        %v1607 = vtanh.pop %v1599
        %v1608 = vtanh.pop %v1600
        %v1609 = vadd.f32 %v1601, 1.0
        %v1610 = vadd.f32 %v1602, 1.0
        %v1611 = vadd.f32 %v1603, 1.0
        %v1612 = vadd.f32 %v1604, 1.0
        %v1613 = vadd.f32 %v1605, 1.0
        %v1614 = vadd.f32 %v1606, 1.0
        %v1615 = vadd.f32 %v1607, 1.0
        %v1616 = vadd.f32 %v1608, 1.0
        %v1617 = vmul.f32 %v1553, %v1609
        %v1618 = vmul.f32 %v1554, %v1610
        %v1619 = vmul.f32 %v1555, %v1611
        %v1620 = vmul.f32 %v1556, %v1612
        %v1621 = vmul.f32 %v1557, %v1613
        %v1622 = vmul.f32 %v1558, %v1614
        %v1623 = vmul.f32 %v1559, %v1615
        %v1624 = vmul.f32 %v1560, %v1616
        %v1625 = vld [vmem:[%s14] sm:$0xff]
        %v1626 = vld [vmem:[%s14 + $0x8] sm:$0xff]
        %v1627 = vld [vmem:[%s14 + $0x10] sm:$0xff]
        %v1628 = vld [vmem:[%s14 + $0x18] sm:$0xff]
        %v1629 = vld [vmem:[%s14 + $0x20] sm:$0xff]
        %v1630 = vld [vmem:[%s14 + $0x28] sm:$0xff]
        %v1631 = vld [vmem:[%s14 + $0x30] sm:$0xff]
        %v1632 = vld [vmem:[%s14 + $0x38] sm:$0xff]
        %v1633 = vld [vmem:[%s14 + $0x40] sm:$0xff]
        %v1634 = vld [vmem:[%s14 + $0x48] sm:$0xff]
        %v1635 = vld [vmem:[%s14 + $0x50] sm:$0xff]
        %v1636 = vld [vmem:[%s14 + $0x58] sm:$0xff]
        %v1637 = vld [vmem:[%s14 + $0x60] sm:$0xff]
        %v1638 = vld [vmem:[%s14 + $0x68] sm:$0xff]
        %v1639 = vld [vmem:[%s14 + $0x70] sm:$0xff]
        %v1640 = vld [vmem:[%s14 + $0x78] sm:$0xff]
        %v1641 = vld [vmem:[%s14 + $0x80] sm:$0xff]
        %v1642 = vld [vmem:[%s14 + $0x88] sm:$0xff]
        %v1643 = vld [vmem:[%s14 + $0x90] sm:$0xff]
        %v1644 = vld [vmem:[%s14 + $0x98] sm:$0xff]
        %v1645 = vld [vmem:[%s14 + $0xa0] sm:$0xff]
        %v1646 = vld [vmem:[%s14 + $0xa8] sm:$0xff]
        %v1647 = vld [vmem:[%s14 + $0xb0] sm:$0xff]
        %v1648 = vld [vmem:[%s14 + $0xb8] sm:$0xff]
        %v1649 = vld [vmem:[%s14 + $0xc0] sm:$0xff]
        %v1650 = vld [vmem:[%s14 + $0xc8] sm:$0xff]
        %v1651 = vld [vmem:[%s14 + $0xd0] sm:$0xff]
        %v1652 = vld [vmem:[%s14 + $0xd8] sm:$0xff]
        %v1653 = vld [vmem:[%s14 + $0xe0] sm:$0xff]
        %v1654 = vld [vmem:[%s14 + $0xe8] sm:$0xff]
        %v1655 = vld [vmem:[%s14 + $0xf0] sm:$0xff]
        %v1656 = vld [vmem:[%s14 + $0xf8] sm:$0xff]
        %v1657 = vld [vmem:[%s14 + $0x100] sm:$0xff]
        %v1658 = vld [vmem:[%s14 + $0x108] sm:$0xff]
        %v1659 = vld [vmem:[%s14 + $0x110] sm:$0xff]
        %v1660 = vld [vmem:[%s14 + $0x118] sm:$0xff]
        %v1661 = vld [vmem:[%s14 + $0x120] sm:$0xff]
        %v1662 = vld [vmem:[%s14 + $0x128] sm:$0xff]
        %v1663 = vld [vmem:[%s14 + $0x130] sm:$0xff]
        %v1664 = vld [vmem:[%s14 + $0x138] sm:$0xff]
        %v1665 = vld [vmem:[%s14 + $0x140] sm:$0xff]
        %v1666 = vld [vmem:[%s14 + $0x148] sm:$0xff]
        %v1667 = vld [vmem:[%s14 + $0x150] sm:$0xff]
        %v1668 = vld [vmem:[%s14 + $0x158] sm:$0xff]
        %v1669 = vld [vmem:[%s14 + $0x160] sm:$0xff]
        %v1670 = vld [vmem:[%s14 + $0x168] sm:$0xff]
        %v1671 = vld [vmem:[%s14 + $0x170] sm:$0xff]
        %v1672 = vld [vmem:[%s14 + $0x178] sm:$0xff]
        %v1673 = vld [vmem:[%s14 + $0x180] sm:$0xff]
        %v1674 = vld [vmem:[%s14 + $0x188] sm:$0xff]
        %v1675 = vld [vmem:[%s14 + $0x190] sm:$0xff]
        %v1676 = vld [vmem:[%s14 + $0x198] sm:$0xff]
        %v1677 = vld [vmem:[%s14 + $0x1a0] sm:$0xff]
        %v1678 = vld [vmem:[%s14 + $0x1a8] sm:$0xff]
        %v1679 = vld [vmem:[%s14 + $0x1b0] sm:$0xff]
        %v1680 = vld [vmem:[%s14 + $0x1b8] sm:$0xff]
        %v1681 = vld [vmem:[%s14 + $0x1c0] sm:$0xff]
        %v1682 = vld [vmem:[%s14 + $0x1c8] sm:$0xff]
        %v1683 = vld [vmem:[%s14 + $0x1d0] sm:$0xff]
        %v1684 = vld [vmem:[%s14 + $0x1d8] sm:$0xff]
        %v1685 = vld [vmem:[%s14 + $0x1e0] sm:$0xff]
        %v1686 = vld [vmem:[%s14 + $0x1e8] sm:$0xff]
        %v1687 = vld [vmem:[%s14 + $0x1f0] sm:$0xff]
        %v1688 = vld [vmem:[%s14 + $0x1f8] sm:$0xff]
        %v1689 = vld [vmem:[%s15] sm:$0x1]
        %v1691 = vlaneseq
        %v1692 = vshrl.u32 %v1691, 7
        %v1693 = vsub.s32 0, %v1692
        %v1694 = vrot.slane %v1689, %v1693
        %1696 = vmatprep.subr.mxu0 0.0
        %1697 = vmatpush1.msra.mxu0 %v1625
        %1698 = vmatprep.subr.mxu0 0.0
        %1699 = vmatpush1.msra.mxu0 %v1626
        %1700 = vmatprep.subr.mxu0 0.0
        %1701 = vmatpush1.msra.mxu0 %v1627
        %1702 = vmatprep.subr.mxu0 0.0
        %1703 = vmatpush1.msra.mxu0 %v1628
        %1704 = vmatprep.subr.mxu0 0.0
        %1705 = vmatpush1.msra.mxu0 %v1629
        %1706 = vmatprep.subr.mxu0 0.0
        %1707 = vmatpush1.msra.mxu0 %v1630
        %1708 = vmatprep.subr.mxu0 0.0
        %1709 = vmatpush1.msra.mxu0 %v1631
        %1710 = vmatprep.subr.mxu0 0.0
        %1711 = vmatpush1.msra.mxu0 %v1632
        %1712 = vmatprep.subr.mxu0 0.0
        %1713 = vmatpush1.msra.mxu0 %v1633
        %1714 = vmatprep.subr.mxu0 0.0
        %1715 = vmatpush1.msra.mxu0 %v1634
        %1716 = vmatprep.subr.mxu0 0.0
        %1717 = vmatpush1.msra.mxu0 %v1635
        %1718 = vmatprep.subr.mxu0 0.0
        %1719 = vmatpush1.msra.mxu0 %v1636
        %1720 = vmatprep.subr.mxu0 0.0
        %1721 = vmatpush1.msra.mxu0 %v1637
        %1722 = vmatprep.subr.mxu0 0.0
        %1723 = vmatpush1.msra.mxu0 %v1638
        %1724 = vmatprep.subr.mxu0 0.0
        %1725 = vmatpush1.msra.mxu0 %v1639
        %1726 = vmatprep.subr.mxu0 0.0
        %1727 = vmatpush1.msra.mxu0 %v1640
        %1728 = vmatprep.subr.mxu0 0.0
        %1729 = vmatpush1.msra.mxu0 %v1641
        %1730 = vmatprep.subr.mxu0 0.0
        %1731 = vmatpush1.msra.mxu0 %v1642
        %1732 = vmatprep.subr.mxu0 0.0
        %1733 = vmatpush1.msra.mxu0 %v1643
        %1734 = vmatprep.subr.mxu0 0.0
        %1735 = vmatpush1.msra.mxu0 %v1644
        %1736 = vmatprep.subr.mxu0 0.0
        %1737 = vmatpush1.msra.mxu0 %v1645
        %1738 = vmatprep.subr.mxu0 0.0
        %1739 = vmatpush1.msra.mxu0 %v1646
        %1740 = vmatprep.subr.mxu0 0.0
        %1741 = vmatpush1.msra.mxu0 %v1647
        %1742 = vmatprep.subr.mxu0 0.0
        %1743 = vmatpush1.msra.mxu0 %v1648
        %1744 = vmatprep.subr.mxu0 0.0
        %1745 = vmatpush1.msra.mxu0 %v1649
        %1746 = vmatprep.subr.mxu0 0.0
        %1747 = vmatpush1.msra.mxu0 %v1650
        %1748 = vmatprep.subr.mxu0 0.0
        %1749 = vmatpush1.msra.mxu0 %v1651
        %1750 = vmatprep.subr.mxu0 0.0
        %1751 = vmatpush1.msra.mxu0 %v1652
        %1752 = vmatprep.subr.mxu0 0.0
        %1753 = vmatpush1.msra.mxu0 %v1653
        %1754 = vmatprep.subr.mxu0 0.0
        %1755 = vmatpush1.msra.mxu0 %v1654
        %1756 = vmatprep.subr.mxu0 0.0
        %1757 = vmatpush1.msra.mxu0 %v1655
        %1758 = vmatprep.subr.mxu0 0.0
        %1759 = vmatpush1.msra.mxu0 %v1656
        %1760 = vmatprep.mubr.f32.mxu0 %v1618
        %1761 = vmatmul.mubr.f32.gmra.mrb[0].mxu0 %v1617
        %v1762 = vpop.f32.mrb[0].mxu0
        %v1763 = vadd.f32 %v1694, %v1762
        %v1764 = vpop.f32.mrb[0].mxu0
        %1765 = vmatprep.mubr.f32.mxu0 %v1622
        %1766 = vmatmul.mubr.f32.gmra.mrb[0].mxu0 %v1621
        %v1767 = vpop.f32.mrb[0].mxu0
        %v1768 = vadd.f32 %v1694, %v1767
        %v1769 = vpop.f32.mrb[0].mxu0
        %1770 = vdwg.mxu0
        %1771 = vmatprep.subr.mxu0 0.0
        %1772 = vmatpush1.msra.mxu0 %v1657
        %1773 = vmatprep.subr.mxu0 0.0
        %1774 = vmatpush1.msra.mxu0 %v1658
        %1775 = vmatprep.subr.mxu0 0.0
        %1776 = vmatpush1.msra.mxu0 %v1659
        %1777 = vmatprep.subr.mxu0 0.0
        %1778 = vmatpush1.msra.mxu0 %v1660
        %1779 = vmatprep.subr.mxu0 0.0
        %1780 = vmatpush1.msra.mxu0 %v1661
        %1781 = vmatprep.subr.mxu0 0.0
        %1782 = vmatpush1.msra.mxu0 %v1662
        %1783 = vmatprep.subr.mxu0 0.0
        %1784 = vmatpush1.msra.mxu0 %v1663
        %1785 = vmatprep.subr.mxu0 0.0
        %1786 = vmatpush1.msra.mxu0 %v1664
        %1787 = vmatprep.subr.mxu0 0.0
        %1788 = vmatpush1.msra.mxu0 %v1665
        %1789 = vmatprep.subr.mxu0 0.0
        %1790 = vmatpush1.msra.mxu0 %v1666
        %1791 = vmatprep.subr.mxu0 0.0
        %1792 = vmatpush1.msra.mxu0 %v1667
        %1793 = vmatprep.subr.mxu0 0.0
        %1794 = vmatpush1.msra.mxu0 %v1668
        %1795 = vmatprep.subr.mxu0 0.0
        %1796 = vmatpush1.msra.mxu0 %v1669
        %1797 = vmatprep.subr.mxu0 0.0
        %1798 = vmatpush1.msra.mxu0 %v1670
        %1799 = vmatprep.subr.mxu0 0.0
        %1800 = vmatpush1.msra.mxu0 %v1671
        %1801 = vmatprep.subr.mxu0 0.0
        %1802 = vmatpush1.msra.mxu0 %v1672
        %1803 = vmatprep.subr.mxu0 0.0
        %1804 = vmatpush1.msra.mxu0 %v1673
        %1805 = vmatprep.subr.mxu0 0.0
        %1806 = vmatpush1.msra.mxu0 %v1674
        %1807 = vmatprep.subr.mxu0 0.0
        %1808 = vmatpush1.msra.mxu0 %v1675
        %1809 = vmatprep.subr.mxu0 0.0
        %1810 = vmatpush1.msra.mxu0 %v1676
        %1811 = vmatprep.subr.mxu0 0.0
        %1812 = vmatpush1.msra.mxu0 %v1677
        %1813 = vmatprep.subr.mxu0 0.0
        %1814 = vmatpush1.msra.mxu0 %v1678
        %1815 = vmatprep.subr.mxu0 0.0
        %1816 = vmatpush1.msra.mxu0 %v1679
        %1817 = vmatprep.subr.mxu0 0.0
        %1818 = vmatpush1.msra.mxu0 %v1680
        %1819 = vmatprep.subr.mxu0 0.0
        %1820 = vmatpush1.msra.mxu0 %v1681
        %1821 = vmatprep.subr.mxu0 0.0
        %1822 = vmatpush1.msra.mxu0 %v1682
        %1823 = vmatprep.subr.mxu0 0.0
        %1824 = vmatpush1.msra.mxu0 %v1683
        %1825 = vmatprep.subr.mxu0 0.0
        %1826 = vmatpush1.msra.mxu0 %v1684
        %1827 = vmatprep.subr.mxu0 0.0
        %1828 = vmatpush1.msra.mxu0 %v1685
        %1829 = vmatprep.subr.mxu0 0.0
        %1830 = vmatpush1.msra.mxu0 %v1686
        %1831 = vmatprep.subr.mxu0 0.0
        %1832 = vmatpush1.msra.mxu0 %v1687
        %1833 = vmatprep.subr.mxu0 0.0
        %1834 = vmatpush1.msra.mxu0 %v1688
        %1835 = vmatprep.mubr.f32.mxu0 %v1620
        %1836 = vmatmul.mubr.f32.gmra.mrb[0].mxu0 %v1619
        %v1837 = vpop.f32.mrb[0].mxu0
        %v1838 = vadd.f32 %v1763, %v1837
        %v1839 = vpop.f32.mrb[0].mxu0
        %1840 = vmatprep.mubr.f32.mxu0 %v1624
        %1841 = vmatmul.mubr.f32.gmra.mrb[0].mxu0 %v1623
        %v1842 = vpop.f32.mrb[0].mxu0
        %v1843 = vadd.f32 %v1768, %v1842
        %v1844 = vpop.f32.mrb[0].mxu0
        %1845 = vdwg.mxu0
        %v1846 = vadd.f32 %v1838, %v1311
        %v1847 = vadd.f32 %v1843, %v1312
        %v1848 = vld [vmem:[%s16] sm:$0x1]
        %v1849 = vld [vmem:[%s17] sm:$0x1]
        %1850 = vadd.xlane.f32.xlu0 %v1846
        %v1851 = vpop.xlane.xlu0 %1850
        %1852 = vadd.xlane.f32.xlu0 %v1847
        %v1853 = vpop.xlane.xlu0 %1852
        %v1854 = vmul.f32 %v1851, %v1093
        %v1855 = vmul.f32 %v1853, %v1093
        %v1856 = vsub.f32 %v1846, %v1854
        %v1857 = vsub.f32 %v1847, %v1855
        %v1858 = vmul.f32 %v1856, %v1856
        %v1859 = vmul.f32 %v1857, %v1857
        %1860 = vadd.xlane.f32.xlu0 %v1858
        %v1861 = vpop.xlane.xlu0 %1860
        %1862 = vadd.xlane.f32.xlu0 %v1859
        %v1863 = vpop.xlane.xlu0 %1862
        %v1864 = vmul.f32 %v1861, %v1093
        %v1865 = vmul.f32 %v1863, %v1093
        %v1866 = vadd.f32 %v1864, 1e-05
        %v1867 = vadd.f32 %v1865, 1e-05
        %v1868 = vrsqrt.pop %v1866
        %v1869 = vrsqrt.pop %v1867
        %v1870 = vmul.f32 %v1856, %v1868
        %v1871 = vmul.f32 %v1857, %v1869
        %v1873 = vlaneseq
        %v1874 = vshrl.u32 %v1873, 7
        %v1875 = vsub.s32 0, %v1874
        %v1876 = vrot.slane %v1848, %v1875
        %v1878 = vmul.f32 %v1870, %v1876
        %v1879 = vmul.f32 %v1871, %v1876
        %v1881 = vlaneseq
        %v1882 = vshrl.u32 %v1881, 7
        %v1883 = vsub.s32 0, %v1882
        %v1884 = vrot.slane %v1849, %v1883
        %v1886 = vadd.f32 %v1878, %v1884
        %v1887 = vadd.f32 %v1879, %v1884
        %1888 = vst [vmem:[%s607] sm:$0xff] %v1886
        %1889 = vst [vmem:[%s607 + $0x8] sm:$0xff] %v1887
        %s1890 = sand.u32 %s444, 1
        %s1891 = scalar_lea.sflag [#allocation3], %s1890
        %s1892 = sand.u32 %s444, 1
        %s1893 = smul.addr %s1892, 16
        %s1894 = scalar_lea.vmem [#allocation2], %s1893
        // Predicated region
        $region93: #{attn_embed_forward.3} parent=91 // pred_check
          %p1895 = pneg %p454
        $region94: #{attn_embed_forward.3} parent=91 // pred_check_branch
          %1897 = sbr.rel (%p1895) target = $region96
        $region95: #{attn_embed_forward.3} parent=91 // pred_region
          %s1899 = ssub.s32 256, 256
          %1900 = vsyncadd %s1891, %s1899
          %s1901 = smul.addr %s37, 2
          %s1902 = smul.addr %s36, 8
          %s1903 = sadd.s32 %s1901, %s1902
          %s1904 = smul.addr %s1903, 128
          %s1905 = scalar_lea.hbm %s18, %s1904
          %s1906 = sshll.u32 %s1894, 4
          %s1907 = int_to_ptr.vmem [resolvable:$true] %s1906
          %1912 = dma.vmem_to_hbm [thread:$0]  %s1907, 256, %s1905, %s1891, 128, 128, 8
        $region96: #{attn_embed_forward.3} parent=91 // pred_fallthru
          _
      $region92: #{attn_embed_forward.3} parent=5 // pred_fallthru
        _
      %p1913 = scmp.le.s32.totalorder 2, %s27
      // Predicated region
      $region97: #{attn_embed_forward.3} parent=5 // pred_check
        %p1914 = pneg %p1913
      $region98: #{attn_embed_forward.3} parent=5 // pred_check_branch
        %1916 = sbr.rel (%p1914) target = $region100
      $region99: #{attn_embed_forward.3} parent=5 // pred_region
        %s1917 = ssub.s32 %s27, 2
        // Predicated region
        $region101: #{attn_embed_forward.3} parent=99 // pred_check
          %p1918 = pneg %p460
        $region102: #{attn_embed_forward.3} parent=99 // pred_check_branch
          %1920 = sbr.rel (%p1918) target = $region104
        $region103: #{attn_embed_forward.3} parent=99 // pred_region
          %s1921 = sand.u32 %s445, 1
          %s1922 = scalar_lea.sflag [#allocation3], %s1921
          %s1923 = sand.u32 %s445, 1
          %s1924 = smul.addr %s1923, 16
          %s1925 = scalar_lea.vmem [#allocation2], %s1924
          %1926 = dma.done %s1922, 256
        $region104: #{attn_embed_forward.3} parent=99 // pred_fallthru
          _
      $region100: #{attn_embed_forward.3} parent=5 // pred_fallthru
        _
    $region6: #{attn_embed_forward.3} parent=1 // loop_footer
      %s31 = sadd.s32 1, %s27
    $region7: #{attn_embed_forward.3} parent=1 // loop_footer_branch
      %26 = sbr.rel target = $region3
    $region8: #{attn_embed_forward.3} parent=1 // loop_exit
      _
    %1927 = vsyncpa [#allocation3], 1
    %s1928 = scalar_lea.sflag [#allocation3], 1
    %1929 = vsyncpa %s1928, 1

</llo_original>
